<compile_context>
chip_gen: v7x
topology: tpu7x:2x2x1
jax: 0.10.0
libtpu: 0.0.40
codegen_flags: <defaults>
</compile_context>

<pallas_src>
import jax
import jax.numpy as jnp
from jax import lax
from jax.experimental import pallas as pl
from jax.experimental.pallas import tpu as pltpu

LRELU_SLOPE = 0.2
BN_EPS = 1e-5
LANE = 128
SUBLANE = 8


def _round_up(x, m):
    return (x + m - 1) // m * m


# ----------------------------------------------------------------------------
# Pallas kernel: whole DiscBlock for one batch image per grid step.
# ----------------------------------------------------------------------------
def _disc_block_kernel(x_ref, w0_ref, w1_ref, s0_ref, s1_ref, o_ref, a0_ref):
    """Fused conv0+bn0+lrelu -> conv1+bn1+lrelu.

    x_ref : (1, 4*OH*OW, 9*CinP) bf16   conv0 im2col, 4 stride-2 parity groups
                                        stacked along M (group g = hp*2+wp)
    w0_ref: (9*CinP, C0P)        bf16   conv0 weights (BN0 scale folded in)
    w1_ref: (8, 2*C0P, C1P)      bf16   conv1 weights, taps paired along K
                                        (pair p = di*2 + dj//2, K = [dj%2==0 | dj%2==1])
    s0_ref: (1, C0P) f32                shift0 = (b0-mean0)*scale0 + beta0 (padded)
    s1_ref: (1, C1P) f32                shift1
    o_ref : (1, OH*OW, C1P) bf16        lane-dense output slab
    a0_ref: (2, RP, CP, 2*C0P) bf16     VMEM scratch, column-parity packed lanes:
                                        a0_ref[rp, r, c, cp*C0P+ch] = a0_pad[2r+rp, 2c+cp, ch]
    """
    _, RP, CP, L = a0_ref.shape
    C0P = L // 2
    OH, OW = RP - 1, CP - 1          # conv1 output spatial dims (= H//2, W//2)
    M = OH * OW

    # --- zero ONLY the never-written halo of the scratch (pure conv1 padding).
    #     Done every step (cheap thin strips) so it stays correct when the
    #     batch grid axis is split across TensorCores.
    zrow = jnp.zeros((1, 1, CP, L), a0_ref.dtype)
    a0_ref[0:1, 0:1, :, :] = zrow                    # padded row 0
    a0_ref[1:2, RP - 1:RP, :, :] = zrow              # padded row H+1
    zcol = jnp.zeros((2, RP, 1, C0P), a0_ref.dtype)
    a0_ref[:, :, 0:1, 0:C0P] = zcol                  # padded col 0
    a0_ref[:, :, CP - 1:CP, C0P:L] = zcol            # padded col W+1

    # ---- conv0 (3x3, s1, p1) + BN0 + LeakyReLU : one K-packed dot -------------
    y0 = jnp.dot(x_ref[0], w0_ref[...], preferred_element_type=jnp.float32)
    y0 = y0 + s0_ref[...]
    y0 = jnp.maximum(y0, LRELU_SLOPE * y0).astype(jnp.bfloat16)   # (4*M, C0P)

    # Scatter the 4 output-parity groups into the parity-packed scratch.
    # Group (hp,wp) holds outputs at full-res (2r+hp, 2m+wp) -> padded coord
    # (2r+hp+1, 2m+wp+1).  (Offset-1 sublane windows when c0==1 cost one XLU
    # roll per slab; acceptable at this size — see review note.)
    for hp in range(2):
        for wp in range(2):
            g = hp * 2 + wp
            blk = y0[g * M:(g + 1) * M, :].reshape(OH, OW, C0P)
            rpar, r0 = (hp + 1) % 2, (hp + 1) // 2
            cpar, c0 = (wp + 1) % 2, (wp + 1) // 2
            a0_ref[rpar, r0:r0 + OH, c0:c0 + OW,
                   cpar * C0P:(cpar + 1) * C0P] = blk

    # ---- conv1 (4x4, s2, p1) + BN1 + LeakyReLU : 8 dots with K = 2*C0P --------
    # Output (oh,ow) tap (di,dj) needs a0_pad[2oh+di, 2ow+dj]; the two column
    # parities of a pair (dj = 2*c0, 2*c0+1) are already adjacent along lanes.
    acc = None
    for di in range(4):
        for c0 in range(2):
            p = di * 2 + c0
            lhs = a0_ref[di % 2, di // 2:di // 2 + OH,
                         c0:c0 + OW, :].reshape(M, L)
            d = jnp.dot(lhs, w1_ref[p], preferred_element_type=jnp.float32)
            acc = d if acc is None else acc + d
    y1 = acc + s1_ref[...]
    o_ref[0] = jnp.maximum(y1, LRELU_SLOPE * y1).astype(o_ref.dtype)


# ----------------------------------------------------------------------------
# JAX wrapper: layout glue (im2col for conv0, BN folding, padding) + pallas_call
# ----------------------------------------------------------------------------
def _fold_bn(bias, gamma, beta, mean, var):
    # BN_eval(conv(x) + bias) = conv(x) * scale + shift
    scale = gamma / jnp.sqrt(var + BN_EPS)
    shift = (bias - mean) * scale + beta
    return scale, shift


def disc_block_forward(x_nchw, params):
    """DiscBlock forward. x_nchw: (B, Cin, H, W) f32 -> (B, Cout, H//2, W//2) bf16."""
    # cast to bf16 up-front: all wrapper relayout + kernel DMA at half the bytes
    x = jnp.transpose(x_nchw, (0, 2, 3, 1)).astype(jnp.bfloat16)   # NCHW -> NHWC
    B, H, W, Cin = x.shape
    assert H % 2 == 0 and W % 2 == 0, "DiscBlock halves the spatial dims"
    C0 = params["w0"].shape[0]            # conv0 out channels
    C1 = params["w1"].shape[0]            # conv1 out channels
    CinP = _round_up(Cin, SUBLANE)
    C0P = _round_up(C0, LANE)             # lane-dense intermediate / conv1 GEMM-K half
    C1P = _round_up(C1, LANE)             # lane-dense output
    OH, OW = H // 2, W // 2
    M = OH * OW
    RP, CP = OH + 1, OW + 1               # per-parity rows/cols of padded a0 grid
    K0 = 9 * CinP                         # conv0 packed contraction depth

    # --- conv0 mini-im2col (cheap for small Cin), parity groups stacked on M ---
    xp = jnp.pad(x, ((0, 0), (1, 1), (1, 1), (0, CinP - Cin)))     # (B,H+2,W+2,CinP)
    groups = []
    for hp in range(2):
        for wp in range(2):
            taps = []
            for di in range(3):
                for dj in range(3):
                    taps.append(xp[:, hp + di:hp + di + 2 * OH:2,
                                   wp + dj:wp + dj + 2 * OW:2, :])
            groups.append(jnp.concatenate(taps, axis=-1))          # (B,OH,OW,K0)
    x_col = jnp.stack(groups, axis=1).reshape(B, 4 * M, K0)        # bf16

    # --- fold conv bias + eval-mode BN into (weight scale, additive shift) -----
    sc0, sh0 = _fold_bn(params["b0"], params["bn0_gamma"], params["bn0_beta"],
                        params["bn0_mean"], params["bn0_var"])
    sc1, sh1 = _fold_bn(params["b1"], params["bn1_gamma"], params["bn1_beta"],
                        params["bn1_mean"], params["bn1_var"])

    # conv0 weight (C0,Cin,3,3) -> (9*CinP, C0P), tap-major K, BN scale folded
    w0 = jnp.transpose(params["w0"], (2, 3, 1, 0)).reshape(9, Cin, C0) * sc0[None, None, :]
    w0 = jnp.pad(w0, ((0, 0), (0, CinP - Cin), (0, C0P - C0)))
    w0 = w0.reshape(K0, C0P).astype(jnp.bfloat16)

    # conv1 weight (C1,C0,4,4) -> (8, 2*C0P, C1P): pair taps (di, dj=2c0 / 2c0+1)
    w1 = jnp.transpose(params["w1"], (2, 3, 1, 0)) * sc1[None, None, None, :]   # (4,4,C0,C1)
    w1 = jnp.pad(w1, ((0, 0), (0, 0), (0, C0P - C0), (0, C1P - C1)))            # (4,4,C0P,C1P)
    w1 = (w1.reshape(4, 2, 2, C0P, C1P)      # (di, c0=dj//2, cpar=dj%2, C0P, C1P)
            .reshape(4, 2, 2 * C0P, C1P)     # merge (cpar, C0P) -> K
            .reshape(8, 2 * C0P, C1P)        # merge (di, c0)   -> pair index
            .astype(jnp.bfloat16))

    sh0 = jnp.pad(sh0, (0, C0P - C0)).reshape(1, C0P).astype(jnp.float32)
    sh1 = jnp.pad(sh1, (0, C1P - C1)).reshape(1, C1P).astype(jnp.float32)

    out = pl.pallas_call(
        _disc_block_kernel,
        out_shape=jax.ShapeDtypeStruct((B, M, C1P), jnp.bfloat16),
        grid_spec=pltpu.PrefetchScalarGridSpec(
            num_scalar_prefetch=0,
            grid=(B,),
            in_specs=[
                pl.BlockSpec((1, 4 * M, K0), lambda b: (b, 0, 0)),
                pl.BlockSpec((K0, C0P), lambda b: (0, 0)),
                pl.BlockSpec((8, 2 * C0P, C1P), lambda b: (0, 0, 0)),
                pl.BlockSpec((1, C0P), lambda b: (0, 0)),
                pl.BlockSpec((1, C1P), lambda b: (0, 0)),
            ],
            out_specs=pl.BlockSpec((1, M, C1P), lambda b: (b, 0, 0)),
            scratch_shapes=[pltpu.VMEM((2, RP, CP, 2 * C0P), jnp.bfloat16)],
        ),
        compiler_params=pltpu.CompilerParams(
            dimension_semantics=("parallel",)),
    )(x_col, w0, w1, sh0, sh1)

    out = out.reshape(B, OH, OW, C1P)[:, :, :, :C1]
    return jnp.transpose(out, (0, 3, 1, 2))   # NHWC -> NCHW (bf16)


# ----------------------------------------------------------------------------
# Pure-JAX reference (lax.conv, f32) for the correctness check
# ----------------------------------------------------------------------------
def _ref_forward(x_nchw, params):
    x = jnp.transpose(x_nchw, (0, 2, 3, 1)).astype(jnp.float32)

    def conv(h, w_oihw, bias, stride, pad):
        w_hwio = jnp.transpose(w_oihw, (2, 3, 1, 0))
        y = lax.conv_general_dilated(
            h, w_hwio, (stride, stride), [(pad, pad), (pad, pad)],
            dimension_numbers=("NHWC", "HWIO", "NHWC"))
        return y + bias[None, None, None, :]

    def bn(h, g, b, m, v):
        return (h - m) / jnp.sqrt(v + BN_EPS) * g + b

    def act(h):
        return jnp.where(h >= 0.0, h, LRELU_SLOPE * h)

    h = act(bn(conv(x, params["w0"], params["b0"], 1, 1),
               params["bn0_gamma"], params["bn0_beta"],
               params["bn0_mean"], params["bn0_var"]))
    h = act(bn(conv(h, params["w1"], params["b1"], 2, 1),
               params["bn1_gamma"], params["bn1_beta"],
               params["bn1_mean"], params["bn1_var"]))
    return jnp.transpose(h, (0, 3, 1, 2))


# ----------------------------------------------------------------------------
# Deterministic parameter init
# ----------------------------------------------------------------------------
def make_params(key, in_channels, out_channels):
    ks = jax.random.split(key, 8)
    p = {
        "w0": 0.1 * jax.random.normal(ks[0], (out_channels, in_channels, 3, 3), jnp.float32),
        "b0": 0.05 * jax.random.normal(ks[1], (out_channels,), jnp.float32),
        "w1": 0.1 * jax.random.normal(ks[2], (out_channels, out_channels, 4, 4), jnp.float32),
        "b1": 0.05 * jax.random.normal(ks[3], (out_channels,), jnp.float32),
        "bn0_gamma": 1.0 + 0.1 * jax.random.normal(ks[4], (out_channels,), jnp.float32),
        "bn0_beta": 0.1 * jax.random.normal(ks[5], (out_channels,), jnp.float32),
        "bn0_mean": 0.05 * jax.random.normal(ks[6], (out_channels,), jnp.float32),
        "bn0_var": 1.0 + 0.1 * jnp.abs(jax.random.normal(ks[7], (out_channels,), jnp.float32)),
    }
    ks2 = jax.random.split(ks[7], 4)
    p["bn1_gamma"] = 1.0 + 0.1 * jax.random.normal(ks2[0], (out_channels,), jnp.float32)
    p["bn1_beta"] = 0.1 * jax.random.normal(ks2[1], (out_channels,), jnp.float32)
    p["bn1_mean"] = 0.05 * jax.random.normal(ks2[2], (out_channels,), jnp.float32)
    p["bn1_var"] = 1.0 + 0.1 * jnp.abs(jax.random.normal(ks2[3], (out_channels,), jnp.float32))
    return p


if __name__ == "__main__":
    # TODO(synk): BatchNorm is implemented in eval mode (running stats); PyTorch
    # training-mode batch statistics are not reproduced here.
    B, Cin, Cout, H, W = 2, 4, 8, 16, 16
    key = jax.random.PRNGKey(0)
    kx, kp = jax.random.split(key)
    x = jax.random.normal(kx, (B, Cin, H, W), jnp.float32)   # NCHW, like PyTorch
    params = make_params(kp, Cin, Cout)

    out = jax.block_until_ready(jax.jit(disc_block_forward)(x, params))
    ref = jax.block_until_ready(jax.jit(_ref_forward)(x, params))

    assert out.shape == (B, Cout, H // 2, W // 2), out.shape
    out_f32 = out.astype(jnp.float32)
    max_err = float(jnp.max(jnp.abs(out_f32 - ref)))
    # bf16 MXU operands / bf16 output with f32 accumulation: tightened tolerance
    assert jnp.allclose(out_f32, ref, rtol=2e-2, atol=2e-2), max_err
    print("KERNEL_OK")
</pallas_src>

<mosaic_0001>
module attributes {stable_mosaic.version = 11 : i64} {
  func.func @_disc_block_kernel(%arg0: i32, %arg1: memref<1x256x72xbf16, #tpu.memory_space<vmem>>, %arg2: memref<72x128xbf16, #tpu.memory_space<vmem>>, %arg3: memref<8x256x128xbf16, #tpu.memory_space<vmem>>, %arg4: memref<1x128xf32, #tpu.memory_space<vmem>>, %arg5: memref<1x128xf32, #tpu.memory_space<vmem>>, %arg6: memref<1x64x128xbf16, #tpu.memory_space<vmem>>, %arg7: memref<2x9x9x256xbf16, #tpu.memory_space<vmem>>) attributes {dimension_semantics = [#tpu.dimension_semantics<parallel>], iteration_bounds = array<i64: 2>, scalar_prefetch = 0 : i64, scratch_operands = 1 : i64, tpu.core_type = #tpu.core_type<tc>, window_params = [{transform_indices = @transform_0, window_bounds = array<i64: 1, 256, 72>}, {pipeline_mode = #tpu.pipeline_mode<synchronous>, transform_indices = @transform_1, window_bounds = array<i64: 72, 128>}, {pipeline_mode = #tpu.pipeline_mode<synchronous>, transform_indices = @transform_2, window_bounds = array<i64: 8, 256, 128>}, {pipeline_mode = #tpu.pipeline_mode<synchronous>, transform_indices = @transform_3, window_bounds = array<i64: 1, 128>}, {pipeline_mode = #tpu.pipeline_mode<synchronous>, transform_indices = @transform_4, window_bounds = array<i64: 1, 128>}, {transform_indices = @transform_5, window_bounds = array<i64: 1, 64, 128>}]} {
    %cst = arith.constant 0.000000e+00 : bf16
    %0 = vector.broadcast %cst : bf16 to vector<1x1x9x256xbf16>
    %c0 = arith.constant 0 : index
    %c0_0 = arith.constant 0 : index
    %c0_1 = arith.constant 0 : index
    %c0_2 = arith.constant 0 : index
    %1 = vector.load %arg7[%c0, %c0_0, %c0_1, %c0_2] : memref<2x9x9x256xbf16, #tpu.memory_space<vmem>>, vector<1x1x9x256xbf16>
    tpu.vector_store %arg7[%c0, %c0_0, %c0_1, %c0_2], %0 {strides = array<i32>} : memref<2x9x9x256xbf16, #tpu.memory_space<vmem>>, vector<1x1x9x256xbf16>,
    %c1 = arith.constant 1 : index
    %c8 = arith.constant 8 : index
    %c0_3 = arith.constant 0 : index
    %c0_4 = arith.constant 0 : index
    %2 = vector.load %arg7[%c1, %c8, %c0_3, %c0_4] : memref<2x9x9x256xbf16, #tpu.memory_space<vmem>>, vector<1x1x9x256xbf16>
    tpu.vector_store %arg7[%c1, %c8, %c0_3, %c0_4], %0 {strides = array<i32>} : memref<2x9x9x256xbf16, #tpu.memory_space<vmem>>, vector<1x1x9x256xbf16>,
    %cst_5 = arith.constant 0.000000e+00 : bf16
    %3 = vector.broadcast %cst_5 : bf16 to vector<2x9x1x128xbf16>
    %c0_6 = arith.constant 0 : index
    %c0_7 = arith.constant 0 : index
    %c0_8 = arith.constant 0 : index
    %c0_9 = arith.constant 0 : index
    %4 = vector.load %arg7[%c0_6, %c0_7, %c0_8, %c0_9] : memref<2x9x9x256xbf16, #tpu.memory_space<vmem>>, vector<2x9x1x128xbf16>
    tpu.vector_store %arg7[%c0_6, %c0_7, %c0_8, %c0_9], %3 {strides = array<i32>} : memref<2x9x9x256xbf16, #tpu.memory_space<vmem>>, vector<2x9x1x128xbf16>,
    %c0_10 = arith.constant 0 : index
    %c0_11 = arith.constant 0 : index
    %c8_12 = arith.constant 8 : index
    %c128 = arith.constant 128 : index
    %5 = vector.load %arg7[%c0_10, %c0_11, %c8_12, %c128] : memref<2x9x9x256xbf16, #tpu.memory_space<vmem>>, vector<2x9x1x128xbf16>
    tpu.vector_store %arg7[%c0_10, %c0_11, %c8_12, %c128], %3 {strides = array<i32>} : memref<2x9x9x256xbf16, #tpu.memory_space<vmem>>, vector<2x9x1x128xbf16>,
    %c0_13 = arith.constant 0 : index
    %c0_14 = arith.constant 0 : index
    %c0_15 = arith.constant 0 : index
    %6 = vector.load %arg1[%c0_13, %c0_14, %c0_15] : memref<1x256x72xbf16, #tpu.memory_space<vmem>>, vector<1x256x72xbf16>
    %7 = vector.shape_cast %6 : vector<1x256x72xbf16> to vector<256x72xbf16>
    %c0_16 = arith.constant 0 : index
    %c0_17 = arith.constant 0 : index
    %8 = vector.load %arg2[%c0_16, %c0_17] : memref<72x128xbf16, #tpu.memory_space<vmem>>, vector<72x128xbf16>
    %cst_18 = arith.constant dense<0.000000e+00> : vector<256x128xf32>
    %9 = tpu.matmul %7, %8, %cst_18 {dimension_numbers = #tpu.dot_dimension_numbers<[1], [0], [0], [1], [0, 0, 1, 1], [], []>} : vector<256x72xbf16>, vector<72x128xbf16>, vector<256x128xf32> -> vector<256x128xf32>
    %c0_19 = arith.constant 0 : index
    %c0_20 = arith.constant 0 : index
    %10 = vector.load %arg4[%c0_19, %c0_20] : memref<1x128xf32, #tpu.memory_space<vmem>>, vector<1x128xf32>
    %11 = vector.broadcast %10 : vector<1x128xf32> to vector<256x128xf32>
    %12 = arith.addf %9, %11 : vector<256x128xf32>
    %cst_21 = arith.constant 2.000000e-01 : f32
    %13 = vector.broadcast %cst_21 : f32 to vector<256x128xf32>
    %14 = arith.mulf %13, %12 : vector<256x128xf32>
    %15 = arith.maximumf %12, %14 : vector<256x128xf32>
    %16 = arith.truncf %15 : vector<256x128xf32> to vector<256x128xbf16>
    %17 = vector.extract_strided_slice %16 {offsets = [0, 0], sizes = [64, 128], strides = [1, 1]} : vector<256x128xbf16> to vector<64x128xbf16>
    %18 = vector.shape_cast %17 : vector<64x128xbf16> to vector<8x8x128xbf16>
    %c1_22 = arith.constant 1 : index
    %c0_23 = arith.constant 0 : index
    %c0_24 = arith.constant 0 : index
    %c128_25 = arith.constant 128 : index
    %19 = vector.load %arg7[%c1_22, %c0_23, %c0_24, %c128_25] : memref<2x9x9x256xbf16, #tpu.memory_space<vmem>>, vector<1x8x8x128xbf16>
    %20 = vector.shape_cast %19 : vector<1x8x8x128xbf16> to vector<8x8x128xbf16>
    %21 = vector.shape_cast %18 : vector<8x8x128xbf16> to vector<1x8x8x128xbf16>
    tpu.vector_store %arg7[%c1_22, %c0_23, %c0_24, %c128_25], %21 {strides = array<i32>} : memref<2x9x9x256xbf16, #tpu.memory_space<vmem>>, vector<1x8x8x128xbf16>,
    %22 = vector.extract_strided_slice %16 {offsets = [64, 0], sizes = [64, 128], strides = [1, 1]} : vector<256x128xbf16> to vector<64x128xbf16>
    %23 = vector.shape_cast %22 : vector<64x128xbf16> to vector<8x8x128xbf16>
    %c1_26 = arith.constant 1 : index
    %c0_27 = arith.constant 0 : index
    %c1_28 = arith.constant 1 : index
    %c0_29 = arith.constant 0 : index
    %24 = vector.load %arg7[%c1_26, %c0_27, %c1_28, %c0_29] : memref<2x9x9x256xbf16, #tpu.memory_space<vmem>>, vector<1x8x8x128xbf16>
    %25 = vector.shape_cast %24 : vector<1x8x8x128xbf16> to vector<8x8x128xbf16>
    %26 = vector.shape_cast %23 : vector<8x8x128xbf16> to vector<1x8x8x128xbf16>
    tpu.vector_store %arg7[%c1_26, %c0_27, %c1_28, %c0_29], %26 {strides = array<i32>} : memref<2x9x9x256xbf16, #tpu.memory_space<vmem>>, vector<1x8x8x128xbf16>,
    %27 = vector.extract_strided_slice %16 {offsets = [128, 0], sizes = [64, 128], strides = [1, 1]} : vector<256x128xbf16> to vector<64x128xbf16>
    %28 = vector.shape_cast %27 : vector<64x128xbf16> to vector<8x8x128xbf16>
    %c0_30 = arith.constant 0 : index
    %c1_31 = arith.constant 1 : index
    %c0_32 = arith.constant 0 : index
    %c128_33 = arith.constant 128 : index
    %29 = vector.load %arg7[%c0_30, %c1_31, %c0_32, %c128_33] : memref<2x9x9x256xbf16, #tpu.memory_space<vmem>>, vector<1x8x8x128xbf16>
    %30 = vector.shape_cast %29 : vector<1x8x8x128xbf16> to vector<8x8x128xbf16>
    %31 = vector.shape_cast %28 : vector<8x8x128xbf16> to vector<1x8x8x128xbf16>
    tpu.vector_store %arg7[%c0_30, %c1_31, %c0_32, %c128_33], %31 {strides = array<i32>} : memref<2x9x9x256xbf16, #tpu.memory_space<vmem>>, vector<1x8x8x128xbf16>,
    %32 = vector.extract_strided_slice %16 {offsets = [192, 0], sizes = [64, 128], strides = [1, 1]} : vector<256x128xbf16> to vector<64x128xbf16>
    %33 = vector.shape_cast %32 : vector<64x128xbf16> to vector<8x8x128xbf16>
    %c0_34 = arith.constant 0 : index
    %c1_35 = arith.constant 1 : index
    %c1_36 = arith.constant 1 : index
    %c0_37 = arith.constant 0 : index
    %34 = vector.load %arg7[%c0_34, %c1_35, %c1_36, %c0_37] : memref<2x9x9x256xbf16, #tpu.memory_space<vmem>>, vector<1x8x8x128xbf16>
    %35 = vector.shape_cast %34 : vector<1x8x8x128xbf16> to vector<8x8x128xbf16>
    %36 = vector.shape_cast %33 : vector<8x8x128xbf16> to vector<1x8x8x128xbf16>
    tpu.vector_store %arg7[%c0_34, %c1_35, %c1_36, %c0_37], %36 {strides = array<i32>} : memref<2x9x9x256xbf16, #tpu.memory_space<vmem>>, vector<1x8x8x128xbf16>,
    %c0_38 = arith.constant 0 : index
    %c0_39 = arith.constant 0 : index
    %c0_40 = arith.constant 0 : index
    %c0_41 = arith.constant 0 : index
    %37 = vector.load %arg7[%c0_38, %c0_39, %c0_40, %c0_41] : memref<2x9x9x256xbf16, #tpu.memory_space<vmem>>, vector<1x8x8x256xbf16>
    %38 = vector.shape_cast %37 : vector<1x8x8x256xbf16> to vector<8x8x256xbf16>
    %39 = vector.shape_cast %38 : vector<8x8x256xbf16> to vector<64x256xbf16>
    %c0_42 = arith.constant 0 : index
    %c0_43 = arith.constant 0 : index
    %c0_44 = arith.constant 0 : index
    %40 = vector.load %arg3[%c0_42, %c0_43, %c0_44] : memref<8x256x128xbf16, #tpu.memory_space<vmem>>, vector<1x256x128xbf16>
    %41 = vector.shape_cast %40 : vector<1x256x128xbf16> to vector<256x128xbf16>
    %cst_45 = arith.constant dense<0.000000e+00> : vector<64x128xf32>
    %42 = tpu.matmul %39, %41, %cst_45 {dimension_numbers = #tpu.dot_dimension_numbers<[1], [0], [0], [1], [0, 0, 1, 1], [], []>} : vector<64x256xbf16>, vector<256x128xbf16>, vector<64x128xf32> -> vector<64x128xf32>
    %c0_46 = arith.constant 0 : index
    %c0_47 = arith.constant 0 : index
    %c1_48 = arith.constant 1 : index
    %c0_49 = arith.constant 0 : index
    %43 = vector.load %arg7[%c0_46, %c0_47, %c1_48, %c0_49] : memref<2x9x9x256xbf16, #tpu.memory_space<vmem>>, vector<1x8x8x256xbf16>
    %44 = vector.shape_cast %43 : vector<1x8x8x256xbf16> to vector<8x8x256xbf16>
    %45 = vector.shape_cast %44 : vector<8x8x256xbf16> to vector<64x256xbf16>
    %c1_50 = arith.constant 1 : index
    %c0_51 = arith.constant 0 : index
    %c0_52 = arith.constant 0 : index
    %46 = vector.load %arg3[%c1_50, %c0_51, %c0_52] : memref<8x256x128xbf16, #tpu.memory_space<vmem>>, vector<1x256x128xbf16>
    %47 = vector.shape_cast %46 : vector<1x256x128xbf16> to vector<256x128xbf16>
    %cst_53 = arith.constant dense<0.000000e+00> : vector<64x128xf32>
    %48 = tpu.matmul %45, %47, %cst_53 {dimension_numbers = #tpu.dot_dimension_numbers<[1], [0], [0], [1], [0, 0, 1, 1], [], []>} : vector<64x256xbf16>, vector<256x128xbf16>, vector<64x128xf32> -> vector<64x128xf32>
    %49 = arith.addf %42, %48 : vector<64x128xf32>
    %c1_54 = arith.constant 1 : index
    %c0_55 = arith.constant 0 : index
    %c0_56 = arith.constant 0 : index
    %c0_57 = arith.constant 0 : index
    %50 = vector.load %arg7[%c1_54, %c0_55, %c0_56, %c0_57] : memref<2x9x9x256xbf16, #tpu.memory_space<vmem>>, vector<1x8x8x256xbf16>
    %51 = vector.shape_cast %50 : vector<1x8x8x256xbf16> to vector<8x8x256xbf16>
    %52 = vector.shape_cast %51 : vector<8x8x256xbf16> to vector<64x256xbf16>
    %c2 = arith.constant 2 : index
    %c0_58 = arith.constant 0 : index
    %c0_59 = arith.constant 0 : index
    %53 = vector.load %arg3[%c2, %c0_58, %c0_59] : memref<8x256x128xbf16, #tpu.memory_space<vmem>>, vector<1x256x128xbf16>
    %54 = vector.shape_cast %53 : vector<1x256x128xbf16> to vector<256x128xbf16>
    %cst_60 = arith.constant dense<0.000000e+00> : vector<64x128xf32>
    %55 = tpu.matmul %52, %54, %cst_60 {dimension_numbers = #tpu.dot_dimension_numbers<[1], [0], [0], [1], [0, 0, 1, 1], [], []>} : vector<64x256xbf16>, vector<256x128xbf16>, vector<64x128xf32> -> vector<64x128xf32>
    %56 = arith.addf %49, %55 : vector<64x128xf32>
    %c1_61 = arith.constant 1 : index
    %c0_62 = arith.constant 0 : index
    %c1_63 = arith.constant 1 : index
    %c0_64 = arith.constant 0 : index
    %57 = vector.load %arg7[%c1_61, %c0_62, %c1_63, %c0_64] : memref<2x9x9x256xbf16, #tpu.memory_space<vmem>>, vector<1x8x8x256xbf16>
    %58 = vector.shape_cast %57 : vector<1x8x8x256xbf16> to vector<8x8x256xbf16>
    %59 = vector.shape_cast %58 : vector<8x8x256xbf16> to vector<64x256xbf16>
    %c3 = arith.constant 3 : index
    %c0_65 = arith.constant 0 : index
    %c0_66 = arith.constant 0 : index
    %60 = vector.load %arg3[%c3, %c0_65, %c0_66] : memref<8x256x128xbf16, #tpu.memory_space<vmem>>, vector<1x256x128xbf16>
    %61 = vector.shape_cast %60 : vector<1x256x128xbf16> to vector<256x128xbf16>
    %cst_67 = arith.constant dense<0.000000e+00> : vector<64x128xf32>
    %62 = tpu.matmul %59, %61, %cst_67 {dimension_numbers = #tpu.dot_dimension_numbers<[1], [0], [0], [1], [0, 0, 1, 1], [], []>} : vector<64x256xbf16>, vector<256x128xbf16>, vector<64x128xf32> -> vector<64x128xf32>
    %63 = arith.addf %56, %62 : vector<64x128xf32>
    %c0_68 = arith.constant 0 : index
    %c1_69 = arith.constant 1 : index
    %c0_70 = arith.constant 0 : index
    %c0_71 = arith.constant 0 : index
    %64 = vector.load %arg7[%c0_68, %c1_69, %c0_70, %c0_71] : memref<2x9x9x256xbf16, #tpu.memory_space<vmem>>, vector<1x8x8x256xbf16>
    %65 = vector.shape_cast %64 : vector<1x8x8x256xbf16> to vector<8x8x256xbf16>
    %66 = vector.shape_cast %65 : vector<8x8x256xbf16> to vector<64x256xbf16>
    %c4 = arith.constant 4 : index
    %c0_72 = arith.constant 0 : index
    %c0_73 = arith.constant 0 : index
    %67 = vector.load %arg3[%c4, %c0_72, %c0_73] : memref<8x256x128xbf16, #tpu.memory_space<vmem>>, vector<1x256x128xbf16>
    %68 = vector.shape_cast %67 : vector<1x256x128xbf16> to vector<256x128xbf16>
    %cst_74 = arith.constant dense<0.000000e+00> : vector<64x128xf32>
    %69 = tpu.matmul %66, %68, %cst_74 {dimension_numbers = #tpu.dot_dimension_numbers<[1], [0], [0], [1], [0, 0, 1, 1], [], []>} : vector<64x256xbf16>, vector<256x128xbf16>, vector<64x128xf32> -> vector<64x128xf32>
    %70 = arith.addf %63, %69 : vector<64x128xf32>
    %c0_75 = arith.constant 0 : index
    %c1_76 = arith.constant 1 : index
    %c1_77 = arith.constant 1 : index
    %c0_78 = arith.constant 0 : index
    %71 = vector.load %arg7[%c0_75, %c1_76, %c1_77, %c0_78] : memref<2x9x9x256xbf16, #tpu.memory_space<vmem>>, vector<1x8x8x256xbf16>
    %72 = vector.shape_cast %71 : vector<1x8x8x256xbf16> to vector<8x8x256xbf16>
    %73 = vector.shape_cast %72 : vector<8x8x256xbf16> to vector<64x256xbf16>
    %c5 = arith.constant 5 : index
    %c0_79 = arith.constant 0 : index
    %c0_80 = arith.constant 0 : index
    %74 = vector.load %arg3[%c5, %c0_79, %c0_80] : memref<8x256x128xbf16, #tpu.memory_space<vmem>>, vector<1x256x128xbf16>
    %75 = vector.shape_cast %74 : vector<1x256x128xbf16> to vector<256x128xbf16>
    %cst_81 = arith.constant dense<0.000000e+00> : vector<64x128xf32>
    %76 = tpu.matmul %73, %75, %cst_81 {dimension_numbers = #tpu.dot_dimension_numbers<[1], [0], [0], [1], [0, 0, 1, 1], [], []>} : vector<64x256xbf16>, vector<256x128xbf16>, vector<64x128xf32> -> vector<64x128xf32>
    %77 = arith.addf %70, %76 : vector<64x128xf32>
    %c1_82 = arith.constant 1 : index
    %c1_83 = arith.constant 1 : index
    %c0_84 = arith.constant 0 : index
    %c0_85 = arith.constant 0 : index
    %78 = vector.load %arg7[%c1_82, %c1_83, %c0_84, %c0_85] : memref<2x9x9x256xbf16, #tpu.memory_space<vmem>>, vector<1x8x8x256xbf16>
    %79 = vector.shape_cast %78 : vector<1x8x8x256xbf16> to vector<8x8x256xbf16>
    %80 = vector.shape_cast %79 : vector<8x8x256xbf16> to vector<64x256xbf16>
    %c6 = arith.constant 6 : index
    %c0_86 = arith.constant 0 : index
    %c0_87 = arith.constant 0 : index
    %81 = vector.load %arg3[%c6, %c0_86, %c0_87] : memref<8x256x128xbf16, #tpu.memory_space<vmem>>, vector<1x256x128xbf16>
    %82 = vector.shape_cast %81 : vector<1x256x128xbf16> to vector<256x128xbf16>
    %cst_88 = arith.constant dense<0.000000e+00> : vector<64x128xf32>
    %83 = tpu.matmul %80, %82, %cst_88 {dimension_numbers = #tpu.dot_dimension_numbers<[1], [0], [0], [1], [0, 0, 1, 1], [], []>} : vector<64x256xbf16>, vector<256x128xbf16>, vector<64x128xf32> -> vector<64x128xf32>
    %84 = arith.addf %77, %83 : vector<64x128xf32>
    %c1_89 = arith.constant 1 : index
    %c1_90 = arith.constant 1 : index
    %c1_91 = arith.constant 1 : index
    %c0_92 = arith.constant 0 : index
    %85 = vector.load %arg7[%c1_89, %c1_90, %c1_91, %c0_92] : memref<2x9x9x256xbf16, #tpu.memory_space<vmem>>, vector<1x8x8x256xbf16>
    %86 = vector.shape_cast %85 : vector<1x8x8x256xbf16> to vector<8x8x256xbf16>
    %87 = vector.shape_cast %86 : vector<8x8x256xbf16> to vector<64x256xbf16>
    %c7 = arith.constant 7 : index
    %c0_93 = arith.constant 0 : index
    %c0_94 = arith.constant 0 : index
    %88 = vector.load %arg3[%c7, %c0_93, %c0_94] : memref<8x256x128xbf16, #tpu.memory_space<vmem>>, vector<1x256x128xbf16>
    %89 = vector.shape_cast %88 : vector<1x256x128xbf16> to vector<256x128xbf16>
    %cst_95 = arith.constant dense<0.000000e+00> : vector<64x128xf32>
    %90 = tpu.matmul %87, %89, %cst_95 {dimension_numbers = #tpu.dot_dimension_numbers<[1], [0], [0], [1], [0, 0, 1, 1], [], []>} : vector<64x256xbf16>, vector<256x128xbf16>, vector<64x128xf32> -> vector<64x128xf32>
    %91 = arith.addf %84, %90 : vector<64x128xf32>
    %c0_96 = arith.constant 0 : index
    %c0_97 = arith.constant 0 : index
    %92 = vector.load %arg5[%c0_96, %c0_97] : memref<1x128xf32, #tpu.memory_space<vmem>>, vector<1x128xf32>
    %93 = vector.broadcast %92 : vector<1x128xf32> to vector<64x128xf32>
    %94 = arith.addf %91, %93 : vector<64x128xf32>
    %cst_98 = arith.constant 2.000000e-01 : f32
    %95 = vector.broadcast %cst_98 : f32 to vector<64x128xf32>
    %96 = arith.mulf %95, %94 : vector<64x128xf32>
    %97 = arith.maximumf %94, %96 : vector<64x128xf32>
    %98 = arith.truncf %97 : vector<64x128xf32> to vector<64x128xbf16>
    %c0_99 = arith.constant 0 : index
    %c0_100 = arith.constant 0 : index
    %c0_101 = arith.constant 0 : index
    %99 = vector.load %arg6[%c0_99, %c0_100, %c0_101] : memref<1x64x128xbf16, #tpu.memory_space<vmem>>, vector<1x64x128xbf16>
    %100 = vector.shape_cast %99 : vector<1x64x128xbf16> to vector<64x128xbf16>
    %101 = vector.shape_cast %98 : vector<64x128xbf16> to vector<1x64x128xbf16>
    tpu.vector_store %arg6[%c0_99, %c0_100, %c0_101], %101 {strides = array<i32>} : memref<1x64x128xbf16, #tpu.memory_space<vmem>>, vector<1x64x128xbf16>,
    return
  }
  func.func @transform_0(%arg0: i32) -> (i32, i32, i32) {
    %c0_i32 = arith.constant 0 : i32
    %c0_i32_0 = arith.constant 0 : i32
    %c0_i32_1 = arith.constant 0 : i32
    return %arg0, %c0_i32, %c0_i32_0 : i32, i32, i32
  }
  func.func @transform_1(%arg0: i32) -> (i32, i32) {
    %c0_i32 = arith.constant 0 : i32
    %c0_i32_0 = arith.constant 0 : i32
    %c0_i32_1 = arith.constant 0 : i32
    return %c0_i32, %c0_i32_0 : i32, i32
  }
  func.func @transform_2(%arg0: i32) -> (i32, i32, i32) {
    %c0_i32 = arith.constant 0 : i32
    %c0_i32_0 = arith.constant 0 : i32
    %c0_i32_1 = arith.constant 0 : i32
    %c0_i32_2 = arith.constant 0 : i32
    return %c0_i32, %c0_i32_0, %c0_i32_1 : i32, i32, i32
  }
  func.func @transform_3(%arg0: i32) -> (i32, i32) {
    %c0_i32 = arith.constant 0 : i32
    %c0_i32_0 = arith.constant 0 : i32
    %c0_i32_1 = arith.constant 0 : i32
    return %c0_i32, %c0_i32_0 : i32, i32
  }
  func.func @transform_4(%arg0: i32) -> (i32, i32) {
    %c0_i32 = arith.constant 0 : i32
    %c0_i32_0 = arith.constant 0 : i32
    %c0_i32_1 = arith.constant 0 : i32
    return %c0_i32, %c0_i32_0 : i32, i32
  }
  func.func @transform_5(%arg0: i32) -> (i32, i32, i32) {
    %c0_i32 = arith.constant 0 : i32
    %c0_i32_0 = arith.constant 0 : i32
    %c0_i32_1 = arith.constant 0 : i32
    return %arg0, %c0_i32, %c0_i32_0 : i32, i32, i32
  }
}

</mosaic_0001>

<llo_original>
// kernel: disc_block_forward.1
$region0: #{disc_block_forward.1}
  #allocation0 [shape = 'u32[]', space=smem, size = 0x4, offset = 0x4, fixed_abs, tag = 'smem constant byte address 0x4 - core index']
  #allocation1 [shape = 'u32[144,128]{1,0:T(1,128)}', space=vmem, size = 0x12000, scoped, tag = 'internal scratch']
  #allocation2 [shape = 'bf16[2,9,9,256]{3,2,1,0:T(8,128)(2,1)}', space=vmem, size = 0x24000, scoped, tag = 'scratch operand']
  %s0 = inlined_call_operand.vmem [shape: bf16[2,256,72], index: 0, kind: input, shape index: {}]
  %s1 = inlined_call_operand.vmem [shape: bf16[72,128], index: 1, kind: input, shape index: {}]
  %s2 = inlined_call_operand.vmem [shape: bf16[8,256,128], index: 2, kind: input, shape index: {}]
  %s3 = inlined_call_operand.vmem [shape: f32[1,128], index: 3, kind: input, shape index: {}]
  %s4 = inlined_call_operand.vmem [shape: f32[1,128], index: 4, kind: input, shape index: {}]
  %s5 = inlined_call_operand.vmem [shape: bf16[2,64,128], index: 5, kind: output, shape index: {}]
  %s6 = sld [smem:[#allocation0]]
  $region53: #{disc_block_forward.1} parent=0
    _
  %s8 = ssub.s32 1, %s6
  %s9 = scalar_select 0, %s8, %s6
  loop: start=0, step=1, limit=4
  $region2: #{disc_block_forward.1} parent=0 // loop_pre_header
    _
  $region3: #{disc_block_forward.1} parent=0 // loop_header
    %s11 = sphi 0, %s15
    %p12 = scmp.ge.s32.totalorder %s11, 4
    %s21 = sphi 0, %s23
    %s24 = sphi 0, %s21
    %s25 = sphi 0, %s24
    %s41 = sphi 0, %s25
    %s45 = sphi 0, %s45
    %s47 = sphi 0, %s45
    %s48 = sphi 0, %s47
    %s62 = sphi 0, %s48
    %s66 = sphi 0, %s66
    %s68 = sphi 0, %s66
    %s69 = sphi 0, %s68
    %s83 = sphi 0, %s69
    %s87 = sphi 0, %s87
    %s89 = sphi 0, %s87
    %s90 = sphi 0, %s89
    %s104 = sphi 0, %s90
    %s108 = sphi 0, %s108
    %s110 = sphi 0, %s108
    %s111 = sphi 0, %s110
    %s125 = sphi 0, %s111
    %s131 = sphi 0, %s133
    %s134 = sphi 0, %s131
    %s135 = sphi 0, %s134
    %s151 = sphi 0, %s135
  $region4: #{disc_block_forward.1} parent=0 // loop_header_branch
    %14 = sbr.rel (%p12) target = $region8
  $region5: #{disc_block_forward.1} parent=0 // loop_body
    %s16 = ssub.s32 %s11, 1
    %s17 = ssub.s32 %s11, 2
    %s18 = sadd.s32 %s11, 1
    %s19 = ssub.s32 %s11, %s18
    %p20 = scmp.eq.s32.totalorder %s19, 0
    %s22 = sadd.s32 %s21, 1
    %s23 = scalar_select %p20, %s21, %s22
    %p26 = pneg %p20
    %p27 = scmp.eq.s32.totalorder %s11, 1
    %p28 = por %p26, %p27
    %p29 = scmp.ne.s32.totalorder %s21, %s24
    %p30 = scmp.eq.s32.totalorder %s11, 0
    %p31 = por %p29, %p30
    %p32 = scmp.ne.s32.totalorder %s21, %s24
    %p33 = scmp.eq.s32.totalorder %s16, 1
    %p34 = por %p32, %p33
    %p35 = scmp.ne.s32.totalorder %s24, %s25
    %p36 = scmp.eq.s32.totalorder %s16, 0
    %p37 = por %p35, %p36
    %p38 = scmp.ne.s32.totalorder %s24, %s25
    %p39 = scmp.eq.s32.totalorder %s17, 1
    %p40 = por %p38, %p39
    %p42 = scmp.ne.s32.totalorder %s25, %s41
    %p43 = scmp.eq.s32.totalorder %s17, 0
    %p44 = por %p42, %p43
    %s46 = sadd.s32 %s45, 1
    %p49 = scmp.eq.s32.totalorder %s11, 1
    %p50 = scmp.ne.s32.totalorder %s45, %s47
    %p51 = scmp.eq.s32.totalorder %s11, 0
    %p52 = por %p50, %p51
    %p53 = scmp.ne.s32.totalorder %s45, %s47
    %p54 = scmp.eq.s32.totalorder %s16, 1
    %p55 = por %p53, %p54
    %p56 = scmp.ne.s32.totalorder %s47, %s48
    %p57 = scmp.eq.s32.totalorder %s16, 0
    %p58 = por %p56, %p57
    %p59 = scmp.ne.s32.totalorder %s47, %s48
    %p60 = scmp.eq.s32.totalorder %s17, 1
    %p61 = por %p59, %p60
    %p63 = scmp.ne.s32.totalorder %s48, %s62
    %p64 = scmp.eq.s32.totalorder %s17, 0
    %p65 = por %p63, %p64
    %s67 = sadd.s32 %s66, 1
    %p70 = scmp.eq.s32.totalorder %s11, 1
    %p71 = scmp.ne.s32.totalorder %s66, %s68
    %p72 = scmp.eq.s32.totalorder %s11, 0
    %p73 = por %p71, %p72
    %p74 = scmp.ne.s32.totalorder %s66, %s68
    %p75 = scmp.eq.s32.totalorder %s16, 1
    %p76 = por %p74, %p75
    %p77 = scmp.ne.s32.totalorder %s68, %s69
    %p78 = scmp.eq.s32.totalorder %s16, 0
    %p79 = por %p77, %p78
    %p80 = scmp.ne.s32.totalorder %s68, %s69
    %p81 = scmp.eq.s32.totalorder %s17, 1
    %p82 = por %p80, %p81
    %p84 = scmp.ne.s32.totalorder %s69, %s83
    %p85 = scmp.eq.s32.totalorder %s17, 0
    %p86 = por %p84, %p85
    %s88 = sadd.s32 %s87, 1
    %p91 = scmp.eq.s32.totalorder %s11, 1
    %p92 = scmp.ne.s32.totalorder %s87, %s89
    %p93 = scmp.eq.s32.totalorder %s11, 0
    %p94 = por %p92, %p93
    %p95 = scmp.ne.s32.totalorder %s87, %s89
    %p96 = scmp.eq.s32.totalorder %s16, 1
    %p97 = por %p95, %p96
    %p98 = scmp.ne.s32.totalorder %s89, %s90
    %p99 = scmp.eq.s32.totalorder %s16, 0
    %p100 = por %p98, %p99
    %p101 = scmp.ne.s32.totalorder %s89, %s90
    %p102 = scmp.eq.s32.totalorder %s17, 1
    %p103 = por %p101, %p102
    %p105 = scmp.ne.s32.totalorder %s90, %s104
    %p106 = scmp.eq.s32.totalorder %s17, 0
    %p107 = por %p105, %p106
    %s109 = sadd.s32 %s108, 1
    %p112 = scmp.eq.s32.totalorder %s11, 1
    %p113 = scmp.ne.s32.totalorder %s108, %s110
    %p114 = scmp.eq.s32.totalorder %s11, 0
    %p115 = por %p113, %p114
    %p116 = scmp.ne.s32.totalorder %s108, %s110
    %p117 = scmp.eq.s32.totalorder %s16, 1
    %p118 = por %p116, %p117
    %p119 = scmp.ne.s32.totalorder %s110, %s111
    %p120 = scmp.eq.s32.totalorder %s16, 0
    %p121 = por %p119, %p120
    %p122 = scmp.ne.s32.totalorder %s110, %s111
    %p123 = scmp.eq.s32.totalorder %s17, 1
    %p124 = por %p122, %p123
    %p126 = scmp.ne.s32.totalorder %s111, %s125
    %p127 = scmp.eq.s32.totalorder %s17, 0
    %p128 = por %p126, %p127
    %s129 = ssub.s32 %s11, %s18
    %p130 = scmp.eq.s32.totalorder %s129, 0
    %s132 = sadd.s32 %s131, 1
    %s133 = scalar_select %p130, %s131, %s132
    %p136 = pneg %p130
    %p137 = scmp.eq.s32.totalorder %s11, 1
    %p138 = por %p136, %p137
    %p139 = scmp.ne.s32.totalorder %s131, %s134
    %p140 = scmp.eq.s32.totalorder %s11, 0
    %p141 = por %p139, %p140
    %p142 = scmp.ne.s32.totalorder %s131, %s134
    %p143 = scmp.eq.s32.totalorder %s16, 1
    %p144 = por %p142, %p143
    %p145 = scmp.ne.s32.totalorder %s134, %s135
    %p146 = scmp.eq.s32.totalorder %s16, 0
    %p147 = por %p145, %p146
    %p148 = scmp.ne.s32.totalorder %s134, %s135
    %p149 = scmp.eq.s32.totalorder %s17, 1
    %p150 = por %p148, %p149
    %p152 = scmp.ne.s32.totalorder %s135, %s151
    %p153 = scmp.eq.s32.totalorder %s17, 0
    %p154 = por %p152, %p153
    %p155 = scmp.le.s32.totalorder 1, %s11
    %p156 = scmp.lt.s32.totalorder %s11, 3
    %p157 = pnand %p155, %p156
    %p158 = pneg %p157
    // Predicated region
    $region9: #{disc_block_forward.1} parent=5 // pred_check
      _
    $region10: #{disc_block_forward.1} parent=5 // pred_check_branch
      %160 = sbr.rel (%p157) target = $region12
    $region11: #{disc_block_forward.1} parent=5 // pred_region
      %s161 = ssub.s32 %s11, 1
      // Predicated region
      $region13: #{disc_block_forward.1} parent=11 // pred_check
        %p162 = pneg %p58
      $region14: #{disc_block_forward.1} parent=11 // pred_check_branch
        %164 = sbr.rel (%p162) target = $region16
      $region15: #{disc_block_forward.1} parent=11 // pred_region
        _
      $region16: #{disc_block_forward.1} parent=11 // pred_fallthru
        _
      // Predicated region
      $region17: #{disc_block_forward.1} parent=11 // pred_check
        %p165 = pneg %p79
      $region18: #{disc_block_forward.1} parent=11 // pred_check_branch
        %167 = sbr.rel (%p165) target = $region20
      $region19: #{disc_block_forward.1} parent=11 // pred_region
        _
      $region20: #{disc_block_forward.1} parent=11 // pred_fallthru
        _
      // Predicated region
      $region21: #{disc_block_forward.1} parent=11 // pred_check
        %p168 = pneg %p100
      $region22: #{disc_block_forward.1} parent=11 // pred_check_branch
        %170 = sbr.rel (%p168) target = $region24
      $region23: #{disc_block_forward.1} parent=11 // pred_region
        _
      $region24: #{disc_block_forward.1} parent=11 // pred_fallthru
        _
      // Predicated region
      $region25: #{disc_block_forward.1} parent=11 // pred_check
        %p171 = pneg %p121
      $region26: #{disc_block_forward.1} parent=11 // pred_check_branch
        %173 = sbr.rel (%p171) target = $region28
      $region27: #{disc_block_forward.1} parent=11 // pred_region
        _
      $region28: #{disc_block_forward.1} parent=11 // pred_fallthru
        _
    $region12: #{disc_block_forward.1} parent=5 // pred_fallthru
      _
    %p174 = scmp.lt.s32.totalorder %s11, 2
    // Predicated region
    $region29: #{disc_block_forward.1} parent=5 // pred_check
      %p175 = pneg %p174
    $region30: #{disc_block_forward.1} parent=5 // pred_check_branch
      %177 = sbr.rel (%p175) target = $region32
    $region31: #{disc_block_forward.1} parent=5 // pred_region
      // Predicated region
      $region33: #{disc_block_forward.1} parent=31 // pred_check
        %p178 = pneg %p31
      $region34: #{disc_block_forward.1} parent=31 // pred_check_branch
        %180 = sbr.rel (%p178) target = $region36
      $region35: #{disc_block_forward.1} parent=31 // pred_region
        %p181 = scmp.lt.s32.totalorder %s11, 1
        %s182 = scalar_select %p181, %s11, 1
        %s183 = smul.addr %s182, 32
        %s184 = smul.addr %s183, 4
        %s185 = scalar_lea.vmem %s0, %s184
      $region36: #{disc_block_forward.1} parent=31 // pred_fallthru
        _
    $region32: #{disc_block_forward.1} parent=5 // pred_fallthru
      _
    %p186 = scmp.le.s32.totalorder 1, %s11
    %p187 = scmp.lt.s32.totalorder %s11, 3
    %p188 = pnand %p186, %p187
    %p189 = pneg %p188
    // Predicated region
    $region37: #{disc_block_forward.1} parent=5 // pred_check
      _
    $region38: #{disc_block_forward.1} parent=5 // pred_check_branch
      %191 = sbr.rel (%p188) target = $region40
    $region39: #{disc_block_forward.1} parent=5 // pred_region
      %s192 = ssub.s32 %s11, 1
      %p193 = scmp.lt.s32.totalorder %s16, 1
      %s194 = scalar_select %p193, %s16, 1
      %s195 = smul.addr %s194, 32
      %s196 = smul.addr %s195, 4
      %s197 = scalar_lea.vmem %s0, %s196
      %p198 = pneg %p37
      %p199 = pneg %p34
      %p200 = pneg %p58
      %p201 = pneg %p55
      %p202 = pneg %p79
      %p203 = pneg %p76
      %p204 = pneg %p100
      %p205 = pneg %p97
      %p206 = pneg %p121
      %p207 = pneg %p118
      %p208 = pneg %p147
      %p209 = pneg %p144
      %p210 = scmp.lt.s32.totalorder %s16, 1
      %s211 = scalar_select %p210, %s16, 1
      %s212 = smul.addr %s211, 8
      %s213 = smul.addr %s212, 4
      %s214 = scalar_lea.vmem %s5, %s213
      %p215 = scmp.lt.s32.totalorder %s16, 1
      %s216 = scalar_select %p215, %s16, 1
      %s217 = smul.addr %s216, 32
      %s218 = smul.addr %s217, 4
      %s219 = scalar_lea.vmem %s0, %s218
      %p220 = scmp.lt.s32.totalorder %s16, 1
      %s221 = scalar_select %p220, %s16, 1
      %s222 = smul.addr %s221, 8
      %s223 = smul.addr %s222, 4
      %s224 = scalar_lea.vmem %s5, %s223
      %226 = vst [vmem:[#allocation2] sm:$0xff] 0
      %vm227 = vcmask 1040384
      %vm228 = vsmask.f32 256
      %vm229 = vmand %vm227, %vm228
      %vm230 = vcmask 1044484
      %vm231 = vsmask.f32 4352
      %vm232 = vmand %vm230, %vm231
      %vm233 = vmor %vm232, %vm229
      %v234 = vld [vmem:[#allocation2 + $0x8] sm:$0x11]
      %v235 = vsel %vm233, 0, %v234
      %236 = vst [vmem:[#allocation2 + $0x8] sm:$0x11] %v235
      %s237 = scalar_lea.vmem [#allocation2], 272
      %238 = vst [vmem:[%s237] sm:$0xff] 0
      %v239 = vld [vmem:[%s237 + $0x8] sm:$0x11]
      %v240 = vsel %vm233, 0, %v239
      %241 = vst [vmem:[%s237 + $0x8] sm:$0x11] %v240
      %v242 = vld [vmem:[#allocation2] sm:$0x1]
      %v243 = vsel %vm229, 0, %v242
      %244 = vst [vmem:[#allocation2] sm:$0x1] %v243
      %v245 = vld [vmem:[#allocation2 + $0x10] sm:$0x1]
      %v246 = vsel %vm229, 0, %v245
      %247 = vst [vmem:[#allocation2 + $0x10] sm:$0x1] %v246
      %v248 = vld [vmem:[#allocation2 + $0x20] sm:$0x1]
      %v249 = vsel %vm229, 0, %v248
      %250 = vst [vmem:[#allocation2 + $0x20] sm:$0x1] %v249
      %v251 = vld [vmem:[#allocation2 + $0x30] sm:$0x1]
      %v252 = vsel %vm229, 0, %v251
      %253 = vst [vmem:[#allocation2 + $0x30] sm:$0x1] %v252
      %v254 = vld [vmem:[#allocation2 + $0x40] sm:$0x1]
      %v255 = vsel %vm229, 0, %v254
      %256 = vst [vmem:[#allocation2 + $0x40] sm:$0x1] %v255
      %v257 = vld [vmem:[#allocation2 + $0x50] sm:$0x1]
      %v258 = vsel %vm229, 0, %v257
      %259 = vst [vmem:[#allocation2 + $0x50] sm:$0x1] %v258
      %v260 = vld [vmem:[#allocation2 + $0x60] sm:$0x1]
      %v261 = vsel %vm229, 0, %v260
      %262 = vst [vmem:[#allocation2 + $0x60] sm:$0x1] %v261
      %v263 = vld [vmem:[#allocation2 + $0x70] sm:$0x1]
      %v264 = vsel %vm229, 0, %v263
      %265 = vst [vmem:[#allocation2 + $0x70] sm:$0x1] %v264
      %v266 = vld [vmem:[#allocation2 + $0x80] sm:$0x1]
      %v267 = vsel %vm229, 0, %v266
      %268 = vst [vmem:[#allocation2 + $0x80] sm:$0x1] %v267
      %v269 = vld [vmem:[#allocation2 + $0x90] sm:$0x1]
      %v270 = vsel %vm229, 0, %v269
      %271 = vst [vmem:[#allocation2 + $0x90] sm:$0x1] %v270
      %v272 = vld [vmem:[#allocation2 + $0xa0] sm:$0x1]
      %v273 = vsel %vm229, 0, %v272
      %274 = vst [vmem:[#allocation2 + $0xa0] sm:$0x1] %v273
      %v275 = vld [vmem:[#allocation2 + $0xb0] sm:$0x1]
      %v276 = vsel %vm229, 0, %v275
      %277 = vst [vmem:[#allocation2 + $0xb0] sm:$0x1] %v276
      %v278 = vld [vmem:[#allocation2 + $0xc0] sm:$0x1]
      %v279 = vsel %vm229, 0, %v278
      %280 = vst [vmem:[#allocation2 + $0xc0] sm:$0x1] %v279
      %v281 = vld [vmem:[#allocation2 + $0xd0] sm:$0x1]
      %v282 = vsel %vm229, 0, %v281
      %283 = vst [vmem:[#allocation2 + $0xd0] sm:$0x1] %v282
      %v284 = vld [vmem:[#allocation2 + $0xe0] sm:$0x1]
      %v285 = vsel %vm229, 0, %v284
      %286 = vst [vmem:[#allocation2 + $0xe0] sm:$0x1] %v285
      %v287 = vld [vmem:[#allocation2 + $0xf0] sm:$0x1]
      %v288 = vsel %vm229, 0, %v287
      %289 = vst [vmem:[#allocation2 + $0xf0] sm:$0x1] %v288
      %v290 = vld [vmem:[#allocation2 + $0x100] sm:$0x1]
      %v291 = vsel %vm229, 0, %v290
      %292 = vst [vmem:[#allocation2 + $0x100] sm:$0x1] %v291
      %v293 = vld [vmem:[#allocation2 + $0x110] sm:$0x1]
      %v294 = vsel %vm229, 0, %v293
      %295 = vst [vmem:[#allocation2 + $0x110] sm:$0x1] %v294
      %v296 = vld [vmem:[#allocation2 + $0xc] sm:$0x1]
      %v297 = vsel %vm229, 0, %v296
      %298 = vst [vmem:[#allocation2 + $0xc] sm:$0x1] %v297
      %v299 = vld [vmem:[#allocation2 + $0x1c] sm:$0x1]
      %v300 = vsel %vm229, 0, %v299
      %301 = vst [vmem:[#allocation2 + $0x1c] sm:$0x1] %v300
      %v302 = vld [vmem:[#allocation2 + $0x2c] sm:$0x1]
      %v303 = vsel %vm229, 0, %v302
      %304 = vst [vmem:[#allocation2 + $0x2c] sm:$0x1] %v303
      %v305 = vld [vmem:[#allocation2 + $0x3c] sm:$0x1]
      %v306 = vsel %vm229, 0, %v305
      %307 = vst [vmem:[#allocation2 + $0x3c] sm:$0x1] %v306
      %v308 = vld [vmem:[#allocation2 + $0x4c] sm:$0x1]
      %v309 = vsel %vm229, 0, %v308
      %310 = vst [vmem:[#allocation2 + $0x4c] sm:$0x1] %v309
      %v311 = vld [vmem:[#allocation2 + $0x5c] sm:$0x1]
      %v312 = vsel %vm229, 0, %v311
      %313 = vst [vmem:[#allocation2 + $0x5c] sm:$0x1] %v312
      %v314 = vld [vmem:[#allocation2 + $0x6c] sm:$0x1]
      %v315 = vsel %vm229, 0, %v314
      %316 = vst [vmem:[#allocation2 + $0x6c] sm:$0x1] %v315
      %v317 = vld [vmem:[#allocation2 + $0x7c] sm:$0x1]
      %v318 = vsel %vm229, 0, %v317
      %319 = vst [vmem:[#allocation2 + $0x7c] sm:$0x1] %v318
      %v320 = vld [vmem:[#allocation2 + $0x8c] sm:$0x1]
      %v321 = vsel %vm229, 0, %v320
      %322 = vst [vmem:[#allocation2 + $0x8c] sm:$0x1] %v321
      %v323 = vld [vmem:[#allocation2 + $0x9c] sm:$0x1]
      %v324 = vsel %vm229, 0, %v323
      %325 = vst [vmem:[#allocation2 + $0x9c] sm:$0x1] %v324
      %v326 = vld [vmem:[#allocation2 + $0xac] sm:$0x1]
      %v327 = vsel %vm229, 0, %v326
      %328 = vst [vmem:[#allocation2 + $0xac] sm:$0x1] %v327
      %v329 = vld [vmem:[#allocation2 + $0xbc] sm:$0x1]
      %v330 = vsel %vm229, 0, %v329
      %331 = vst [vmem:[#allocation2 + $0xbc] sm:$0x1] %v330
      %v332 = vld [vmem:[#allocation2 + $0xcc] sm:$0x1]
      %v333 = vsel %vm229, 0, %v332
      %334 = vst [vmem:[#allocation2 + $0xcc] sm:$0x1] %v333
      %v335 = vld [vmem:[#allocation2 + $0xdc] sm:$0x1]
      %v336 = vsel %vm229, 0, %v335
      %337 = vst [vmem:[#allocation2 + $0xdc] sm:$0x1] %v336
      %v338 = vld [vmem:[#allocation2 + $0xec] sm:$0x1]
      %v339 = vsel %vm229, 0, %v338
      %340 = vst [vmem:[#allocation2 + $0xec] sm:$0x1] %v339
      %v341 = vld [vmem:[#allocation2 + $0xfc] sm:$0x1]
      %v342 = vsel %vm229, 0, %v341
      %343 = vst [vmem:[#allocation2 + $0xfc] sm:$0x1] %v342
      %v344 = vld [vmem:[#allocation2 + $0x10c] sm:$0x1]
      %v345 = vsel %vm229, 0, %v344
      %346 = vst [vmem:[#allocation2 + $0x10c] sm:$0x1] %v345
      %v347 = vld [vmem:[#allocation2 + $0x11c] sm:$0x1]
      %v348 = vsel %vm229, 0, %v347
      %349 = vst [vmem:[#allocation2 + $0x11c] sm:$0x1] %v348
      %v350 = vld [vmem:[%s219] sm:$0xf]
      %v351 = vld [vmem:[%s219 + $0x4] sm:$0xf]
      %v352 = vld [vmem:[%s219 + $0x8] sm:$0xf]
      %v353 = vld [vmem:[%s219 + $0xc] sm:$0xf]
      %v354 = vld [vmem:[%s219 + $0x10] sm:$0xf]
      %v355 = vld [vmem:[%s219 + $0x14] sm:$0xf]
      %v356 = vld [vmem:[%s219 + $0x18] sm:$0xf]
      %v357 = vld [vmem:[%s219 + $0x1c] sm:$0xf]
      %v358 = vld [vmem:[%s219 + $0x20] sm:$0xf]
      %v359 = vld [vmem:[%s219 + $0x24] sm:$0xf]
      %v360 = vld [vmem:[%s219 + $0x28] sm:$0xf]
      %v361 = vld [vmem:[%s219 + $0x2c] sm:$0xf]
      %v362 = vld [vmem:[%s219 + $0x30] sm:$0xf]
      %v363 = vld [vmem:[%s219 + $0x34] sm:$0xf]
      %v364 = vld [vmem:[%s219 + $0x38] sm:$0xf]
      %v365 = vld [vmem:[%s219 + $0x3c] sm:$0xf]
      %v366 = vld [vmem:[%s219 + $0x40] sm:$0xf]
      %v367 = vld [vmem:[%s219 + $0x44] sm:$0xf]
      %v368 = vld [vmem:[%s219 + $0x48] sm:$0xf]
      %v369 = vld [vmem:[%s219 + $0x4c] sm:$0xf]
      %v370 = vld [vmem:[%s219 + $0x50] sm:$0xf]
      %v371 = vld [vmem:[%s219 + $0x54] sm:$0xf]
      %v372 = vld [vmem:[%s219 + $0x58] sm:$0xf]
      %v373 = vld [vmem:[%s219 + $0x5c] sm:$0xf]
      %v374 = vld [vmem:[%s219 + $0x60] sm:$0xf]
      %v375 = vld [vmem:[%s219 + $0x64] sm:$0xf]
      %v376 = vld [vmem:[%s219 + $0x68] sm:$0xf]
      %v377 = vld [vmem:[%s219 + $0x6c] sm:$0xf]
      %v378 = vld [vmem:[%s219 + $0x70] sm:$0xf]
      %v379 = vld [vmem:[%s219 + $0x74] sm:$0xf]
      %v380 = vld [vmem:[%s219 + $0x78] sm:$0xf]
      %v381 = vld [vmem:[%s219 + $0x7c] sm:$0xf]
      %v382 = vld [vmem:[%s1] sm:$0xf]
      %v383 = vld [vmem:[%s1 + $0x4] sm:$0xf]
      %v384 = vld [vmem:[%s1 + $0x8] sm:$0xf]
      %v385 = vld [vmem:[%s1 + $0xc] sm:$0xf]
      %v386 = vld [vmem:[%s1 + $0x10] sm:$0xf]
      %v387 = vld [vmem:[%s1 + $0x14] sm:$0xf]
      %v388 = vld [vmem:[%s1 + $0x18] sm:$0xf]
      %v389 = vld [vmem:[%s1 + $0x1c] sm:$0xf]
      %v390 = vld [vmem:[%s1 + $0x20] sm:$0xf]
      %v391 = vld [vmem:[%s3] sm:$0x1]
      %v393 = vlaneseq
      %v394 = vshrl.u32 %v393, 7
      %v395 = vsub.s32 0, %v394
      %v396 = vrot.slane %v391, %v395
      %v430 = vunpack.c.l.b16 %v350
      %v431 = vunpack.c.l.b16 %v351
      %v432 = vunpack.c.l.b16 %v352
      %v433 = vunpack.c.l.b16 %v353
      %v434 = vunpack.c.l.b16 %v354
      %v435 = vunpack.c.l.b16 %v355
      %v436 = vunpack.c.l.b16 %v356
      %v437 = vunpack.c.l.b16 %v357
      %v438 = vunpack.c.l.b16 %v358
      %v439 = vunpack.c.l.b16 %v359
      %v440 = vunpack.c.l.b16 %v360
      %v441 = vunpack.c.l.b16 %v361
      %v442 = vunpack.c.l.b16 %v362
      %v443 = vunpack.c.l.b16 %v363
      %v444 = vunpack.c.l.b16 %v364
      %v445 = vunpack.c.l.b16 %v365
      %v446 = vunpack.c.l.b16 %v366
      %v447 = vunpack.c.l.b16 %v367
      %v448 = vunpack.c.l.b16 %v368
      %v449 = vunpack.c.l.b16 %v369
      %v450 = vunpack.c.l.b16 %v370
      %v451 = vunpack.c.l.b16 %v371
      %v452 = vunpack.c.l.b16 %v372
      %v453 = vunpack.c.l.b16 %v373
      %v454 = vunpack.c.l.b16 %v374
      %v455 = vunpack.c.l.b16 %v375
      %v456 = vunpack.c.l.b16 %v376
      %v457 = vunpack.c.l.b16 %v377
      %v458 = vunpack.c.l.b16 %v378
      %v459 = vunpack.c.l.b16 %v379
      %v460 = vunpack.c.l.b16 %v380
      %v461 = vunpack.c.l.b16 %v381
      %v462 = vpack.c.b16 %v431, %v430
      %v463 = vpack.c.b16 %v433, %v432
      %v464 = vpack.c.b16 %v435, %v434
      %v465 = vpack.c.b16 %v437, %v436
      %v466 = vpack.c.b16 %v439, %v438
      %v467 = vpack.c.b16 %v441, %v440
      %v468 = vpack.c.b16 %v443, %v442
      %v469 = vpack.c.b16 %v445, %v444
      %v470 = vpack.c.b16 %v447, %v446
      %v471 = vpack.c.b16 %v449, %v448
      %v472 = vpack.c.b16 %v451, %v450
      %v473 = vpack.c.b16 %v453, %v452
      %v474 = vpack.c.b16 %v455, %v454
      %v475 = vpack.c.b16 %v457, %v456
      %v476 = vpack.c.b16 %v459, %v458
      %v477 = vpack.c.b16 %v461, %v460
      %v487 = vunpack.c.l.b16 %v382
      %v488 = vunpack.c.l.b16 %v383
      %v489 = vunpack.c.l.b16 %v384
      %v490 = vunpack.c.l.b16 %v385
      %v491 = vunpack.c.l.b16 %v386
      %v492 = vunpack.c.l.b16 %v387
      %v493 = vunpack.c.l.b16 %v388
      %v494 = vunpack.c.l.b16 %v389
      %v495 = vunpack.c.l.b16 %v390
      %v496 = vpack.c.b16 %v488, %v487
      %v497 = vpack.c.b16 %v490, %v489
      %v498 = vpack.c.b16 %v492, %v491
      %v499 = vpack.c.b16 %v494, %v493
      %v500 = vpack.c.b16 %v495, %v495
      %vm505 = vcmask 588800
      %v507 = vsel %vm505, %v462, 0
      %v510 = vsel %vm505, %v463, 0
      %v513 = vsel %vm505, %v464, 0
      %v516 = vsel %vm505, %v465, 0
      %v519 = vsel %vm505, %v466, 0
      %v522 = vsel %vm505, %v467, 0
      %v525 = vsel %vm505, %v468, 0
      %v528 = vsel %vm505, %v469, 0
      %v531 = vsel %vm505, %v470, 0
      %v534 = vsel %vm505, %v471, 0
      %v537 = vsel %vm505, %v472, 0
      %v540 = vsel %vm505, %v473, 0
      %v543 = vsel %vm505, %v474, 0
      %v546 = vsel %vm505, %v475, 0
      %v549 = vsel %vm505, %v476, 0
      %v552 = vsel %vm505, %v477, 0
      %vm554 = vcmask 1043456
      %v556 = vsel %vm554, %v500, 0
      %558 = vmatprep.subr.bf16.mxu0 0
      %559 = vmatpush1.bf16.msra.mxu0 %v496
      %560 = vmatprep.subr.bf16.mxu0 0
      %561 = vmatpush1.bf16.msra.mxu0 %v497
      %562 = vmatprep.subr.bf16.mxu0 0
      %563 = vmatpush1.bf16.msra.mxu0 %v498
      %564 = vmatprep.subr.bf16.mxu0 0
      %565 = vmatpush1.bf16.msra.mxu0 %v499
      %566 = vmatprep.subr.bf16.mxu0 0
      %567 = vmatpush1.bf16.msra.mxu0 %v556
      %568 = vmatprep.subr.bf16.mxu0 0
      %569 = vmatpush1.bf16.msra.mxu0 0
      %570 = vmatprep.subr.bf16.mxu0 0
      %571 = vmatpush1.bf16.msra.mxu0 0
      %572 = vmatprep.subr.bf16.mxu0 0
      %573 = vmatpush1.bf16.msra.mxu0 0
      %574 = vmatprep.subr.bf16.mxu0 0
      %575 = vmatpush1.bf16.msra.mxu0 0
      %576 = vmatprep.subr.bf16.mxu0 0
      %577 = vmatpush1.bf16.msra.mxu0 0
      %578 = vmatprep.subr.bf16.mxu0 0
      %579 = vmatpush1.bf16.msra.mxu0 0
      %580 = vmatprep.subr.bf16.mxu0 0
      %581 = vmatpush1.bf16.msra.mxu0 0
      %582 = vmatprep.subr.bf16.mxu0 0
      %583 = vmatpush1.bf16.msra.mxu0 0
      %584 = vmatprep.subr.bf16.mxu0 0
      %585 = vmatpush1.bf16.msra.mxu0 0
      %586 = vmatprep.subr.bf16.mxu0 0
      %587 = vmatpush1.bf16.msra.mxu0 0
      %588 = vmatprep.subr.bf16.mxu0 0
      %589 = vmatpush1.bf16.msra.mxu0 0
      %590 = vmatprep.mubr.bf16.mxu0 0
      %591 = vmatmul.mubr.bf16.gmra.mrb[0].mxu0 %v507
      %v592 = vpop.f32.mrb[0].mxu0
      %v593 = vadd.f32 %v396, %v592
      %v594 = vpop.f32.mrb[0].mxu0
      %v595 = vpop.f32.mrb[0].mxu0
      %v596 = vadd.f32 %v396, %v595
      %v597 = vpop.f32.mrb[0].mxu0
      %598 = vmatprep.mubr.bf16.mxu0 0
      %599 = vmatmul.mubr.bf16.gmra.mrb[0].mxu0 %v510
      %v600 = vpop.f32.mrb[0].mxu0
      %v601 = vadd.f32 %v396, %v600
      %v602 = vpop.f32.mrb[0].mxu0
      %v603 = vpop.f32.mrb[0].mxu0
      %v604 = vadd.f32 %v396, %v603
      %v605 = vpop.f32.mrb[0].mxu0
      %606 = vmatprep.mubr.bf16.mxu0 0
      %607 = vmatmul.mubr.bf16.gmra.mrb[0].mxu0 %v513
      %v608 = vpop.f32.mrb[0].mxu0
      %v609 = vadd.f32 %v396, %v608
      %v610 = vpop.f32.mrb[0].mxu0
      %v611 = vpop.f32.mrb[0].mxu0
      %v612 = vadd.f32 %v396, %v611
      %v613 = vpop.f32.mrb[0].mxu0
      %614 = vmatprep.mubr.bf16.mxu0 0
      %615 = vmatmul.mubr.bf16.gmra.mrb[0].mxu0 %v516
      %v616 = vpop.f32.mrb[0].mxu0
      %v617 = vadd.f32 %v396, %v616
      %v618 = vpop.f32.mrb[0].mxu0
      %v619 = vpop.f32.mrb[0].mxu0
      %v620 = vadd.f32 %v396, %v619
      %v621 = vpop.f32.mrb[0].mxu0
      %622 = vmatprep.mubr.bf16.mxu0 0
      %623 = vmatmul.mubr.bf16.gmra.mrb[0].mxu0 %v519
      %v624 = vpop.f32.mrb[0].mxu0
      %v625 = vadd.f32 %v396, %v624
      %v626 = vpop.f32.mrb[0].mxu0
      %v627 = vpop.f32.mrb[0].mxu0
      %v628 = vadd.f32 %v396, %v627
      %v629 = vpop.f32.mrb[0].mxu0
      %630 = vmatprep.mubr.bf16.mxu0 0
      %631 = vmatmul.mubr.bf16.gmra.mrb[0].mxu0 %v522
      %v632 = vpop.f32.mrb[0].mxu0
      %v633 = vadd.f32 %v396, %v632
      %v634 = vpop.f32.mrb[0].mxu0
      %v635 = vpop.f32.mrb[0].mxu0
      %v636 = vadd.f32 %v396, %v635
      %v637 = vpop.f32.mrb[0].mxu0
      %638 = vmatprep.mubr.bf16.mxu0 0
      %639 = vmatmul.mubr.bf16.gmra.mrb[0].mxu0 %v525
      %v640 = vpop.f32.mrb[0].mxu0
      %v641 = vadd.f32 %v396, %v640
      %v642 = vpop.f32.mrb[0].mxu0
      %v643 = vpop.f32.mrb[0].mxu0
      %v644 = vadd.f32 %v396, %v643
      %v645 = vpop.f32.mrb[0].mxu0
      %646 = vmatprep.mubr.bf16.mxu0 0
      %647 = vmatmul.mubr.bf16.gmra.mrb[0].mxu0 %v528
      %v648 = vpop.f32.mrb[0].mxu0
      %v649 = vadd.f32 %v396, %v648
      %v650 = vpop.f32.mrb[0].mxu0
      %v651 = vpop.f32.mrb[0].mxu0
      %v652 = vadd.f32 %v396, %v651
      %v653 = vpop.f32.mrb[0].mxu0
      %654 = vmatprep.mubr.bf16.mxu0 0
      %655 = vmatmul.mubr.bf16.gmra.mrb[0].mxu0 %v531
      %v656 = vpop.f32.mrb[0].mxu0
      %v657 = vadd.f32 %v396, %v656
      %v658 = vpop.f32.mrb[0].mxu0
      %v659 = vpop.f32.mrb[0].mxu0
      %v660 = vadd.f32 %v396, %v659
      %v661 = vpop.f32.mrb[0].mxu0
      %662 = vmatprep.mubr.bf16.mxu0 0
      %663 = vmatmul.mubr.bf16.gmra.mrb[0].mxu0 %v534
      %v664 = vpop.f32.mrb[0].mxu0
      %v665 = vadd.f32 %v396, %v664
      %v666 = vpop.f32.mrb[0].mxu0
      %v667 = vpop.f32.mrb[0].mxu0
      %v668 = vadd.f32 %v396, %v667
      %v669 = vpop.f32.mrb[0].mxu0
      %670 = vmatprep.mubr.bf16.mxu0 0
      %671 = vmatmul.mubr.bf16.gmra.mrb[0].mxu0 %v537
      %v672 = vpop.f32.mrb[0].mxu0
      %v673 = vadd.f32 %v396, %v672
      %v674 = vpop.f32.mrb[0].mxu0
      %v675 = vpop.f32.mrb[0].mxu0
      %v676 = vadd.f32 %v396, %v675
      %v677 = vpop.f32.mrb[0].mxu0
      %678 = vmatprep.mubr.bf16.mxu0 0
      %679 = vmatmul.mubr.bf16.gmra.mrb[0].mxu0 %v540
      %v680 = vpop.f32.mrb[0].mxu0
      %v681 = vadd.f32 %v396, %v680
      %v682 = vpop.f32.mrb[0].mxu0
      %v683 = vpop.f32.mrb[0].mxu0
      %v684 = vadd.f32 %v396, %v683
      %v685 = vpop.f32.mrb[0].mxu0
      %686 = vmatprep.mubr.bf16.mxu0 0
      %687 = vmatmul.mubr.bf16.gmra.mrb[0].mxu0 %v543
      %v688 = vpop.f32.mrb[0].mxu0
      %v689 = vadd.f32 %v396, %v688
      %v690 = vpop.f32.mrb[0].mxu0
      %v691 = vpop.f32.mrb[0].mxu0
      %v692 = vadd.f32 %v396, %v691
      %v693 = vpop.f32.mrb[0].mxu0
      %694 = vmatprep.mubr.bf16.mxu0 0
      %695 = vmatmul.mubr.bf16.gmra.mrb[0].mxu0 %v546
      %v696 = vpop.f32.mrb[0].mxu0
      %v697 = vadd.f32 %v396, %v696
      %v698 = vpop.f32.mrb[0].mxu0
      %v699 = vpop.f32.mrb[0].mxu0
      %v700 = vadd.f32 %v396, %v699
      %v701 = vpop.f32.mrb[0].mxu0
      %702 = vmatprep.mubr.bf16.mxu0 0
      %703 = vmatmul.mubr.bf16.gmra.mrb[0].mxu0 %v549
      %v704 = vpop.f32.mrb[0].mxu0
      %v705 = vadd.f32 %v396, %v704
      %v706 = vpop.f32.mrb[0].mxu0
      %v707 = vpop.f32.mrb[0].mxu0
      %v708 = vadd.f32 %v396, %v707
      %v709 = vpop.f32.mrb[0].mxu0
      %710 = vmatprep.mubr.bf16.mxu0 0
      %711 = vmatmul.mubr.bf16.gmra.mrb[0].mxu0 %v552
      %v712 = vpop.f32.mrb[0].mxu0
      %v713 = vadd.f32 %v396, %v712
      %v714 = vpop.f32.mrb[0].mxu0
      %v715 = vpop.f32.mrb[0].mxu0
      %v716 = vadd.f32 %v396, %v715
      %v717 = vpop.f32.mrb[0].mxu0
      %718 = vdwg.mxu0
      %v719 = vmul.f32 %v593, 0.2
      %v720 = vmul.f32 %v596, 0.2
      %v721 = vmul.f32 %v601, 0.2
      %v722 = vmul.f32 %v604, 0.2
      %v723 = vmul.f32 %v609, 0.2
      %v724 = vmul.f32 %v612, 0.2
      %v725 = vmul.f32 %v617, 0.2
      %v726 = vmul.f32 %v620, 0.2
      %v727 = vmul.f32 %v625, 0.2
      %v728 = vmul.f32 %v628, 0.2
      %v729 = vmul.f32 %v633, 0.2
      %v730 = vmul.f32 %v636, 0.2
      %v731 = vmul.f32 %v641, 0.2
      %v732 = vmul.f32 %v644, 0.2
      %v733 = vmul.f32 %v649, 0.2
      %v734 = vmul.f32 %v652, 0.2
      %v735 = vmul.f32 %v657, 0.2
      %v736 = vmul.f32 %v660, 0.2
      %v737 = vmul.f32 %v665, 0.2
      %v738 = vmul.f32 %v668, 0.2
      %v739 = vmul.f32 %v673, 0.2
      %v740 = vmul.f32 %v676, 0.2
      %v741 = vmul.f32 %v681, 0.2
      %v742 = vmul.f32 %v684, 0.2
      %v743 = vmul.f32 %v689, 0.2
      %v744 = vmul.f32 %v692, 0.2
      %v745 = vmul.f32 %v697, 0.2
      %v746 = vmul.f32 %v700, 0.2
      %v747 = vmul.f32 %v705, 0.2
      %v748 = vmul.f32 %v708, 0.2
      %v749 = vmul.f32 %v713, 0.2
      %v750 = vmul.f32 %v716, 0.2
      %v751 = vmax.f32 %v593, %v719
      %v752 = vmax.f32 %v596, %v720
      %v753 = vmax.f32 %v601, %v721
      %v754 = vmax.f32 %v604, %v722
      %v755 = vmax.f32 %v609, %v723
      %v756 = vmax.f32 %v612, %v724
      %v757 = vmax.f32 %v617, %v725
      %v758 = vmax.f32 %v620, %v726
      %v759 = vmax.f32 %v625, %v727
      %v760 = vmax.f32 %v628, %v728
      %v761 = vmax.f32 %v633, %v729
      %v762 = vmax.f32 %v636, %v730
      %v763 = vmax.f32 %v641, %v731
      %v764 = vmax.f32 %v644, %v732
      %v765 = vmax.f32 %v649, %v733
      %v766 = vmax.f32 %v652, %v734
      %v767 = vmax.f32 %v657, %v735
      %v768 = vmax.f32 %v660, %v736
      %v769 = vmax.f32 %v665, %v737
      %v770 = vmax.f32 %v668, %v738
      %v771 = vmax.f32 %v673, %v739
      %v772 = vmax.f32 %v676, %v740
      %v773 = vmax.f32 %v681, %v741
      %v774 = vmax.f32 %v684, %v742
      %v775 = vmax.f32 %v689, %v743
      %v776 = vmax.f32 %v692, %v744
      %v777 = vmax.f32 %v697, %v745
      %v778 = vmax.f32 %v700, %v746
      %v779 = vmax.f32 %v705, %v747
      %v780 = vmax.f32 %v708, %v748
      %v781 = vmax.f32 %v713, %v749
      %v782 = vmax.f32 %v716, %v750
      %v783 = vpack.c.bf16 %v752, %v751
      %v784 = vpack.c.bf16 %v754, %v753
      %v785 = vpack.c.bf16 %v756, %v755
      %v786 = vpack.c.bf16 %v758, %v757
      %v787 = vpack.c.bf16 %v760, %v759
      %v788 = vpack.c.bf16 %v762, %v761
      %v789 = vpack.c.bf16 %v764, %v763
      %v790 = vpack.c.bf16 %v766, %v765
      %v791 = vpack.c.bf16 %v768, %v767
      %v792 = vpack.c.bf16 %v770, %v769
      %v793 = vpack.c.bf16 %v772, %v771
      %v794 = vpack.c.bf16 %v774, %v773
      %v795 = vpack.c.bf16 %v776, %v775
      %v796 = vpack.c.bf16 %v778, %v777
      %v797 = vpack.c.bf16 %v780, %v779
      %v798 = vpack.c.bf16 %v782, %v781
      %v803 = vunpack.c.l.b16 %v783
      %v804 = vunpack.c.h.b16 %v783
      %v805 = vunpack.c.l.b16 %v784
      %v806 = vunpack.c.h.b16 %v784
      %v807 = vunpack.c.l.b16 %v785
      %v808 = vunpack.c.h.b16 %v785
      %v809 = vunpack.c.l.b16 %v786
      %v810 = vunpack.c.h.b16 %v786
      %v811 = vpack.c.b16 %v803, %v803
      %v812 = vpack.c.b16 %v804, %v804
      %v813 = vpack.c.b16 %v805, %v805
      %v814 = vpack.c.b16 %v806, %v806
      %v815 = vpack.c.b16 %v807, %v807
      %v816 = vpack.c.b16 %v808, %v808
      %v817 = vpack.c.b16 %v809, %v809
      %v818 = vpack.c.b16 %v810, %v810
      %s827 = scalar_lea.vmem [#allocation2], 144
      %828 = vst [vmem:[%s827 + $0x4] sm:$0xf] %v811
      %829 = vst [vmem:[%s827 + $0x14] sm:$0xf] %v812
      %830 = vst [vmem:[%s827 + $0x24] sm:$0xf] %v813
      %831 = vst [vmem:[%s827 + $0x34] sm:$0xf] %v814
      %832 = vst [vmem:[%s827 + $0x44] sm:$0xf] %v815
      %833 = vst [vmem:[%s827 + $0x54] sm:$0xf] %v816
      %834 = vst [vmem:[%s827 + $0x64] sm:$0xf] %v817
      %835 = vst [vmem:[%s827 + $0x74] sm:$0xf] %v818
      %v840 = vunpack.c.l.b16 %v787
      %v841 = vunpack.c.h.b16 %v787
      %v842 = vunpack.c.l.b16 %v788
      %v843 = vunpack.c.h.b16 %v788
      %v844 = vunpack.c.l.b16 %v789
      %v845 = vunpack.c.h.b16 %v789
      %v846 = vunpack.c.l.b16 %v790
      %v847 = vunpack.c.h.b16 %v790
      %v848 = vpack.c.b16 %v840, %v840
      %v849 = vpack.c.b16 %v841, %v841
      %v850 = vpack.c.b16 %v842, %v842
      %v851 = vpack.c.b16 %v843, %v843
      %v852 = vpack.c.b16 %v844, %v844
      %v853 = vpack.c.b16 %v845, %v845
      %v854 = vpack.c.b16 %v846, %v846
      %v855 = vpack.c.b16 %v847, %v847
      %v857 = vshrl.u32 %v848, 16
      %v859 = vrot.slane %v857, 7
      %v860 = vshll.u32 %v848, 16
      %v862 = vor.u32 %v859, %v860
      %v863 = vrot.slane %v859, 4
      %v865 = vshrl.u32 %v849, 16
      %v867 = vrot.slane %v865, 7
      %v868 = vshll.u32 %v849, 16
      %v870 = vor.u32 %v867, %v868
      %v871 = vrot.slane %v867, 4
      %v873 = vshrl.u32 %v850, 16
      %v875 = vrot.slane %v873, 7
      %v876 = vshll.u32 %v850, 16
      %v878 = vor.u32 %v875, %v876
      %v879 = vrot.slane %v875, 4
      %v881 = vshrl.u32 %v851, 16
      %v883 = vrot.slane %v881, 7
      %v884 = vshll.u32 %v851, 16
      %v886 = vor.u32 %v883, %v884
      %v887 = vrot.slane %v883, 4
      %v889 = vshrl.u32 %v852, 16
      %v891 = vrot.slane %v889, 7
      %v892 = vshll.u32 %v852, 16
      %v894 = vor.u32 %v891, %v892
      %v895 = vrot.slane %v891, 4
      %v897 = vshrl.u32 %v853, 16
      %v899 = vrot.slane %v897, 7
      %v900 = vshll.u32 %v853, 16
      %v902 = vor.u32 %v899, %v900
      %v903 = vrot.slane %v899, 4
      %v905 = vshrl.u32 %v854, 16
      %v907 = vrot.slane %v905, 7
      %v908 = vshll.u32 %v854, 16
      %v910 = vor.u32 %v907, %v908
      %v911 = vrot.slane %v907, 4
      %v913 = vshrl.u32 %v855, 16
      %v915 = vrot.slane %v913, 7
      %v916 = vshll.u32 %v855, 16
      %v918 = vor.u32 %v915, %v916
      %v919 = vrot.slane %v915, 4
      %vm936 = vcmask 1043456
      %vm937 = vsmask.f32 7938
      %vm938 = vmand %vm936, %vm937
      %v939 = vld [vmem:[%s827] sm:$0xf]
      %v940 = vsel %vm938, %v862, %v939
      %941 = vst [vmem:[%s827] sm:$0xf] %v940
      %v942 = vld [vmem:[%s827 + $0x8] sm:$0x1]
      %v943 = vsel %vm229, %v863, %v942
      %944 = vst [vmem:[%s827 + $0x8] sm:$0x1] %v943
      %v945 = vld [vmem:[%s827 + $0x10] sm:$0xf]
      %v946 = vsel %vm938, %v870, %v945
      %947 = vst [vmem:[%s827 + $0x10] sm:$0xf] %v946
      %v948 = vld [vmem:[%s827 + $0x18] sm:$0x1]
      %v949 = vsel %vm229, %v871, %v948
      %950 = vst [vmem:[%s827 + $0x18] sm:$0x1] %v949
      %v951 = vld [vmem:[%s827 + $0x20] sm:$0xf]
      %v952 = vsel %vm938, %v878, %v951
      %953 = vst [vmem:[%s827 + $0x20] sm:$0xf] %v952
      %v954 = vld [vmem:[%s827 + $0x28] sm:$0x1]
      %v955 = vsel %vm229, %v879, %v954
      %956 = vst [vmem:[%s827 + $0x28] sm:$0x1] %v955
      %v957 = vld [vmem:[%s827 + $0x30] sm:$0xf]
      %v958 = vsel %vm938, %v886, %v957
      %959 = vst [vmem:[%s827 + $0x30] sm:$0xf] %v958
      %v960 = vld [vmem:[%s827 + $0x38] sm:$0x1]
      %v961 = vsel %vm229, %v887, %v960
      %962 = vst [vmem:[%s827 + $0x38] sm:$0x1] %v961
      %v963 = vld [vmem:[%s827 + $0x40] sm:$0xf]
      %v964 = vsel %vm938, %v894, %v963
      %965 = vst [vmem:[%s827 + $0x40] sm:$0xf] %v964
      %v966 = vld [vmem:[%s827 + $0x48] sm:$0x1]
      %v967 = vsel %vm229, %v895, %v966
      %968 = vst [vmem:[%s827 + $0x48] sm:$0x1] %v967
      %v969 = vld [vmem:[%s827 + $0x50] sm:$0xf]
      %v970 = vsel %vm938, %v902, %v969
      %971 = vst [vmem:[%s827 + $0x50] sm:$0xf] %v970
      %v972 = vld [vmem:[%s827 + $0x58] sm:$0x1]
      %v973 = vsel %vm229, %v903, %v972
      %974 = vst [vmem:[%s827 + $0x58] sm:$0x1] %v973
      %v975 = vld [vmem:[%s827 + $0x60] sm:$0xf]
      %v976 = vsel %vm938, %v910, %v975
      %977 = vst [vmem:[%s827 + $0x60] sm:$0xf] %v976
      %v978 = vld [vmem:[%s827 + $0x68] sm:$0x1]
      %v979 = vsel %vm229, %v911, %v978
      %980 = vst [vmem:[%s827 + $0x68] sm:$0x1] %v979
      %v981 = vld [vmem:[%s827 + $0x70] sm:$0xf]
      %v982 = vsel %vm938, %v918, %v981
      %983 = vst [vmem:[%s827 + $0x70] sm:$0xf] %v982
      %v984 = vld [vmem:[%s827 + $0x78] sm:$0x1]
      %v985 = vsel %vm229, %v919, %v984
      %986 = vst [vmem:[%s827 + $0x78] sm:$0x1] %v985
      %v991 = vunpack.c.l.b16 %v791
      %v992 = vunpack.c.h.b16 %v791
      %v993 = vunpack.c.l.b16 %v792
      %v994 = vunpack.c.h.b16 %v792
      %v995 = vunpack.c.l.b16 %v793
      %v996 = vunpack.c.h.b16 %v793
      %v997 = vunpack.c.l.b16 %v794
      %v998 = vunpack.c.h.b16 %v794
      %v999 = vpack.c.b16 %v991, %v991
      %v1000 = vpack.c.b16 %v992, %v992
      %v1001 = vpack.c.b16 %v993, %v993
      %v1002 = vpack.c.b16 %v994, %v994
      %v1003 = vpack.c.b16 %v995, %v995
      %v1004 = vpack.c.b16 %v996, %v996
      %v1005 = vpack.c.b16 %v997, %v997
      %v1006 = vpack.c.b16 %v998, %v998
      %s1015 = scalar_lea.vmem [#allocation2], 16
      %1016 = vst [vmem:[%s1015 + $0x4] sm:$0xf] %v999
      %1017 = vst [vmem:[%s1015 + $0x14] sm:$0xf] %v1000
      %1018 = vst [vmem:[%s1015 + $0x24] sm:$0xf] %v1001
      %1019 = vst [vmem:[%s1015 + $0x34] sm:$0xf] %v1002
      %1020 = vst [vmem:[%s1015 + $0x44] sm:$0xf] %v1003
      %1021 = vst [vmem:[%s1015 + $0x54] sm:$0xf] %v1004
      %1022 = vst [vmem:[%s1015 + $0x64] sm:$0xf] %v1005
      %1023 = vst [vmem:[%s1015 + $0x74] sm:$0xf] %v1006
      %v1028 = vunpack.c.l.b16 %v795
      %v1029 = vunpack.c.h.b16 %v795
      %v1030 = vunpack.c.l.b16 %v796
      %v1031 = vunpack.c.h.b16 %v796
      %v1032 = vunpack.c.l.b16 %v797
      %v1033 = vunpack.c.h.b16 %v797
      %v1034 = vunpack.c.l.b16 %v798
      %v1035 = vunpack.c.h.b16 %v798
      %v1036 = vpack.c.b16 %v1028, %v1028
      %v1037 = vpack.c.b16 %v1029, %v1029
      %v1038 = vpack.c.b16 %v1030, %v1030
      %v1039 = vpack.c.b16 %v1031, %v1031
      %v1040 = vpack.c.b16 %v1032, %v1032
      %v1041 = vpack.c.b16 %v1033, %v1033
      %v1042 = vpack.c.b16 %v1034, %v1034
      %v1043 = vpack.c.b16 %v1035, %v1035
      %v1045 = vshrl.u32 %v1036, 16
      %v1047 = vrot.slane %v1045, 7
      %v1048 = vshll.u32 %v1036, 16
      %v1050 = vor.u32 %v1047, %v1048
      %v1051 = vrot.slane %v1047, 4
      %v1053 = vshrl.u32 %v1037, 16
      %v1055 = vrot.slane %v1053, 7
      %v1056 = vshll.u32 %v1037, 16
      %v1058 = vor.u32 %v1055, %v1056
      %v1059 = vrot.slane %v1055, 4
      %v1061 = vshrl.u32 %v1038, 16
      %v1063 = vrot.slane %v1061, 7
      %v1064 = vshll.u32 %v1038, 16
      %v1066 = vor.u32 %v1063, %v1064
      %v1067 = vrot.slane %v1063, 4
      %v1069 = vshrl.u32 %v1039, 16
      %v1071 = vrot.slane %v1069, 7
      %v1072 = vshll.u32 %v1039, 16
      %v1074 = vor.u32 %v1071, %v1072
      %v1075 = vrot.slane %v1071, 4
      %v1077 = vshrl.u32 %v1040, 16
      %v1079 = vrot.slane %v1077, 7
      %v1080 = vshll.u32 %v1040, 16
      %v1082 = vor.u32 %v1079, %v1080
      %v1083 = vrot.slane %v1079, 4
      %v1085 = vshrl.u32 %v1041, 16
      %v1087 = vrot.slane %v1085, 7
      %v1088 = vshll.u32 %v1041, 16
      %v1090 = vor.u32 %v1087, %v1088
      %v1091 = vrot.slane %v1087, 4
      %v1093 = vshrl.u32 %v1042, 16
      %v1095 = vrot.slane %v1093, 7
      %v1096 = vshll.u32 %v1042, 16
      %v1098 = vor.u32 %v1095, %v1096
      %v1099 = vrot.slane %v1095, 4
      %v1101 = vshrl.u32 %v1043, 16
      %v1103 = vrot.slane %v1101, 7
      %v1104 = vshll.u32 %v1043, 16
      %v1106 = vor.u32 %v1103, %v1104
      %v1107 = vrot.slane %v1103, 4
      %v1124 = vld [vmem:[%s1015] sm:$0xf]
      %v1125 = vsel %vm938, %v1050, %v1124
      %1126 = vst [vmem:[%s1015] sm:$0xf] %v1125
      %v1127 = vld [vmem:[%s1015 + $0x8] sm:$0x1]
      %v1128 = vsel %vm229, %v1051, %v1127
      %1129 = vst [vmem:[%s1015 + $0x8] sm:$0x1] %v1128
      %v1130 = vld [vmem:[%s1015 + $0x10] sm:$0xf]
      %v1131 = vsel %vm938, %v1058, %v1130
      %1132 = vst [vmem:[%s1015 + $0x10] sm:$0xf] %v1131
      %v1133 = vld [vmem:[%s1015 + $0x18] sm:$0x1]
      %v1134 = vsel %vm229, %v1059, %v1133
      %1135 = vst [vmem:[%s1015 + $0x18] sm:$0x1] %v1134
      %v1136 = vld [vmem:[%s1015 + $0x20] sm:$0xf]
      %v1137 = vsel %vm938, %v1066, %v1136
      %1138 = vst [vmem:[%s1015 + $0x20] sm:$0xf] %v1137
      %v1139 = vld [vmem:[%s1015 + $0x28] sm:$0x1]
      %v1140 = vsel %vm229, %v1067, %v1139
      %1141 = vst [vmem:[%s1015 + $0x28] sm:$0x1] %v1140
      %v1142 = vld [vmem:[%s1015 + $0x30] sm:$0xf]
      %v1143 = vsel %vm938, %v1074, %v1142
      %1144 = vst [vmem:[%s1015 + $0x30] sm:$0xf] %v1143
      %v1145 = vld [vmem:[%s1015 + $0x38] sm:$0x1]
      %v1146 = vsel %vm229, %v1075, %v1145
      %1147 = vst [vmem:[%s1015 + $0x38] sm:$0x1] %v1146
      %v1148 = vld [vmem:[%s1015 + $0x40] sm:$0xf]
      %v1149 = vsel %vm938, %v1082, %v1148
      %1150 = vst [vmem:[%s1015 + $0x40] sm:$0xf] %v1149
      %v1151 = vld [vmem:[%s1015 + $0x48] sm:$0x1]
      %v1152 = vsel %vm229, %v1083, %v1151
      %1153 = vst [vmem:[%s1015 + $0x48] sm:$0x1] %v1152
      %v1154 = vld [vmem:[%s1015 + $0x50] sm:$0xf]
      %v1155 = vsel %vm938, %v1090, %v1154
      %1156 = vst [vmem:[%s1015 + $0x50] sm:$0xf] %v1155
      %v1157 = vld [vmem:[%s1015 + $0x58] sm:$0x1]
      %v1158 = vsel %vm229, %v1091, %v1157
      %1159 = vst [vmem:[%s1015 + $0x58] sm:$0x1] %v1158
      %v1160 = vld [vmem:[%s1015 + $0x60] sm:$0xf]
      %v1161 = vsel %vm938, %v1098, %v1160
      %1162 = vst [vmem:[%s1015 + $0x60] sm:$0xf] %v1161
      %v1163 = vld [vmem:[%s1015 + $0x68] sm:$0x1]
      %v1164 = vsel %vm229, %v1099, %v1163
      %1165 = vst [vmem:[%s1015 + $0x68] sm:$0x1] %v1164
      %v1166 = vld [vmem:[%s1015 + $0x70] sm:$0xf]
      %v1167 = vsel %vm938, %v1106, %v1166
      %1168 = vst [vmem:[%s1015 + $0x70] sm:$0xf] %v1167
      %v1169 = vld [vmem:[%s1015 + $0x78] sm:$0x1]
      %v1170 = vsel %vm229, %v1107, %v1169
      %1171 = vst [vmem:[%s1015 + $0x78] sm:$0x1] %v1170
      %v1172 = vld [vmem:[#allocation2] sm:$0xff]
      %v1173 = vld [vmem:[#allocation2 + $0x10] sm:$0xff]
      %v1174 = vld [vmem:[#allocation2 + $0x20] sm:$0xff]
      %v1175 = vld [vmem:[#allocation2 + $0x30] sm:$0xff]
      %v1176 = vld [vmem:[#allocation2 + $0x40] sm:$0xff]
      %v1177 = vld [vmem:[#allocation2 + $0x50] sm:$0xff]
      %v1178 = vld [vmem:[#allocation2 + $0x60] sm:$0xff]
      %v1179 = vld [vmem:[#allocation2 + $0x70] sm:$0xff]
      %v1180 = vld [vmem:[%s2] sm:$0xf]
      %v1181 = vld [vmem:[%s2 + $0x4] sm:$0xf]
      %v1182 = vld [vmem:[%s2 + $0x8] sm:$0xf]
      %v1183 = vld [vmem:[%s2 + $0xc] sm:$0xf]
      %v1184 = vld [vmem:[%s2 + $0x10] sm:$0xf]
      %v1185 = vld [vmem:[%s2 + $0x14] sm:$0xf]
      %v1186 = vld [vmem:[%s2 + $0x18] sm:$0xf]
      %v1187 = vld [vmem:[%s2 + $0x1c] sm:$0xf]
      %v1188 = vld [vmem:[%s2 + $0x20] sm:$0xf]
      %v1189 = vld [vmem:[%s2 + $0x24] sm:$0xf]
      %v1190 = vld [vmem:[%s2 + $0x28] sm:$0xf]
      %v1191 = vld [vmem:[%s2 + $0x2c] sm:$0xf]
      %v1192 = vld [vmem:[%s2 + $0x30] sm:$0xf]
      %v1193 = vld [vmem:[%s2 + $0x34] sm:$0xf]
      %v1194 = vld [vmem:[%s2 + $0x38] sm:$0xf]
      %v1195 = vld [vmem:[%s2 + $0x3c] sm:$0xf]
      %v1196 = vld [vmem:[%s2 + $0x40] sm:$0xf]
      %v1197 = vld [vmem:[%s2 + $0x44] sm:$0xf]
      %v1198 = vld [vmem:[%s2 + $0x48] sm:$0xf]
      %v1199 = vld [vmem:[%s2 + $0x4c] sm:$0xf]
      %v1200 = vld [vmem:[%s2 + $0x50] sm:$0xf]
      %v1201 = vld [vmem:[%s2 + $0x54] sm:$0xf]
      %v1202 = vld [vmem:[%s2 + $0x58] sm:$0xf]
      %v1203 = vld [vmem:[%s2 + $0x5c] sm:$0xf]
      %v1204 = vld [vmem:[%s2 + $0x60] sm:$0xf]
      %v1205 = vld [vmem:[%s2 + $0x64] sm:$0xf]
      %v1206 = vld [vmem:[%s2 + $0x68] sm:$0xf]
      %v1207 = vld [vmem:[%s2 + $0x6c] sm:$0xf]
      %v1208 = vld [vmem:[%s2 + $0x70] sm:$0xf]
      %v1209 = vld [vmem:[%s2 + $0x74] sm:$0xf]
      %v1210 = vld [vmem:[%s2 + $0x78] sm:$0xf]
      %v1211 = vld [vmem:[%s2 + $0x7c] sm:$0xf]
      %v1212 = vld [vmem:[#allocation2 + $0x8] sm:$0x11]
      %v1213 = vld [vmem:[#allocation2 + $0x18] sm:$0x11]
      %v1214 = vld [vmem:[#allocation2 + $0x28] sm:$0x11]
      %v1215 = vld [vmem:[#allocation2 + $0x38] sm:$0x11]
      %v1216 = vld [vmem:[#allocation2 + $0x48] sm:$0x11]
      %v1217 = vld [vmem:[#allocation2 + $0x58] sm:$0x11]
      %v1218 = vld [vmem:[#allocation2 + $0x68] sm:$0x11]
      %v1219 = vld [vmem:[#allocation2 + $0x78] sm:$0x11]
      %vm1220 = vsmask.f32 3328
      %vm1221 = vsmask.f32 7440
      %vm1222 = vmor %vm1220, %vm1221
      %v1224 = vshrl.u32 %v1172, 16
      %v1226 = vrot.slane %v1224, 4
      %v1227 = vshll.u32 %v1172, 16
      %v1229 = vrot.slane %v1227, 5
      %v1230 = vor.u32 %v1226, %v1229
      %v1231 = vrot.slane %v1230, 4
      %v1233 = vshll.u32 %v1212, 16
      %v1235 = vrot.slane %v1233, 5
      %v1236 = vsel %vm1222, %v1231, %v1235
      %v1238 = vshrl.u32 %v1173, 16
      %v1240 = vrot.slane %v1238, 4
      %v1241 = vshll.u32 %v1173, 16
      %v1243 = vrot.slane %v1241, 5
      %v1244 = vor.u32 %v1240, %v1243
      %v1245 = vrot.slane %v1244, 4
      %v1247 = vshll.u32 %v1213, 16
      %v1249 = vrot.slane %v1247, 5
      %v1250 = vsel %vm1222, %v1245, %v1249
      %v1252 = vshrl.u32 %v1174, 16
      %v1254 = vrot.slane %v1252, 4
      %v1255 = vshll.u32 %v1174, 16
      %v1257 = vrot.slane %v1255, 5
      %v1258 = vor.u32 %v1254, %v1257
      %v1259 = vrot.slane %v1258, 4
      %v1261 = vshll.u32 %v1214, 16
      %v1263 = vrot.slane %v1261, 5
      %v1264 = vsel %vm1222, %v1259, %v1263
      %v1266 = vshrl.u32 %v1175, 16
      %v1268 = vrot.slane %v1266, 4
      %v1269 = vshll.u32 %v1175, 16
      %v1271 = vrot.slane %v1269, 5
      %v1272 = vor.u32 %v1268, %v1271
      %v1273 = vrot.slane %v1272, 4
      %v1275 = vshll.u32 %v1215, 16
      %v1277 = vrot.slane %v1275, 5
      %v1278 = vsel %vm1222, %v1273, %v1277
      %v1280 = vshrl.u32 %v1176, 16
      %v1282 = vrot.slane %v1280, 4
      %v1283 = vshll.u32 %v1176, 16
      %v1285 = vrot.slane %v1283, 5
      %v1286 = vor.u32 %v1282, %v1285
      %v1287 = vrot.slane %v1286, 4
      %v1289 = vshll.u32 %v1216, 16
      %v1291 = vrot.slane %v1289, 5
      %v1292 = vsel %vm1222, %v1287, %v1291
      %v1294 = vshrl.u32 %v1177, 16
      %v1296 = vrot.slane %v1294, 4
      %v1297 = vshll.u32 %v1177, 16
      %v1299 = vrot.slane %v1297, 5
      %v1300 = vor.u32 %v1296, %v1299
      %v1301 = vrot.slane %v1300, 4
      %v1303 = vshll.u32 %v1217, 16
      %v1305 = vrot.slane %v1303, 5
      %v1306 = vsel %vm1222, %v1301, %v1305
      %v1308 = vshrl.u32 %v1178, 16
      %v1310 = vrot.slane %v1308, 4
      %v1311 = vshll.u32 %v1178, 16
      %v1313 = vrot.slane %v1311, 5
      %v1314 = vor.u32 %v1310, %v1313
      %v1315 = vrot.slane %v1314, 4
      %v1317 = vshll.u32 %v1218, 16
      %v1319 = vrot.slane %v1317, 5
      %v1320 = vsel %vm1222, %v1315, %v1319
      %v1322 = vshrl.u32 %v1179, 16
      %v1324 = vrot.slane %v1322, 4
      %v1325 = vshll.u32 %v1179, 16
      %v1327 = vrot.slane %v1325, 5
      %v1328 = vor.u32 %v1324, %v1327
      %v1329 = vrot.slane %v1328, 4
      %v1331 = vshll.u32 %v1219, 16
      %v1333 = vrot.slane %v1331, 5
      %v1334 = vsel %vm1222, %v1329, %v1333
      %s1335 = scalar_lea.vmem %s2, 128
      %v1336 = vld [vmem:[%s1335] sm:$0xf]
      %v1337 = vld [vmem:[%s1335 + $0x4] sm:$0xf]
      %v1338 = vld [vmem:[%s1335 + $0x8] sm:$0xf]
      %v1339 = vld [vmem:[%s1335 + $0xc] sm:$0xf]
      %v1340 = vld [vmem:[%s1335 + $0x10] sm:$0xf]
      %v1341 = vld [vmem:[%s1335 + $0x14] sm:$0xf]
      %v1342 = vld [vmem:[%s1335 + $0x18] sm:$0xf]
      %v1343 = vld [vmem:[%s1335 + $0x1c] sm:$0xf]
      %v1344 = vld [vmem:[%s1335 + $0x20] sm:$0xf]
      %v1345 = vld [vmem:[%s1335 + $0x24] sm:$0xf]
      %v1346 = vld [vmem:[%s1335 + $0x28] sm:$0xf]
      %v1347 = vld [vmem:[%s1335 + $0x2c] sm:$0xf]
      %v1348 = vld [vmem:[%s1335 + $0x30] sm:$0xf]
      %v1349 = vld [vmem:[%s1335 + $0x34] sm:$0xf]
      %v1350 = vld [vmem:[%s1335 + $0x38] sm:$0xf]
      %v1351 = vld [vmem:[%s1335 + $0x3c] sm:$0xf]
      %v1352 = vld [vmem:[%s1335 + $0x40] sm:$0xf]
      %v1353 = vld [vmem:[%s1335 + $0x44] sm:$0xf]
      %v1354 = vld [vmem:[%s1335 + $0x48] sm:$0xf]
      %v1355 = vld [vmem:[%s1335 + $0x4c] sm:$0xf]
      %v1356 = vld [vmem:[%s1335 + $0x50] sm:$0xf]
      %v1357 = vld [vmem:[%s1335 + $0x54] sm:$0xf]
      %v1358 = vld [vmem:[%s1335 + $0x58] sm:$0xf]
      %v1359 = vld [vmem:[%s1335 + $0x5c] sm:$0xf]
      %v1360 = vld [vmem:[%s1335 + $0x60] sm:$0xf]
      %v1361 = vld [vmem:[%s1335 + $0x64] sm:$0xf]
      %v1362 = vld [vmem:[%s1335 + $0x68] sm:$0xf]
      %v1363 = vld [vmem:[%s1335 + $0x6c] sm:$0xf]
      %v1364 = vld [vmem:[%s1335 + $0x70] sm:$0xf]
      %v1365 = vld [vmem:[%s1335 + $0x74] sm:$0xf]
      %v1366 = vld [vmem:[%s1335 + $0x78] sm:$0xf]
      %v1367 = vld [vmem:[%s1335 + $0x7c] sm:$0xf]
      %v1368 = vunpack.c.l.b16 %v1236
      %v1369 = vunpack.c.h.b16 %v1236
      %v1370 = vunpack.c.l.b16 %v1250
      %v1371 = vunpack.c.h.b16 %v1250
      %v1372 = vunpack.c.l.b16 %v1264
      %v1373 = vunpack.c.h.b16 %v1264
      %v1374 = vunpack.c.l.b16 %v1278
      %v1375 = vunpack.c.h.b16 %v1278
      %v1376 = vunpack.c.l.b16 %v1292
      %v1377 = vunpack.c.h.b16 %v1292
      %v1378 = vunpack.c.l.b16 %v1306
      %v1379 = vunpack.c.h.b16 %v1306
      %v1380 = vunpack.c.l.b16 %v1320
      %v1381 = vunpack.c.h.b16 %v1320
      %v1382 = vunpack.c.l.b16 %v1334
      %v1383 = vunpack.c.h.b16 %v1334
      %v1384 = vpack.c.b16 %v1370, %v1368
      %v1385 = vpack.c.b16 %v1371, %v1369
      %v1386 = vpack.c.b16 %v1374, %v1372
      %v1387 = vpack.c.b16 %v1375, %v1373
      %v1388 = vpack.c.b16 %v1378, %v1376
      %v1389 = vpack.c.b16 %v1379, %v1377
      %v1390 = vpack.c.b16 %v1382, %v1380
      %v1391 = vpack.c.b16 %v1383, %v1381
      %v1432 = vunpack.c.l.b16 %v1336
      %v1433 = vunpack.c.l.b16 %v1337
      %v1434 = vunpack.c.l.b16 %v1338
      %v1435 = vunpack.c.l.b16 %v1339
      %v1436 = vunpack.c.l.b16 %v1340
      %v1437 = vunpack.c.l.b16 %v1341
      %v1438 = vunpack.c.l.b16 %v1342
      %v1439 = vunpack.c.l.b16 %v1343
      %v1440 = vunpack.c.l.b16 %v1344
      %v1441 = vunpack.c.l.b16 %v1345
      %v1442 = vunpack.c.l.b16 %v1346
      %v1443 = vunpack.c.l.b16 %v1347
      %v1444 = vunpack.c.l.b16 %v1348
      %v1445 = vunpack.c.l.b16 %v1349
      %v1446 = vunpack.c.l.b16 %v1350
      %v1447 = vunpack.c.l.b16 %v1351
      %v1448 = vunpack.c.l.b16 %v1352
      %v1449 = vunpack.c.l.b16 %v1353
      %v1450 = vunpack.c.l.b16 %v1354
      %v1451 = vunpack.c.l.b16 %v1355
      %v1452 = vunpack.c.l.b16 %v1356
      %v1453 = vunpack.c.l.b16 %v1357
      %v1454 = vunpack.c.l.b16 %v1358
      %v1455 = vunpack.c.l.b16 %v1359
      %v1456 = vunpack.c.l.b16 %v1360
      %v1457 = vunpack.c.l.b16 %v1361
      %v1458 = vunpack.c.l.b16 %v1362
      %v1459 = vunpack.c.l.b16 %v1363
      %v1460 = vunpack.c.l.b16 %v1364
      %v1461 = vunpack.c.l.b16 %v1365
      %v1462 = vunpack.c.l.b16 %v1366
      %v1463 = vunpack.c.l.b16 %v1367
      %v1464 = vpack.c.b16 %v1433, %v1432
      %v1465 = vpack.c.b16 %v1435, %v1434
      %v1466 = vpack.c.b16 %v1437, %v1436
      %v1467 = vpack.c.b16 %v1439, %v1438
      %v1468 = vpack.c.b16 %v1441, %v1440
      %v1469 = vpack.c.b16 %v1443, %v1442
      %v1470 = vpack.c.b16 %v1445, %v1444
      %v1471 = vpack.c.b16 %v1447, %v1446
      %v1472 = vpack.c.b16 %v1449, %v1448
      %v1473 = vpack.c.b16 %v1451, %v1450
      %v1474 = vpack.c.b16 %v1453, %v1452
      %v1475 = vpack.c.b16 %v1455, %v1454
      %v1476 = vpack.c.b16 %v1457, %v1456
      %v1477 = vpack.c.b16 %v1459, %v1458
      %v1478 = vpack.c.b16 %v1461, %v1460
      %v1479 = vpack.c.b16 %v1463, %v1462
      %1496 = vmatprep.subr.bf16.mxu0 0
      %1497 = vmatpush1.bf16.msra.mxu0 %v1464
      %1498 = vmatprep.subr.bf16.mxu0 0
      %1499 = vmatpush1.bf16.msra.mxu0 %v1465
      %1500 = vmatprep.subr.bf16.mxu0 0
      %1501 = vmatpush1.bf16.msra.mxu0 %v1466
      %1502 = vmatprep.subr.bf16.mxu0 0
      %1503 = vmatpush1.bf16.msra.mxu0 %v1467
      %1504 = vmatprep.subr.bf16.mxu0 0
      %1505 = vmatpush1.bf16.msra.mxu0 %v1468
      %1506 = vmatprep.subr.bf16.mxu0 0
      %1507 = vmatpush1.bf16.msra.mxu0 %v1469
      %1508 = vmatprep.subr.bf16.mxu0 0
      %1509 = vmatpush1.bf16.msra.mxu0 %v1470
      %1510 = vmatprep.subr.bf16.mxu0 0
      %1511 = vmatpush1.bf16.msra.mxu0 %v1471
      %1512 = vmatprep.subr.bf16.mxu0 0
      %1513 = vmatpush1.bf16.msra.mxu0 %v1472
      %1514 = vmatprep.subr.bf16.mxu0 0
      %1515 = vmatpush1.bf16.msra.mxu0 %v1473
      %1516 = vmatprep.subr.bf16.mxu0 0
      %1517 = vmatpush1.bf16.msra.mxu0 %v1474
      %1518 = vmatprep.subr.bf16.mxu0 0
      %1519 = vmatpush1.bf16.msra.mxu0 %v1475
      %1520 = vmatprep.subr.bf16.mxu0 0
      %1521 = vmatpush1.bf16.msra.mxu0 %v1476
      %1522 = vmatprep.subr.bf16.mxu0 0
      %1523 = vmatpush1.bf16.msra.mxu0 %v1477
      %1524 = vmatprep.subr.bf16.mxu0 0
      %1525 = vmatpush1.bf16.msra.mxu0 %v1478
      %1526 = vmatprep.subr.bf16.mxu0 0
      %1527 = vmatpush1.bf16.msra.mxu0 %v1479
      %1528 = vmatprep.mubr.bf16.mxu0 %v1385
      %1529 = vmatmul.mubr.bf16.gmra.mrb[0].mxu0 %v1384
      %v1530 = vpop.f32.mrb[0].mxu0
      %v1531 = vadd.f32 0.0, %v1530
      %v1532 = vpop.f32.mrb[0].mxu0
      %v1533 = vpop.f32.mrb[0].mxu0
      %v1534 = vadd.f32 0.0, %v1533
      %v1535 = vpop.f32.mrb[0].mxu0
      %1536 = vmatprep.mubr.bf16.mxu0 %v1387
      %1537 = vmatmul.mubr.bf16.gmra.mrb[0].mxu0 %v1386
      %v1538 = vpop.f32.mrb[0].mxu0
      %v1539 = vadd.f32 0.0, %v1538
      %v1540 = vpop.f32.mrb[0].mxu0
      %v1541 = vpop.f32.mrb[0].mxu0
      %v1542 = vadd.f32 0.0, %v1541
      %v1543 = vpop.f32.mrb[0].mxu0
      %1544 = vmatprep.mubr.bf16.mxu0 %v1389
      %1545 = vmatmul.mubr.bf16.gmra.mrb[0].mxu0 %v1388
      %v1546 = vpop.f32.mrb[0].mxu0
      %v1547 = vadd.f32 0.0, %v1546
      %v1548 = vpop.f32.mrb[0].mxu0
      %v1549 = vpop.f32.mrb[0].mxu0
      %v1550 = vadd.f32 0.0, %v1549
      %v1551 = vpop.f32.mrb[0].mxu0
      %1552 = vmatprep.mubr.bf16.mxu0 %v1391
      %1553 = vmatmul.mubr.bf16.gmra.mrb[0].mxu0 %v1390
      %v1554 = vpop.f32.mrb[0].mxu0
      %v1555 = vadd.f32 0.0, %v1554
      %v1556 = vpop.f32.mrb[0].mxu0
      %v1557 = vpop.f32.mrb[0].mxu0
      %v1558 = vadd.f32 0.0, %v1557
      %v1559 = vpop.f32.mrb[0].mxu0
      %1560 = vdwg.mxu0
      %v1569 = vunpack.c.l.b16 %v1172
      %v1570 = vunpack.c.h.b16 %v1172
      %v1571 = vunpack.c.l.b16 %v1173
      %v1572 = vunpack.c.h.b16 %v1173
      %v1573 = vunpack.c.l.b16 %v1174
      %v1574 = vunpack.c.h.b16 %v1174
      %v1575 = vunpack.c.l.b16 %v1175
      %v1576 = vunpack.c.h.b16 %v1175
      %v1577 = vunpack.c.l.b16 %v1176
      %v1578 = vunpack.c.h.b16 %v1176
      %v1579 = vunpack.c.l.b16 %v1177
      %v1580 = vunpack.c.h.b16 %v1177
      %v1581 = vunpack.c.l.b16 %v1178
      %v1582 = vunpack.c.h.b16 %v1178
      %v1583 = vunpack.c.l.b16 %v1179
      %v1584 = vunpack.c.h.b16 %v1179
      %v1585 = vpack.c.b16 %v1571, %v1569
      %v1586 = vpack.c.b16 %v1572, %v1570
      %v1587 = vpack.c.b16 %v1575, %v1573
      %v1588 = vpack.c.b16 %v1576, %v1574
      %v1589 = vpack.c.b16 %v1579, %v1577
      %v1590 = vpack.c.b16 %v1580, %v1578
      %v1591 = vpack.c.b16 %v1583, %v1581
      %v1592 = vpack.c.b16 %v1584, %v1582
      %v1633 = vunpack.c.l.b16 %v1180
      %v1634 = vunpack.c.l.b16 %v1181
      %v1635 = vunpack.c.l.b16 %v1182
      %v1636 = vunpack.c.l.b16 %v1183
      %v1637 = vunpack.c.l.b16 %v1184
      %v1638 = vunpack.c.l.b16 %v1185
      %v1639 = vunpack.c.l.b16 %v1186
      %v1640 = vunpack.c.l.b16 %v1187
      %v1641 = vunpack.c.l.b16 %v1188
      %v1642 = vunpack.c.l.b16 %v1189
      %v1643 = vunpack.c.l.b16 %v1190
      %v1644 = vunpack.c.l.b16 %v1191
      %v1645 = vunpack.c.l.b16 %v1192
      %v1646 = vunpack.c.l.b16 %v1193
      %v1647 = vunpack.c.l.b16 %v1194
      %v1648 = vunpack.c.l.b16 %v1195
      %v1649 = vunpack.c.l.b16 %v1196
      %v1650 = vunpack.c.l.b16 %v1197
      %v1651 = vunpack.c.l.b16 %v1198
      %v1652 = vunpack.c.l.b16 %v1199
      %v1653 = vunpack.c.l.b16 %v1200
      %v1654 = vunpack.c.l.b16 %v1201
      %v1655 = vunpack.c.l.b16 %v1202
      %v1656 = vunpack.c.l.b16 %v1203
      %v1657 = vunpack.c.l.b16 %v1204
      %v1658 = vunpack.c.l.b16 %v1205
      %v1659 = vunpack.c.l.b16 %v1206
      %v1660 = vunpack.c.l.b16 %v1207
      %v1661 = vunpack.c.l.b16 %v1208
      %v1662 = vunpack.c.l.b16 %v1209
      %v1663 = vunpack.c.l.b16 %v1210
      %v1664 = vunpack.c.l.b16 %v1211
      %v1665 = vpack.c.b16 %v1634, %v1633
      %v1666 = vpack.c.b16 %v1636, %v1635
      %v1667 = vpack.c.b16 %v1638, %v1637
      %v1668 = vpack.c.b16 %v1640, %v1639
      %v1669 = vpack.c.b16 %v1642, %v1641
      %v1670 = vpack.c.b16 %v1644, %v1643
      %v1671 = vpack.c.b16 %v1646, %v1645
      %v1672 = vpack.c.b16 %v1648, %v1647
      %v1673 = vpack.c.b16 %v1650, %v1649
      %v1674 = vpack.c.b16 %v1652, %v1651
      %v1675 = vpack.c.b16 %v1654, %v1653
      %v1676 = vpack.c.b16 %v1656, %v1655
      %v1677 = vpack.c.b16 %v1658, %v1657
      %v1678 = vpack.c.b16 %v1660, %v1659
      %v1679 = vpack.c.b16 %v1662, %v1661
      %v1680 = vpack.c.b16 %v1664, %v1663
      %1697 = vmatprep.subr.bf16.mxu0 0
      %1698 = vmatpush1.bf16.msra.mxu0 %v1665
      %1699 = vmatprep.subr.bf16.mxu0 0
      %1700 = vmatpush1.bf16.msra.mxu0 %v1666
      %1701 = vmatprep.subr.bf16.mxu0 0
      %1702 = vmatpush1.bf16.msra.mxu0 %v1667
      %1703 = vmatprep.subr.bf16.mxu0 0
      %1704 = vmatpush1.bf16.msra.mxu0 %v1668
      %1705 = vmatprep.subr.bf16.mxu0 0
      %1706 = vmatpush1.bf16.msra.mxu0 %v1669
      %1707 = vmatprep.subr.bf16.mxu0 0
      %1708 = vmatpush1.bf16.msra.mxu0 %v1670
      %1709 = vmatprep.subr.bf16.mxu0 0
      %1710 = vmatpush1.bf16.msra.mxu0 %v1671
      %1711 = vmatprep.subr.bf16.mxu0 0
      %1712 = vmatpush1.bf16.msra.mxu0 %v1672
      %1713 = vmatprep.subr.bf16.mxu0 0
      %1714 = vmatpush1.bf16.msra.mxu0 %v1673
      %1715 = vmatprep.subr.bf16.mxu0 0
      %1716 = vmatpush1.bf16.msra.mxu0 %v1674
      %1717 = vmatprep.subr.bf16.mxu0 0
      %1718 = vmatpush1.bf16.msra.mxu0 %v1675
      %1719 = vmatprep.subr.bf16.mxu0 0
      %1720 = vmatpush1.bf16.msra.mxu0 %v1676
      %1721 = vmatprep.subr.bf16.mxu0 0
      %1722 = vmatpush1.bf16.msra.mxu0 %v1677
      %1723 = vmatprep.subr.bf16.mxu0 0
      %1724 = vmatpush1.bf16.msra.mxu0 %v1678
      %1725 = vmatprep.subr.bf16.mxu0 0
      %1726 = vmatpush1.bf16.msra.mxu0 %v1679
      %1727 = vmatprep.subr.bf16.mxu0 0
      %1728 = vmatpush1.bf16.msra.mxu0 %v1680
      %1729 = vmatprep.mubr.bf16.mxu0 %v1586
      %1730 = vmatmul.mubr.bf16.gmra.mrb[0].mxu0 %v1585
      %v1731 = vpop.f32.mrb[0].mxu0
      %v1732 = vadd.f32 %v1531, %v1731
      %v1733 = vpop.f32.mrb[0].mxu0
      %v1734 = vpop.f32.mrb[0].mxu0
      %v1735 = vadd.f32 %v1534, %v1734
      %v1736 = vpop.f32.mrb[0].mxu0
      %1737 = vmatprep.mubr.bf16.mxu0 %v1588
      %1738 = vmatmul.mubr.bf16.gmra.mrb[0].mxu0 %v1587
      %v1739 = vpop.f32.mrb[0].mxu0
      %v1740 = vadd.f32 %v1539, %v1739
      %v1741 = vpop.f32.mrb[0].mxu0
      %v1742 = vpop.f32.mrb[0].mxu0
      %v1743 = vadd.f32 %v1542, %v1742
      %v1744 = vpop.f32.mrb[0].mxu0
      %1745 = vmatprep.mubr.bf16.mxu0 %v1590
      %1746 = vmatmul.mubr.bf16.gmra.mrb[0].mxu0 %v1589
      %v1747 = vpop.f32.mrb[0].mxu0
      %v1748 = vadd.f32 %v1547, %v1747
      %v1749 = vpop.f32.mrb[0].mxu0
      %v1750 = vpop.f32.mrb[0].mxu0
      %v1751 = vadd.f32 %v1550, %v1750
      %v1752 = vpop.f32.mrb[0].mxu0
      %1753 = vmatprep.mubr.bf16.mxu0 %v1592
      %1754 = vmatmul.mubr.bf16.gmra.mrb[0].mxu0 %v1591
      %v1755 = vpop.f32.mrb[0].mxu0
      %v1756 = vadd.f32 %v1555, %v1755
      %v1757 = vpop.f32.mrb[0].mxu0
      %v1758 = vpop.f32.mrb[0].mxu0
      %v1759 = vadd.f32 %v1558, %v1758
      %v1760 = vpop.f32.mrb[0].mxu0
      %1761 = vdwg.mxu0
      %v1762 = vld [vmem:[%s827] sm:$0xff]
      %v1763 = vld [vmem:[%s827 + $0x10] sm:$0xff]
      %v1764 = vld [vmem:[%s827 + $0x20] sm:$0xff]
      %v1765 = vld [vmem:[%s827 + $0x30] sm:$0xff]
      %v1766 = vld [vmem:[%s827 + $0x40] sm:$0xff]
      %v1767 = vld [vmem:[%s827 + $0x50] sm:$0xff]
      %v1768 = vld [vmem:[%s827 + $0x60] sm:$0xff]
      %v1769 = vld [vmem:[%s827 + $0x70] sm:$0xff]
      %s1770 = scalar_lea.vmem %s2, 256
      %v1771 = vld [vmem:[%s1770] sm:$0xf]
      %v1772 = vld [vmem:[%s1770 + $0x4] sm:$0xf]
      %v1773 = vld [vmem:[%s1770 + $0x8] sm:$0xf]
      %v1774 = vld [vmem:[%s1770 + $0xc] sm:$0xf]
      %v1775 = vld [vmem:[%s1770 + $0x10] sm:$0xf]
      %v1776 = vld [vmem:[%s1770 + $0x14] sm:$0xf]
      %v1777 = vld [vmem:[%s1770 + $0x18] sm:$0xf]
      %v1778 = vld [vmem:[%s1770 + $0x1c] sm:$0xf]
      %v1779 = vld [vmem:[%s1770 + $0x20] sm:$0xf]
      %v1780 = vld [vmem:[%s1770 + $0x24] sm:$0xf]
      %v1781 = vld [vmem:[%s1770 + $0x28] sm:$0xf]
      %v1782 = vld [vmem:[%s1770 + $0x2c] sm:$0xf]
      %v1783 = vld [vmem:[%s1770 + $0x30] sm:$0xf]
      %v1784 = vld [vmem:[%s1770 + $0x34] sm:$0xf]
      %v1785 = vld [vmem:[%s1770 + $0x38] sm:$0xf]
      %v1786 = vld [vmem:[%s1770 + $0x3c] sm:$0xf]
      %v1787 = vld [vmem:[%s1770 + $0x40] sm:$0xf]
      %v1788 = vld [vmem:[%s1770 + $0x44] sm:$0xf]
      %v1789 = vld [vmem:[%s1770 + $0x48] sm:$0xf]
      %v1790 = vld [vmem:[%s1770 + $0x4c] sm:$0xf]
      %v1791 = vld [vmem:[%s1770 + $0x50] sm:$0xf]
      %v1792 = vld [vmem:[%s1770 + $0x54] sm:$0xf]
      %v1793 = vld [vmem:[%s1770 + $0x58] sm:$0xf]
      %v1794 = vld [vmem:[%s1770 + $0x5c] sm:$0xf]
      %v1795 = vld [vmem:[%s1770 + $0x60] sm:$0xf]
      %v1796 = vld [vmem:[%s1770 + $0x64] sm:$0xf]
      %v1797 = vld [vmem:[%s1770 + $0x68] sm:$0xf]
      %v1798 = vld [vmem:[%s1770 + $0x6c] sm:$0xf]
      %v1799 = vld [vmem:[%s1770 + $0x70] sm:$0xf]
      %v1800 = vld [vmem:[%s1770 + $0x74] sm:$0xf]
      %v1801 = vld [vmem:[%s1770 + $0x78] sm:$0xf]
      %v1802 = vld [vmem:[%s1770 + $0x7c] sm:$0xf]
      %v1811 = vunpack.c.l.b16 %v1762
      %v1812 = vunpack.c.h.b16 %v1762
      %v1813 = vunpack.c.l.b16 %v1763
      %v1814 = vunpack.c.h.b16 %v1763
      %v1815 = vunpack.c.l.b16 %v1764
      %v1816 = vunpack.c.h.b16 %v1764
      %v1817 = vunpack.c.l.b16 %v1765
      %v1818 = vunpack.c.h.b16 %v1765
      %v1819 = vunpack.c.l.b16 %v1766
      %v1820 = vunpack.c.h.b16 %v1766
      %v1821 = vunpack.c.l.b16 %v1767
      %v1822 = vunpack.c.h.b16 %v1767
      %v1823 = vunpack.c.l.b16 %v1768
      %v1824 = vunpack.c.h.b16 %v1768
      %v1825 = vunpack.c.l.b16 %v1769
      %v1826 = vunpack.c.h.b16 %v1769
      %v1827 = vpack.c.b16 %v1813, %v1811
      %v1828 = vpack.c.b16 %v1814, %v1812
      %v1829 = vpack.c.b16 %v1817, %v1815
      %v1830 = vpack.c.b16 %v1818, %v1816
      %v1831 = vpack.c.b16 %v1821, %v1819
      %v1832 = vpack.c.b16 %v1822, %v1820
      %v1833 = vpack.c.b16 %v1825, %v1823
      %v1834 = vpack.c.b16 %v1826, %v1824
      %v1875 = vunpack.c.l.b16 %v1771
      %v1876 = vunpack.c.l.b16 %v1772
      %v1877 = vunpack.c.l.b16 %v1773
      %v1878 = vunpack.c.l.b16 %v1774
      %v1879 = vunpack.c.l.b16 %v1775
      %v1880 = vunpack.c.l.b16 %v1776
      %v1881 = vunpack.c.l.b16 %v1777
      %v1882 = vunpack.c.l.b16 %v1778
      %v1883 = vunpack.c.l.b16 %v1779
      %v1884 = vunpack.c.l.b16 %v1780
      %v1885 = vunpack.c.l.b16 %v1781
      %v1886 = vunpack.c.l.b16 %v1782
      %v1887 = vunpack.c.l.b16 %v1783
      %v1888 = vunpack.c.l.b16 %v1784
      %v1889 = vunpack.c.l.b16 %v1785
      %v1890 = vunpack.c.l.b16 %v1786
      %v1891 = vunpack.c.l.b16 %v1787
      %v1892 = vunpack.c.l.b16 %v1788
      %v1893 = vunpack.c.l.b16 %v1789
      %v1894 = vunpack.c.l.b16 %v1790
      %v1895 = vunpack.c.l.b16 %v1791
      %v1896 = vunpack.c.l.b16 %v1792
      %v1897 = vunpack.c.l.b16 %v1793
      %v1898 = vunpack.c.l.b16 %v1794
      %v1899 = vunpack.c.l.b16 %v1795
      %v1900 = vunpack.c.l.b16 %v1796
      %v1901 = vunpack.c.l.b16 %v1797
      %v1902 = vunpack.c.l.b16 %v1798
      %v1903 = vunpack.c.l.b16 %v1799
      %v1904 = vunpack.c.l.b16 %v1800
      %v1905 = vunpack.c.l.b16 %v1801
      %v1906 = vunpack.c.l.b16 %v1802
      %v1907 = vpack.c.b16 %v1876, %v1875
      %v1908 = vpack.c.b16 %v1878, %v1877
      %v1909 = vpack.c.b16 %v1880, %v1879
      %v1910 = vpack.c.b16 %v1882, %v1881
      %v1911 = vpack.c.b16 %v1884, %v1883
      %v1912 = vpack.c.b16 %v1886, %v1885
      %v1913 = vpack.c.b16 %v1888, %v1887
      %v1914 = vpack.c.b16 %v1890, %v1889
      %v1915 = vpack.c.b16 %v1892, %v1891
      %v1916 = vpack.c.b16 %v1894, %v1893
      %v1917 = vpack.c.b16 %v1896, %v1895
      %v1918 = vpack.c.b16 %v1898, %v1897
      %v1919 = vpack.c.b16 %v1900, %v1899
      %v1920 = vpack.c.b16 %v1902, %v1901
      %v1921 = vpack.c.b16 %v1904, %v1903
      %v1922 = vpack.c.b16 %v1906, %v1905
      %1939 = vmatprep.subr.bf16.mxu0 0
      %1940 = vmatpush1.bf16.msra.mxu0 %v1907
      %1941 = vmatprep.subr.bf16.mxu0 0
      %1942 = vmatpush1.bf16.msra.mxu0 %v1908
      %1943 = vmatprep.subr.bf16.mxu0 0
      %1944 = vmatpush1.bf16.msra.mxu0 %v1909
      %1945 = vmatprep.subr.bf16.mxu0 0
      %1946 = vmatpush1.bf16.msra.mxu0 %v1910
      %1947 = vmatprep.subr.bf16.mxu0 0
      %1948 = vmatpush1.bf16.msra.mxu0 %v1911
      %1949 = vmatprep.subr.bf16.mxu0 0
      %1950 = vmatpush1.bf16.msra.mxu0 %v1912
      %1951 = vmatprep.subr.bf16.mxu0 0
      %1952 = vmatpush1.bf16.msra.mxu0 %v1913
      %1953 = vmatprep.subr.bf16.mxu0 0
      %1954 = vmatpush1.bf16.msra.mxu0 %v1914
      %1955 = vmatprep.subr.bf16.mxu0 0
      %1956 = vmatpush1.bf16.msra.mxu0 %v1915
      %1957 = vmatprep.subr.bf16.mxu0 0
      %1958 = vmatpush1.bf16.msra.mxu0 %v1916
      %1959 = vmatprep.subr.bf16.mxu0 0
      %1960 = vmatpush1.bf16.msra.mxu0 %v1917
      %1961 = vmatprep.subr.bf16.mxu0 0
      %1962 = vmatpush1.bf16.msra.mxu0 %v1918
      %1963 = vmatprep.subr.bf16.mxu0 0
      %1964 = vmatpush1.bf16.msra.mxu0 %v1919
      %1965 = vmatprep.subr.bf16.mxu0 0
      %1966 = vmatpush1.bf16.msra.mxu0 %v1920
      %1967 = vmatprep.subr.bf16.mxu0 0
      %1968 = vmatpush1.bf16.msra.mxu0 %v1921
      %1969 = vmatprep.subr.bf16.mxu0 0
      %1970 = vmatpush1.bf16.msra.mxu0 %v1922
      %1971 = vmatprep.mubr.bf16.mxu0 %v1828
      %1972 = vmatmul.mubr.bf16.gmra.mrb[0].mxu0 %v1827
      %v1973 = vpop.f32.mrb[0].mxu0
      %v1974 = vadd.f32 0.0, %v1973
      %v1975 = vpop.f32.mrb[0].mxu0
      %v1976 = vpop.f32.mrb[0].mxu0
      %v1977 = vadd.f32 0.0, %v1976
      %v1978 = vpop.f32.mrb[0].mxu0
      %1979 = vmatprep.mubr.bf16.mxu0 %v1830
      %1980 = vmatmul.mubr.bf16.gmra.mrb[0].mxu0 %v1829
      %v1981 = vpop.f32.mrb[0].mxu0
      %v1982 = vadd.f32 0.0, %v1981
      %v1983 = vpop.f32.mrb[0].mxu0
      %v1984 = vpop.f32.mrb[0].mxu0
      %v1985 = vadd.f32 0.0, %v1984
      %v1986 = vpop.f32.mrb[0].mxu0
      %1987 = vmatprep.mubr.bf16.mxu0 %v1832
      %1988 = vmatmul.mubr.bf16.gmra.mrb[0].mxu0 %v1831
      %v1989 = vpop.f32.mrb[0].mxu0
      %v1990 = vadd.f32 0.0, %v1989
      %v1991 = vpop.f32.mrb[0].mxu0
      %v1992 = vpop.f32.mrb[0].mxu0
      %v1993 = vadd.f32 0.0, %v1992
      %v1994 = vpop.f32.mrb[0].mxu0
      %1995 = vmatprep.mubr.bf16.mxu0 %v1834
      %1996 = vmatmul.mubr.bf16.gmra.mrb[0].mxu0 %v1833
      %v1997 = vpop.f32.mrb[0].mxu0
      %v1998 = vadd.f32 0.0, %v1997
      %v1999 = vpop.f32.mrb[0].mxu0
      %v2000 = vpop.f32.mrb[0].mxu0
      %v2001 = vadd.f32 0.0, %v2000
      %v2002 = vpop.f32.mrb[0].mxu0
      %2003 = vdwg.mxu0
      %v2004 = vadd.f32 %v1732, %v1974
      %v2005 = vadd.f32 %v1735, %v1977
      %v2006 = vadd.f32 %v1740, %v1982
      %v2007 = vadd.f32 %v1743, %v1985
      %v2008 = vadd.f32 %v1748, %v1990
      %v2009 = vadd.f32 %v1751, %v1993
      %v2010 = vadd.f32 %v1756, %v1998
      %v2011 = vadd.f32 %v1759, %v2001
      %v2012 = vld [vmem:[%s827] sm:$0xff]
      %v2013 = vld [vmem:[%s827 + $0x8] sm:$0x11]
      %v2014 = vld [vmem:[%s827 + $0x10] sm:$0xff]
      %v2015 = vld [vmem:[%s827 + $0x18] sm:$0x11]
      %v2016 = vld [vmem:[%s827 + $0x20] sm:$0xff]
      %v2017 = vld [vmem:[%s827 + $0x28] sm:$0x11]
      %v2018 = vld [vmem:[%s827 + $0x30] sm:$0xff]
      %v2019 = vld [vmem:[%s827 + $0x38] sm:$0x11]
      %v2020 = vld [vmem:[%s827 + $0x40] sm:$0xff]
      %v2021 = vld [vmem:[%s827 + $0x48] sm:$0x11]
      %v2022 = vld [vmem:[%s827 + $0x50] sm:$0xff]
      %v2023 = vld [vmem:[%s827 + $0x58] sm:$0x11]
      %v2024 = vld [vmem:[%s827 + $0x60] sm:$0xff]
      %v2025 = vld [vmem:[%s827 + $0x68] sm:$0x11]
      %v2026 = vld [vmem:[%s827 + $0x70] sm:$0xff]
      %v2027 = vld [vmem:[%s827 + $0x78] sm:$0x11]
      %v2029 = vshrl.u32 %v2012, 16
      %v2031 = vrot.slane %v2029, 4
      %v2032 = vshll.u32 %v2012, 16
      %v2034 = vrot.slane %v2032, 5
      %v2035 = vor.u32 %v2031, %v2034
      %v2036 = vrot.slane %v2035, 4
      %v2038 = vshll.u32 %v2013, 16
      %v2040 = vrot.slane %v2038, 5
      %v2041 = vsel %vm1222, %v2036, %v2040
      %v2043 = vshrl.u32 %v2014, 16
      %v2045 = vrot.slane %v2043, 4
      %v2046 = vshll.u32 %v2014, 16
      %v2048 = vrot.slane %v2046, 5
      %v2049 = vor.u32 %v2045, %v2048
      %v2050 = vrot.slane %v2049, 4
      %v2052 = vshll.u32 %v2015, 16
      %v2054 = vrot.slane %v2052, 5
      %v2055 = vsel %vm1222, %v2050, %v2054
      %v2057 = vshrl.u32 %v2016, 16
      %v2059 = vrot.slane %v2057, 4
      %v2060 = vshll.u32 %v2016, 16
      %v2062 = vrot.slane %v2060, 5
      %v2063 = vor.u32 %v2059, %v2062
      %v2064 = vrot.slane %v2063, 4
      %v2066 = vshll.u32 %v2017, 16
      %v2068 = vrot.slane %v2066, 5
      %v2069 = vsel %vm1222, %v2064, %v2068
      %v2071 = vshrl.u32 %v2018, 16
      %v2073 = vrot.slane %v2071, 4
      %v2074 = vshll.u32 %v2018, 16
      %v2076 = vrot.slane %v2074, 5
      %v2077 = vor.u32 %v2073, %v2076
      %v2078 = vrot.slane %v2077, 4
      %v2080 = vshll.u32 %v2019, 16
      %v2082 = vrot.slane %v2080, 5
      %v2083 = vsel %vm1222, %v2078, %v2082
      %v2085 = vshrl.u32 %v2020, 16
      %v2087 = vrot.slane %v2085, 4
      %v2088 = vshll.u32 %v2020, 16
      %v2090 = vrot.slane %v2088, 5
      %v2091 = vor.u32 %v2087, %v2090
      %v2092 = vrot.slane %v2091, 4
      %v2094 = vshll.u32 %v2021, 16
      %v2096 = vrot.slane %v2094, 5
      %v2097 = vsel %vm1222, %v2092, %v2096
      %v2099 = vshrl.u32 %v2022, 16
      %v2101 = vrot.slane %v2099, 4
      %v2102 = vshll.u32 %v2022, 16
      %v2104 = vrot.slane %v2102, 5
      %v2105 = vor.u32 %v2101, %v2104
      %v2106 = vrot.slane %v2105, 4
      %v2108 = vshll.u32 %v2023, 16
      %v2110 = vrot.slane %v2108, 5
      %v2111 = vsel %vm1222, %v2106, %v2110
      %v2113 = vshrl.u32 %v2024, 16
      %v2115 = vrot.slane %v2113, 4
      %v2116 = vshll.u32 %v2024, 16
      %v2118 = vrot.slane %v2116, 5
      %v2119 = vor.u32 %v2115, %v2118
      %v2120 = vrot.slane %v2119, 4
      %v2122 = vshll.u32 %v2025, 16
      %v2124 = vrot.slane %v2122, 5
      %v2125 = vsel %vm1222, %v2120, %v2124
      %v2127 = vshrl.u32 %v2026, 16
      %v2129 = vrot.slane %v2127, 4
      %v2130 = vshll.u32 %v2026, 16
      %v2132 = vrot.slane %v2130, 5
      %v2133 = vor.u32 %v2129, %v2132
      %v2134 = vrot.slane %v2133, 4
      %v2136 = vshll.u32 %v2027, 16
      %v2138 = vrot.slane %v2136, 5
      %v2139 = vsel %vm1222, %v2134, %v2138
      %s2140 = scalar_lea.vmem %s2, 384
      %v2141 = vld [vmem:[%s2140] sm:$0xf]
      %v2142 = vld [vmem:[%s2140 + $0x4] sm:$0xf]
      %v2143 = vld [vmem:[%s2140 + $0x8] sm:$0xf]
      %v2144 = vld [vmem:[%s2140 + $0xc] sm:$0xf]
      %v2145 = vld [vmem:[%s2140 + $0x10] sm:$0xf]
      %v2146 = vld [vmem:[%s2140 + $0x14] sm:$0xf]
      %v2147 = vld [vmem:[%s2140 + $0x18] sm:$0xf]
      %v2148 = vld [vmem:[%s2140 + $0x1c] sm:$0xf]
      %v2149 = vld [vmem:[%s2140 + $0x20] sm:$0xf]
      %v2150 = vld [vmem:[%s2140 + $0x24] sm:$0xf]
      %v2151 = vld [vmem:[%s2140 + $0x28] sm:$0xf]
      %v2152 = vld [vmem:[%s2140 + $0x2c] sm:$0xf]
      %v2153 = vld [vmem:[%s2140 + $0x30] sm:$0xf]
      %v2154 = vld [vmem:[%s2140 + $0x34] sm:$0xf]
      %v2155 = vld [vmem:[%s2140 + $0x38] sm:$0xf]
      %v2156 = vld [vmem:[%s2140 + $0x3c] sm:$0xf]
      %v2157 = vld [vmem:[%s2140 + $0x40] sm:$0xf]
      %v2158 = vld [vmem:[%s2140 + $0x44] sm:$0xf]
      %v2159 = vld [vmem:[%s2140 + $0x48] sm:$0xf]
      %v2160 = vld [vmem:[%s2140 + $0x4c] sm:$0xf]
      %v2161 = vld [vmem:[%s2140 + $0x50] sm:$0xf]
      %v2162 = vld [vmem:[%s2140 + $0x54] sm:$0xf]
      %v2163 = vld [vmem:[%s2140 + $0x58] sm:$0xf]
      %v2164 = vld [vmem:[%s2140 + $0x5c] sm:$0xf]
      %v2165 = vld [vmem:[%s2140 + $0x60] sm:$0xf]
      %v2166 = vld [vmem:[%s2140 + $0x64] sm:$0xf]
      %v2167 = vld [vmem:[%s2140 + $0x68] sm:$0xf]
      %v2168 = vld [vmem:[%s2140 + $0x6c] sm:$0xf]
      %v2169 = vld [vmem:[%s2140 + $0x70] sm:$0xf]
      %v2170 = vld [vmem:[%s2140 + $0x74] sm:$0xf]
      %v2171 = vld [vmem:[%s2140 + $0x78] sm:$0xf]
      %v2172 = vld [vmem:[%s2140 + $0x7c] sm:$0xf]
      %v2173 = vunpack.c.l.b16 %v2041
      %v2174 = vunpack.c.h.b16 %v2041
      %v2175 = vunpack.c.l.b16 %v2055
      %v2176 = vunpack.c.h.b16 %v2055
      %v2177 = vunpack.c.l.b16 %v2069
      %v2178 = vunpack.c.h.b16 %v2069
      %v2179 = vunpack.c.l.b16 %v2083
      %v2180 = vunpack.c.h.b16 %v2083
      %v2181 = vunpack.c.l.b16 %v2097
      %v2182 = vunpack.c.h.b16 %v2097
      %v2183 = vunpack.c.l.b16 %v2111
      %v2184 = vunpack.c.h.b16 %v2111
      %v2185 = vunpack.c.l.b16 %v2125
      %v2186 = vunpack.c.h.b16 %v2125
      %v2187 = vunpack.c.l.b16 %v2139
      %v2188 = vunpack.c.h.b16 %v2139
      %v2189 = vpack.c.b16 %v2175, %v2173
      %v2190 = vpack.c.b16 %v2176, %v2174
      %v2191 = vpack.c.b16 %v2179, %v2177
      %v2192 = vpack.c.b16 %v2180, %v2178
      %v2193 = vpack.c.b16 %v2183, %v2181
      %v2194 = vpack.c.b16 %v2184, %v2182
      %v2195 = vpack.c.b16 %v2187, %v2185
      %v2196 = vpack.c.b16 %v2188, %v2186
      %v2237 = vunpack.c.l.b16 %v2141
      %v2238 = vunpack.c.l.b16 %v2142
      %v2239 = vunpack.c.l.b16 %v2143
      %v2240 = vunpack.c.l.b16 %v2144
      %v2241 = vunpack.c.l.b16 %v2145
      %v2242 = vunpack.c.l.b16 %v2146
      %v2243 = vunpack.c.l.b16 %v2147
      %v2244 = vunpack.c.l.b16 %v2148
      %v2245 = vunpack.c.l.b16 %v2149
      %v2246 = vunpack.c.l.b16 %v2150
      %v2247 = vunpack.c.l.b16 %v2151
      %v2248 = vunpack.c.l.b16 %v2152
      %v2249 = vunpack.c.l.b16 %v2153
      %v2250 = vunpack.c.l.b16 %v2154
      %v2251 = vunpack.c.l.b16 %v2155
      %v2252 = vunpack.c.l.b16 %v2156
      %v2253 = vunpack.c.l.b16 %v2157
      %v2254 = vunpack.c.l.b16 %v2158
      %v2255 = vunpack.c.l.b16 %v2159
      %v2256 = vunpack.c.l.b16 %v2160
      %v2257 = vunpack.c.l.b16 %v2161
      %v2258 = vunpack.c.l.b16 %v2162
      %v2259 = vunpack.c.l.b16 %v2163
      %v2260 = vunpack.c.l.b16 %v2164
      %v2261 = vunpack.c.l.b16 %v2165
      %v2262 = vunpack.c.l.b16 %v2166
      %v2263 = vunpack.c.l.b16 %v2167
      %v2264 = vunpack.c.l.b16 %v2168
      %v2265 = vunpack.c.l.b16 %v2169
      %v2266 = vunpack.c.l.b16 %v2170
      %v2267 = vunpack.c.l.b16 %v2171
      %v2268 = vunpack.c.l.b16 %v2172
      %v2269 = vpack.c.b16 %v2238, %v2237
      %v2270 = vpack.c.b16 %v2240, %v2239
      %v2271 = vpack.c.b16 %v2242, %v2241
      %v2272 = vpack.c.b16 %v2244, %v2243
      %v2273 = vpack.c.b16 %v2246, %v2245
      %v2274 = vpack.c.b16 %v2248, %v2247
      %v2275 = vpack.c.b16 %v2250, %v2249
      %v2276 = vpack.c.b16 %v2252, %v2251
      %v2277 = vpack.c.b16 %v2254, %v2253
      %v2278 = vpack.c.b16 %v2256, %v2255
      %v2279 = vpack.c.b16 %v2258, %v2257
      %v2280 = vpack.c.b16 %v2260, %v2259
      %v2281 = vpack.c.b16 %v2262, %v2261
      %v2282 = vpack.c.b16 %v2264, %v2263
      %v2283 = vpack.c.b16 %v2266, %v2265
      %v2284 = vpack.c.b16 %v2268, %v2267
      %2301 = vmatprep.subr.bf16.mxu0 0
      %2302 = vmatpush1.bf16.msra.mxu0 %v2269
      %2303 = vmatprep.subr.bf16.mxu0 0
      %2304 = vmatpush1.bf16.msra.mxu0 %v2270
      %2305 = vmatprep.subr.bf16.mxu0 0
      %2306 = vmatpush1.bf16.msra.mxu0 %v2271
      %2307 = vmatprep.subr.bf16.mxu0 0
      %2308 = vmatpush1.bf16.msra.mxu0 %v2272
      %2309 = vmatprep.subr.bf16.mxu0 0
      %2310 = vmatpush1.bf16.msra.mxu0 %v2273
      %2311 = vmatprep.subr.bf16.mxu0 0
      %2312 = vmatpush1.bf16.msra.mxu0 %v2274
      %2313 = vmatprep.subr.bf16.mxu0 0
      %2314 = vmatpush1.bf16.msra.mxu0 %v2275
      %2315 = vmatprep.subr.bf16.mxu0 0
      %2316 = vmatpush1.bf16.msra.mxu0 %v2276
      %2317 = vmatprep.subr.bf16.mxu0 0
      %2318 = vmatpush1.bf16.msra.mxu0 %v2277
      %2319 = vmatprep.subr.bf16.mxu0 0
      %2320 = vmatpush1.bf16.msra.mxu0 %v2278
      %2321 = vmatprep.subr.bf16.mxu0 0
      %2322 = vmatpush1.bf16.msra.mxu0 %v2279
      %2323 = vmatprep.subr.bf16.mxu0 0
      %2324 = vmatpush1.bf16.msra.mxu0 %v2280
      %2325 = vmatprep.subr.bf16.mxu0 0
      %2326 = vmatpush1.bf16.msra.mxu0 %v2281
      %2327 = vmatprep.subr.bf16.mxu0 0
      %2328 = vmatpush1.bf16.msra.mxu0 %v2282
      %2329 = vmatprep.subr.bf16.mxu0 0
      %2330 = vmatpush1.bf16.msra.mxu0 %v2283
      %2331 = vmatprep.subr.bf16.mxu0 0
      %2332 = vmatpush1.bf16.msra.mxu0 %v2284
      %2333 = vmatprep.mubr.bf16.mxu0 %v2190
      %2334 = vmatmul.mubr.bf16.gmra.mrb[0].mxu0 %v2189
      %v2335 = vpop.f32.mrb[0].mxu0
      %v2336 = vadd.f32 0.0, %v2335
      %v2337 = vpop.f32.mrb[0].mxu0
      %v2338 = vpop.f32.mrb[0].mxu0
      %v2339 = vadd.f32 0.0, %v2338
      %v2340 = vpop.f32.mrb[0].mxu0
      %2341 = vmatprep.mubr.bf16.mxu0 %v2192
      %2342 = vmatmul.mubr.bf16.gmra.mrb[0].mxu0 %v2191
      %v2343 = vpop.f32.mrb[0].mxu0
      %v2344 = vadd.f32 0.0, %v2343
      %v2345 = vpop.f32.mrb[0].mxu0
      %v2346 = vpop.f32.mrb[0].mxu0
      %v2347 = vadd.f32 0.0, %v2346
      %v2348 = vpop.f32.mrb[0].mxu0
      %2349 = vmatprep.mubr.bf16.mxu0 %v2194
      %2350 = vmatmul.mubr.bf16.gmra.mrb[0].mxu0 %v2193
      %v2351 = vpop.f32.mrb[0].mxu0
      %v2352 = vadd.f32 0.0, %v2351
      %v2353 = vpop.f32.mrb[0].mxu0
      %v2354 = vpop.f32.mrb[0].mxu0
      %v2355 = vadd.f32 0.0, %v2354
      %v2356 = vpop.f32.mrb[0].mxu0
      %2357 = vmatprep.mubr.bf16.mxu0 %v2196
      %2358 = vmatmul.mubr.bf16.gmra.mrb[0].mxu0 %v2195
      %v2359 = vpop.f32.mrb[0].mxu0
      %v2360 = vadd.f32 0.0, %v2359
      %v2361 = vpop.f32.mrb[0].mxu0
      %v2362 = vpop.f32.mrb[0].mxu0
      %v2363 = vadd.f32 0.0, %v2362
      %v2364 = vpop.f32.mrb[0].mxu0
      %2365 = vdwg.mxu0
      %v2366 = vadd.f32 %v2004, %v2336
      %v2367 = vadd.f32 %v2005, %v2339
      %v2368 = vadd.f32 %v2006, %v2344
      %v2369 = vadd.f32 %v2007, %v2347
      %v2370 = vadd.f32 %v2008, %v2352
      %v2371 = vadd.f32 %v2009, %v2355
      %v2372 = vadd.f32 %v2010, %v2360
      %v2373 = vadd.f32 %v2011, %v2363
      %v2374 = vld [vmem:[%s1015] sm:$0xff]
      %v2375 = vld [vmem:[%s1015 + $0x10] sm:$0xff]
      %v2376 = vld [vmem:[%s1015 + $0x20] sm:$0xff]
      %v2377 = vld [vmem:[%s1015 + $0x30] sm:$0xff]
      %v2378 = vld [vmem:[%s1015 + $0x40] sm:$0xff]
      %v2379 = vld [vmem:[%s1015 + $0x50] sm:$0xff]
      %v2380 = vld [vmem:[%s1015 + $0x60] sm:$0xff]
      %v2381 = vld [vmem:[%s1015 + $0x70] sm:$0xff]
      %s2382 = scalar_lea.vmem %s2, 512
      %v2383 = vld [vmem:[%s2382] sm:$0xf]
      %v2384 = vld [vmem:[%s2382 + $0x4] sm:$0xf]
      %v2385 = vld [vmem:[%s2382 + $0x8] sm:$0xf]
      %v2386 = vld [vmem:[%s2382 + $0xc] sm:$0xf]
      %v2387 = vld [vmem:[%s2382 + $0x10] sm:$0xf]
      %v2388 = vld [vmem:[%s2382 + $0x14] sm:$0xf]
      %v2389 = vld [vmem:[%s2382 + $0x18] sm:$0xf]
      %v2390 = vld [vmem:[%s2382 + $0x1c] sm:$0xf]
      %v2391 = vld [vmem:[%s2382 + $0x20] sm:$0xf]
      %v2392 = vld [vmem:[%s2382 + $0x24] sm:$0xf]
      %v2393 = vld [vmem:[%s2382 + $0x28] sm:$0xf]
      %v2394 = vld [vmem:[%s2382 + $0x2c] sm:$0xf]
      %v2395 = vld [vmem:[%s2382 + $0x30] sm:$0xf]
      %v2396 = vld [vmem:[%s2382 + $0x34] sm:$0xf]
      %v2397 = vld [vmem:[%s2382 + $0x38] sm:$0xf]
      %v2398 = vld [vmem:[%s2382 + $0x3c] sm:$0xf]
      %v2399 = vld [vmem:[%s2382 + $0x40] sm:$0xf]
      %v2400 = vld [vmem:[%s2382 + $0x44] sm:$0xf]
      %v2401 = vld [vmem:[%s2382 + $0x48] sm:$0xf]
      %v2402 = vld [vmem:[%s2382 + $0x4c] sm:$0xf]
      %v2403 = vld [vmem:[%s2382 + $0x50] sm:$0xf]
      %v2404 = vld [vmem:[%s2382 + $0x54] sm:$0xf]
      %v2405 = vld [vmem:[%s2382 + $0x58] sm:$0xf]
      %v2406 = vld [vmem:[%s2382 + $0x5c] sm:$0xf]
      %v2407 = vld [vmem:[%s2382 + $0x60] sm:$0xf]
      %v2408 = vld [vmem:[%s2382 + $0x64] sm:$0xf]
      %v2409 = vld [vmem:[%s2382 + $0x68] sm:$0xf]
      %v2410 = vld [vmem:[%s2382 + $0x6c] sm:$0xf]
      %v2411 = vld [vmem:[%s2382 + $0x70] sm:$0xf]
      %v2412 = vld [vmem:[%s2382 + $0x74] sm:$0xf]
      %v2413 = vld [vmem:[%s2382 + $0x78] sm:$0xf]
      %v2414 = vld [vmem:[%s2382 + $0x7c] sm:$0xf]
      %v2423 = vunpack.c.l.b16 %v2374
      %v2424 = vunpack.c.h.b16 %v2374
      %v2425 = vunpack.c.l.b16 %v2375
      %v2426 = vunpack.c.h.b16 %v2375
      %v2427 = vunpack.c.l.b16 %v2376
      %v2428 = vunpack.c.h.b16 %v2376
      %v2429 = vunpack.c.l.b16 %v2377
      %v2430 = vunpack.c.h.b16 %v2377
      %v2431 = vunpack.c.l.b16 %v2378
      %v2432 = vunpack.c.h.b16 %v2378
      %v2433 = vunpack.c.l.b16 %v2379
      %v2434 = vunpack.c.h.b16 %v2379
      %v2435 = vunpack.c.l.b16 %v2380
      %v2436 = vunpack.c.h.b16 %v2380
      %v2437 = vunpack.c.l.b16 %v2381
      %v2438 = vunpack.c.h.b16 %v2381
      %v2439 = vpack.c.b16 %v2425, %v2423
      %v2440 = vpack.c.b16 %v2426, %v2424
      %v2441 = vpack.c.b16 %v2429, %v2427
      %v2442 = vpack.c.b16 %v2430, %v2428
      %v2443 = vpack.c.b16 %v2433, %v2431
      %v2444 = vpack.c.b16 %v2434, %v2432
      %v2445 = vpack.c.b16 %v2437, %v2435
      %v2446 = vpack.c.b16 %v2438, %v2436
      %v2487 = vunpack.c.l.b16 %v2383
      %v2488 = vunpack.c.l.b16 %v2384
      %v2489 = vunpack.c.l.b16 %v2385
      %v2490 = vunpack.c.l.b16 %v2386
      %v2491 = vunpack.c.l.b16 %v2387
      %v2492 = vunpack.c.l.b16 %v2388
      %v2493 = vunpack.c.l.b16 %v2389
      %v2494 = vunpack.c.l.b16 %v2390
      %v2495 = vunpack.c.l.b16 %v2391
      %v2496 = vunpack.c.l.b16 %v2392
      %v2497 = vunpack.c.l.b16 %v2393
      %v2498 = vunpack.c.l.b16 %v2394
      %v2499 = vunpack.c.l.b16 %v2395
      %v2500 = vunpack.c.l.b16 %v2396
      %v2501 = vunpack.c.l.b16 %v2397
      %v2502 = vunpack.c.l.b16 %v2398
      %v2503 = vunpack.c.l.b16 %v2399
      %v2504 = vunpack.c.l.b16 %v2400
      %v2505 = vunpack.c.l.b16 %v2401
      %v2506 = vunpack.c.l.b16 %v2402
      %v2507 = vunpack.c.l.b16 %v2403
      %v2508 = vunpack.c.l.b16 %v2404
      %v2509 = vunpack.c.l.b16 %v2405
      %v2510 = vunpack.c.l.b16 %v2406
      %v2511 = vunpack.c.l.b16 %v2407
      %v2512 = vunpack.c.l.b16 %v2408
      %v2513 = vunpack.c.l.b16 %v2409
      %v2514 = vunpack.c.l.b16 %v2410
      %v2515 = vunpack.c.l.b16 %v2411
      %v2516 = vunpack.c.l.b16 %v2412
      %v2517 = vunpack.c.l.b16 %v2413
      %v2518 = vunpack.c.l.b16 %v2414
      %v2519 = vpack.c.b16 %v2488, %v2487
      %v2520 = vpack.c.b16 %v2490, %v2489
      %v2521 = vpack.c.b16 %v2492, %v2491
      %v2522 = vpack.c.b16 %v2494, %v2493
      %v2523 = vpack.c.b16 %v2496, %v2495
      %v2524 = vpack.c.b16 %v2498, %v2497
      %v2525 = vpack.c.b16 %v2500, %v2499
      %v2526 = vpack.c.b16 %v2502, %v2501
      %v2527 = vpack.c.b16 %v2504, %v2503
      %v2528 = vpack.c.b16 %v2506, %v2505
      %v2529 = vpack.c.b16 %v2508, %v2507
      %v2530 = vpack.c.b16 %v2510, %v2509
      %v2531 = vpack.c.b16 %v2512, %v2511
      %v2532 = vpack.c.b16 %v2514, %v2513
      %v2533 = vpack.c.b16 %v2516, %v2515
      %v2534 = vpack.c.b16 %v2518, %v2517
      %2551 = vmatprep.subr.bf16.mxu0 0
      %2552 = vmatpush1.bf16.msra.mxu0 %v2519
      %2553 = vmatprep.subr.bf16.mxu0 0
      %2554 = vmatpush1.bf16.msra.mxu0 %v2520
      %2555 = vmatprep.subr.bf16.mxu0 0
      %2556 = vmatpush1.bf16.msra.mxu0 %v2521
      %2557 = vmatprep.subr.bf16.mxu0 0
      %2558 = vmatpush1.bf16.msra.mxu0 %v2522
      %2559 = vmatprep.subr.bf16.mxu0 0
      %2560 = vmatpush1.bf16.msra.mxu0 %v2523
      %2561 = vmatprep.subr.bf16.mxu0 0
      %2562 = vmatpush1.bf16.msra.mxu0 %v2524
      %2563 = vmatprep.subr.bf16.mxu0 0
      %2564 = vmatpush1.bf16.msra.mxu0 %v2525
      %2565 = vmatprep.subr.bf16.mxu0 0
      %2566 = vmatpush1.bf16.msra.mxu0 %v2526
      %2567 = vmatprep.subr.bf16.mxu0 0
      %2568 = vmatpush1.bf16.msra.mxu0 %v2527
      %2569 = vmatprep.subr.bf16.mxu0 0
      %2570 = vmatpush1.bf16.msra.mxu0 %v2528
      %2571 = vmatprep.subr.bf16.mxu0 0
      %2572 = vmatpush1.bf16.msra.mxu0 %v2529
      %2573 = vmatprep.subr.bf16.mxu0 0
      %2574 = vmatpush1.bf16.msra.mxu0 %v2530
      %2575 = vmatprep.subr.bf16.mxu0 0
      %2576 = vmatpush1.bf16.msra.mxu0 %v2531
      %2577 = vmatprep.subr.bf16.mxu0 0
      %2578 = vmatpush1.bf16.msra.mxu0 %v2532
      %2579 = vmatprep.subr.bf16.mxu0 0
      %2580 = vmatpush1.bf16.msra.mxu0 %v2533
      %2581 = vmatprep.subr.bf16.mxu0 0
      %2582 = vmatpush1.bf16.msra.mxu0 %v2534
      %2583 = vmatprep.mubr.bf16.mxu0 %v2440
      %2584 = vmatmul.mubr.bf16.gmra.mrb[0].mxu0 %v2439
      %v2585 = vpop.f32.mrb[0].mxu0
      %v2586 = vadd.f32 0.0, %v2585
      %v2587 = vpop.f32.mrb[0].mxu0
      %v2588 = vpop.f32.mrb[0].mxu0
      %v2589 = vadd.f32 0.0, %v2588
      %v2590 = vpop.f32.mrb[0].mxu0
      %2591 = vmatprep.mubr.bf16.mxu0 %v2442
      %2592 = vmatmul.mubr.bf16.gmra.mrb[0].mxu0 %v2441
      %v2593 = vpop.f32.mrb[0].mxu0
      %v2594 = vadd.f32 0.0, %v2593
      %v2595 = vpop.f32.mrb[0].mxu0
      %v2596 = vpop.f32.mrb[0].mxu0
      %v2597 = vadd.f32 0.0, %v2596
      %v2598 = vpop.f32.mrb[0].mxu0
      %2599 = vmatprep.mubr.bf16.mxu0 %v2444
      %2600 = vmatmul.mubr.bf16.gmra.mrb[0].mxu0 %v2443
      %v2601 = vpop.f32.mrb[0].mxu0
      %v2602 = vadd.f32 0.0, %v2601
      %v2603 = vpop.f32.mrb[0].mxu0
      %v2604 = vpop.f32.mrb[0].mxu0
      %v2605 = vadd.f32 0.0, %v2604
      %v2606 = vpop.f32.mrb[0].mxu0
      %2607 = vmatprep.mubr.bf16.mxu0 %v2446
      %2608 = vmatmul.mubr.bf16.gmra.mrb[0].mxu0 %v2445
      %v2609 = vpop.f32.mrb[0].mxu0
      %v2610 = vadd.f32 0.0, %v2609
      %v2611 = vpop.f32.mrb[0].mxu0
      %v2612 = vpop.f32.mrb[0].mxu0
      %v2613 = vadd.f32 0.0, %v2612
      %v2614 = vpop.f32.mrb[0].mxu0
      %2615 = vdwg.mxu0
      %v2616 = vadd.f32 %v2366, %v2586
      %v2617 = vadd.f32 %v2367, %v2589
      %v2618 = vadd.f32 %v2368, %v2594
      %v2619 = vadd.f32 %v2369, %v2597
      %v2620 = vadd.f32 %v2370, %v2602
      %v2621 = vadd.f32 %v2371, %v2605
      %v2622 = vadd.f32 %v2372, %v2610
      %v2623 = vadd.f32 %v2373, %v2613
      %v2624 = vld [vmem:[%s1015] sm:$0xff]
      %v2625 = vld [vmem:[%s1015 + $0x8] sm:$0x11]
      %v2626 = vld [vmem:[%s1015 + $0x10] sm:$0xff]
      %v2627 = vld [vmem:[%s1015 + $0x18] sm:$0x11]
      %v2628 = vld [vmem:[%s1015 + $0x20] sm:$0xff]
      %v2629 = vld [vmem:[%s1015 + $0x28] sm:$0x11]
      %v2630 = vld [vmem:[%s1015 + $0x30] sm:$0xff]
      %v2631 = vld [vmem:[%s1015 + $0x38] sm:$0x11]
      %v2632 = vld [vmem:[%s1015 + $0x40] sm:$0xff]
      %v2633 = vld [vmem:[%s1015 + $0x48] sm:$0x11]
      %v2634 = vld [vmem:[%s1015 + $0x50] sm:$0xff]
      %v2635 = vld [vmem:[%s1015 + $0x58] sm:$0x11]
      %v2636 = vld [vmem:[%s1015 + $0x60] sm:$0xff]
      %v2637 = vld [vmem:[%s1015 + $0x68] sm:$0x11]
      %v2638 = vld [vmem:[%s1015 + $0x70] sm:$0xff]
      %v2639 = vld [vmem:[%s1015 + $0x78] sm:$0x11]
      %v2641 = vshrl.u32 %v2624, 16
      %v2643 = vrot.slane %v2641, 4
      %v2644 = vshll.u32 %v2624, 16
      %v2646 = vrot.slane %v2644, 5
      %v2647 = vor.u32 %v2643, %v2646
      %v2648 = vrot.slane %v2647, 4
      %v2650 = vshll.u32 %v2625, 16
      %v2652 = vrot.slane %v2650, 5
      %v2653 = vsel %vm1222, %v2648, %v2652
      %v2655 = vshrl.u32 %v2626, 16
      %v2657 = vrot.slane %v2655, 4
      %v2658 = vshll.u32 %v2626, 16
      %v2660 = vrot.slane %v2658, 5
      %v2661 = vor.u32 %v2657, %v2660
      %v2662 = vrot.slane %v2661, 4
      %v2664 = vshll.u32 %v2627, 16
      %v2666 = vrot.slane %v2664, 5
      %v2667 = vsel %vm1222, %v2662, %v2666
      %v2669 = vshrl.u32 %v2628, 16
      %v2671 = vrot.slane %v2669, 4
      %v2672 = vshll.u32 %v2628, 16
      %v2674 = vrot.slane %v2672, 5
      %v2675 = vor.u32 %v2671, %v2674
      %v2676 = vrot.slane %v2675, 4
      %v2678 = vshll.u32 %v2629, 16
      %v2680 = vrot.slane %v2678, 5
      %v2681 = vsel %vm1222, %v2676, %v2680
      %v2683 = vshrl.u32 %v2630, 16
      %v2685 = vrot.slane %v2683, 4
      %v2686 = vshll.u32 %v2630, 16
      %v2688 = vrot.slane %v2686, 5
      %v2689 = vor.u32 %v2685, %v2688
      %v2690 = vrot.slane %v2689, 4
      %v2692 = vshll.u32 %v2631, 16
      %v2694 = vrot.slane %v2692, 5
      %v2695 = vsel %vm1222, %v2690, %v2694
      %v2697 = vshrl.u32 %v2632, 16
      %v2699 = vrot.slane %v2697, 4
      %v2700 = vshll.u32 %v2632, 16
      %v2702 = vrot.slane %v2700, 5
      %v2703 = vor.u32 %v2699, %v2702
      %v2704 = vrot.slane %v2703, 4
      %v2706 = vshll.u32 %v2633, 16
      %v2708 = vrot.slane %v2706, 5
      %v2709 = vsel %vm1222, %v2704, %v2708
      %v2711 = vshrl.u32 %v2634, 16
      %v2713 = vrot.slane %v2711, 4
      %v2714 = vshll.u32 %v2634, 16
      %v2716 = vrot.slane %v2714, 5
      %v2717 = vor.u32 %v2713, %v2716
      %v2718 = vrot.slane %v2717, 4
      %v2720 = vshll.u32 %v2635, 16
      %v2722 = vrot.slane %v2720, 5
      %v2723 = vsel %vm1222, %v2718, %v2722
      %v2725 = vshrl.u32 %v2636, 16
      %v2727 = vrot.slane %v2725, 4
      %v2728 = vshll.u32 %v2636, 16
      %v2730 = vrot.slane %v2728, 5
      %v2731 = vor.u32 %v2727, %v2730
      %v2732 = vrot.slane %v2731, 4
      %v2734 = vshll.u32 %v2637, 16
      %v2736 = vrot.slane %v2734, 5
      %v2737 = vsel %vm1222, %v2732, %v2736
      %v2739 = vshrl.u32 %v2638, 16
      %v2741 = vrot.slane %v2739, 4
      %v2742 = vshll.u32 %v2638, 16
      %v2744 = vrot.slane %v2742, 5
      %v2745 = vor.u32 %v2741, %v2744
      %v2746 = vrot.slane %v2745, 4
      %v2748 = vshll.u32 %v2639, 16
      %v2750 = vrot.slane %v2748, 5
      %v2751 = vsel %vm1222, %v2746, %v2750
      %s2752 = scalar_lea.vmem %s2, 640
      %v2753 = vld [vmem:[%s2752] sm:$0xf]
      %v2754 = vld [vmem:[%s2752 + $0x4] sm:$0xf]
      %v2755 = vld [vmem:[%s2752 + $0x8] sm:$0xf]
      %v2756 = vld [vmem:[%s2752 + $0xc] sm:$0xf]
      %v2757 = vld [vmem:[%s2752 + $0x10] sm:$0xf]
      %v2758 = vld [vmem:[%s2752 + $0x14] sm:$0xf]
      %v2759 = vld [vmem:[%s2752 + $0x18] sm:$0xf]
      %v2760 = vld [vmem:[%s2752 + $0x1c] sm:$0xf]
      %v2761 = vld [vmem:[%s2752 + $0x20] sm:$0xf]
      %v2762 = vld [vmem:[%s2752 + $0x24] sm:$0xf]
      %v2763 = vld [vmem:[%s2752 + $0x28] sm:$0xf]
      %v2764 = vld [vmem:[%s2752 + $0x2c] sm:$0xf]
      %v2765 = vld [vmem:[%s2752 + $0x30] sm:$0xf]
      %v2766 = vld [vmem:[%s2752 + $0x34] sm:$0xf]
      %v2767 = vld [vmem:[%s2752 + $0x38] sm:$0xf]
      %v2768 = vld [vmem:[%s2752 + $0x3c] sm:$0xf]
      %v2769 = vld [vmem:[%s2752 + $0x40] sm:$0xf]
      %v2770 = vld [vmem:[%s2752 + $0x44] sm:$0xf]
      %v2771 = vld [vmem:[%s2752 + $0x48] sm:$0xf]
      %v2772 = vld [vmem:[%s2752 + $0x4c] sm:$0xf]
      %v2773 = vld [vmem:[%s2752 + $0x50] sm:$0xf]
      %v2774 = vld [vmem:[%s2752 + $0x54] sm:$0xf]
      %v2775 = vld [vmem:[%s2752 + $0x58] sm:$0xf]
      %v2776 = vld [vmem:[%s2752 + $0x5c] sm:$0xf]
      %v2777 = vld [vmem:[%s2752 + $0x60] sm:$0xf]
      %v2778 = vld [vmem:[%s2752 + $0x64] sm:$0xf]
      %v2779 = vld [vmem:[%s2752 + $0x68] sm:$0xf]
      %v2780 = vld [vmem:[%s2752 + $0x6c] sm:$0xf]
      %v2781 = vld [vmem:[%s2752 + $0x70] sm:$0xf]
      %v2782 = vld [vmem:[%s2752 + $0x74] sm:$0xf]
      %v2783 = vld [vmem:[%s2752 + $0x78] sm:$0xf]
      %v2784 = vld [vmem:[%s2752 + $0x7c] sm:$0xf]
      %v2785 = vunpack.c.l.b16 %v2653
      %v2786 = vunpack.c.h.b16 %v2653
      %v2787 = vunpack.c.l.b16 %v2667
      %v2788 = vunpack.c.h.b16 %v2667
      %v2789 = vunpack.c.l.b16 %v2681
      %v2790 = vunpack.c.h.b16 %v2681
      %v2791 = vunpack.c.l.b16 %v2695
      %v2792 = vunpack.c.h.b16 %v2695
      %v2793 = vunpack.c.l.b16 %v2709
      %v2794 = vunpack.c.h.b16 %v2709
      %v2795 = vunpack.c.l.b16 %v2723
      %v2796 = vunpack.c.h.b16 %v2723
      %v2797 = vunpack.c.l.b16 %v2737
      %v2798 = vunpack.c.h.b16 %v2737
      %v2799 = vunpack.c.l.b16 %v2751
      %v2800 = vunpack.c.h.b16 %v2751
      %v2801 = vpack.c.b16 %v2787, %v2785
      %v2802 = vpack.c.b16 %v2788, %v2786
      %v2803 = vpack.c.b16 %v2791, %v2789
      %v2804 = vpack.c.b16 %v2792, %v2790
      %v2805 = vpack.c.b16 %v2795, %v2793
      %v2806 = vpack.c.b16 %v2796, %v2794
      %v2807 = vpack.c.b16 %v2799, %v2797
      %v2808 = vpack.c.b16 %v2800, %v2798
      %v2849 = vunpack.c.l.b16 %v2753
      %v2850 = vunpack.c.l.b16 %v2754
      %v2851 = vunpack.c.l.b16 %v2755
      %v2852 = vunpack.c.l.b16 %v2756
      %v2853 = vunpack.c.l.b16 %v2757
      %v2854 = vunpack.c.l.b16 %v2758
      %v2855 = vunpack.c.l.b16 %v2759
      %v2856 = vunpack.c.l.b16 %v2760
      %v2857 = vunpack.c.l.b16 %v2761
      %v2858 = vunpack.c.l.b16 %v2762
      %v2859 = vunpack.c.l.b16 %v2763
      %v2860 = vunpack.c.l.b16 %v2764
      %v2861 = vunpack.c.l.b16 %v2765
      %v2862 = vunpack.c.l.b16 %v2766
      %v2863 = vunpack.c.l.b16 %v2767
      %v2864 = vunpack.c.l.b16 %v2768
      %v2865 = vunpack.c.l.b16 %v2769
      %v2866 = vunpack.c.l.b16 %v2770
      %v2867 = vunpack.c.l.b16 %v2771
      %v2868 = vunpack.c.l.b16 %v2772
      %v2869 = vunpack.c.l.b16 %v2773
      %v2870 = vunpack.c.l.b16 %v2774
      %v2871 = vunpack.c.l.b16 %v2775
      %v2872 = vunpack.c.l.b16 %v2776
      %v2873 = vunpack.c.l.b16 %v2777
      %v2874 = vunpack.c.l.b16 %v2778
      %v2875 = vunpack.c.l.b16 %v2779
      %v2876 = vunpack.c.l.b16 %v2780
      %v2877 = vunpack.c.l.b16 %v2781
      %v2878 = vunpack.c.l.b16 %v2782
      %v2879 = vunpack.c.l.b16 %v2783
      %v2880 = vunpack.c.l.b16 %v2784
      %v2881 = vpack.c.b16 %v2850, %v2849
      %v2882 = vpack.c.b16 %v2852, %v2851
      %v2883 = vpack.c.b16 %v2854, %v2853
      %v2884 = vpack.c.b16 %v2856, %v2855
      %v2885 = vpack.c.b16 %v2858, %v2857
      %v2886 = vpack.c.b16 %v2860, %v2859
      %v2887 = vpack.c.b16 %v2862, %v2861
      %v2888 = vpack.c.b16 %v2864, %v2863
      %v2889 = vpack.c.b16 %v2866, %v2865
      %v2890 = vpack.c.b16 %v2868, %v2867
      %v2891 = vpack.c.b16 %v2870, %v2869
      %v2892 = vpack.c.b16 %v2872, %v2871
      %v2893 = vpack.c.b16 %v2874, %v2873
      %v2894 = vpack.c.b16 %v2876, %v2875
      %v2895 = vpack.c.b16 %v2878, %v2877
      %v2896 = vpack.c.b16 %v2880, %v2879
      %2913 = vmatprep.subr.bf16.mxu0 0
      %2914 = vmatpush1.bf16.msra.mxu0 %v2881
      %2915 = vmatprep.subr.bf16.mxu0 0
      %2916 = vmatpush1.bf16.msra.mxu0 %v2882
      %2917 = vmatprep.subr.bf16.mxu0 0
      %2918 = vmatpush1.bf16.msra.mxu0 %v2883
      %2919 = vmatprep.subr.bf16.mxu0 0
      %2920 = vmatpush1.bf16.msra.mxu0 %v2884
      %2921 = vmatprep.subr.bf16.mxu0 0
      %2922 = vmatpush1.bf16.msra.mxu0 %v2885
      %2923 = vmatprep.subr.bf16.mxu0 0
      %2924 = vmatpush1.bf16.msra.mxu0 %v2886
      %2925 = vmatprep.subr.bf16.mxu0 0
      %2926 = vmatpush1.bf16.msra.mxu0 %v2887
      %2927 = vmatprep.subr.bf16.mxu0 0
      %2928 = vmatpush1.bf16.msra.mxu0 %v2888
      %2929 = vmatprep.subr.bf16.mxu0 0
      %2930 = vmatpush1.bf16.msra.mxu0 %v2889
      %2931 = vmatprep.subr.bf16.mxu0 0
      %2932 = vmatpush1.bf16.msra.mxu0 %v2890
      %2933 = vmatprep.subr.bf16.mxu0 0
      %2934 = vmatpush1.bf16.msra.mxu0 %v2891
      %2935 = vmatprep.subr.bf16.mxu0 0
      %2936 = vmatpush1.bf16.msra.mxu0 %v2892
      %2937 = vmatprep.subr.bf16.mxu0 0
      %2938 = vmatpush1.bf16.msra.mxu0 %v2893
      %2939 = vmatprep.subr.bf16.mxu0 0
      %2940 = vmatpush1.bf16.msra.mxu0 %v2894
      %2941 = vmatprep.subr.bf16.mxu0 0
      %2942 = vmatpush1.bf16.msra.mxu0 %v2895
      %2943 = vmatprep.subr.bf16.mxu0 0
      %2944 = vmatpush1.bf16.msra.mxu0 %v2896
      %2945 = vmatprep.mubr.bf16.mxu0 %v2802
      %2946 = vmatmul.mubr.bf16.gmra.mrb[0].mxu0 %v2801
      %v2947 = vpop.f32.mrb[0].mxu0
      %v2948 = vadd.f32 0.0, %v2947
      %v2949 = vpop.f32.mrb[0].mxu0
      %v2950 = vpop.f32.mrb[0].mxu0
      %v2951 = vadd.f32 0.0, %v2950
      %v2952 = vpop.f32.mrb[0].mxu0
      %2953 = vmatprep.mubr.bf16.mxu0 %v2804
      %2954 = vmatmul.mubr.bf16.gmra.mrb[0].mxu0 %v2803
      %v2955 = vpop.f32.mrb[0].mxu0
      %v2956 = vadd.f32 0.0, %v2955
      %v2957 = vpop.f32.mrb[0].mxu0
      %v2958 = vpop.f32.mrb[0].mxu0
      %v2959 = vadd.f32 0.0, %v2958
      %v2960 = vpop.f32.mrb[0].mxu0
      %2961 = vmatprep.mubr.bf16.mxu0 %v2806
      %2962 = vmatmul.mubr.bf16.gmra.mrb[0].mxu0 %v2805
      %v2963 = vpop.f32.mrb[0].mxu0
      %v2964 = vadd.f32 0.0, %v2963
      %v2965 = vpop.f32.mrb[0].mxu0
      %v2966 = vpop.f32.mrb[0].mxu0
      %v2967 = vadd.f32 0.0, %v2966
      %v2968 = vpop.f32.mrb[0].mxu0
      %2969 = vmatprep.mubr.bf16.mxu0 %v2808
      %2970 = vmatmul.mubr.bf16.gmra.mrb[0].mxu0 %v2807
      %v2971 = vpop.f32.mrb[0].mxu0
      %v2972 = vadd.f32 0.0, %v2971
      %v2973 = vpop.f32.mrb[0].mxu0
      %v2974 = vpop.f32.mrb[0].mxu0
      %v2975 = vadd.f32 0.0, %v2974
      %v2976 = vpop.f32.mrb[0].mxu0
      %2977 = vdwg.mxu0
      %v2978 = vadd.f32 %v2616, %v2948
      %v2979 = vadd.f32 %v2617, %v2951
      %v2980 = vadd.f32 %v2618, %v2956
      %v2981 = vadd.f32 %v2619, %v2959
      %v2982 = vadd.f32 %v2620, %v2964
      %v2983 = vadd.f32 %v2621, %v2967
      %v2984 = vadd.f32 %v2622, %v2972
      %v2985 = vadd.f32 %v2623, %v2975
      %s2986 = scalar_lea.vmem [#allocation2], 160
      %v2987 = vld [vmem:[%s2986] sm:$0xff]
      %v2988 = vld [vmem:[%s2986 + $0x10] sm:$0xff]
      %v2989 = vld [vmem:[%s2986 + $0x20] sm:$0xff]
      %v2990 = vld [vmem:[%s2986 + $0x30] sm:$0xff]
      %v2991 = vld [vmem:[%s2986 + $0x40] sm:$0xff]
      %v2992 = vld [vmem:[%s2986 + $0x50] sm:$0xff]
      %v2993 = vld [vmem:[%s2986 + $0x60] sm:$0xff]
      %v2994 = vld [vmem:[%s2986 + $0x70] sm:$0xff]
      %s2995 = scalar_lea.vmem %s2, 768
      %v2996 = vld [vmem:[%s2995] sm:$0xf]
      %v2997 = vld [vmem:[%s2995 + $0x4] sm:$0xf]
      %v2998 = vld [vmem:[%s2995 + $0x8] sm:$0xf]
      %v2999 = vld [vmem:[%s2995 + $0xc] sm:$0xf]
      %v3000 = vld [vmem:[%s2995 + $0x10] sm:$0xf]
      %v3001 = vld [vmem:[%s2995 + $0x14] sm:$0xf]
      %v3002 = vld [vmem:[%s2995 + $0x18] sm:$0xf]
      %v3003 = vld [vmem:[%s2995 + $0x1c] sm:$0xf]
      %v3004 = vld [vmem:[%s2995 + $0x20] sm:$0xf]
      %v3005 = vld [vmem:[%s2995 + $0x24] sm:$0xf]
      %v3006 = vld [vmem:[%s2995 + $0x28] sm:$0xf]
      %v3007 = vld [vmem:[%s2995 + $0x2c] sm:$0xf]
      %v3008 = vld [vmem:[%s2995 + $0x30] sm:$0xf]
      %v3009 = vld [vmem:[%s2995 + $0x34] sm:$0xf]
      %v3010 = vld [vmem:[%s2995 + $0x38] sm:$0xf]
      %v3011 = vld [vmem:[%s2995 + $0x3c] sm:$0xf]
      %v3012 = vld [vmem:[%s2995 + $0x40] sm:$0xf]
      %v3013 = vld [vmem:[%s2995 + $0x44] sm:$0xf]
      %v3014 = vld [vmem:[%s2995 + $0x48] sm:$0xf]
      %v3015 = vld [vmem:[%s2995 + $0x4c] sm:$0xf]
      %v3016 = vld [vmem:[%s2995 + $0x50] sm:$0xf]
      %v3017 = vld [vmem:[%s2995 + $0x54] sm:$0xf]
      %v3018 = vld [vmem:[%s2995 + $0x58] sm:$0xf]
      %v3019 = vld [vmem:[%s2995 + $0x5c] sm:$0xf]
      %v3020 = vld [vmem:[%s2995 + $0x60] sm:$0xf]
      %v3021 = vld [vmem:[%s2995 + $0x64] sm:$0xf]
      %v3022 = vld [vmem:[%s2995 + $0x68] sm:$0xf]
      %v3023 = vld [vmem:[%s2995 + $0x6c] sm:$0xf]
      %v3024 = vld [vmem:[%s2995 + $0x70] sm:$0xf]
      %v3025 = vld [vmem:[%s2995 + $0x74] sm:$0xf]
      %v3026 = vld [vmem:[%s2995 + $0x78] sm:$0xf]
      %v3027 = vld [vmem:[%s2995 + $0x7c] sm:$0xf]
      %v3036 = vunpack.c.l.b16 %v2987
      %v3037 = vunpack.c.h.b16 %v2987
      %v3038 = vunpack.c.l.b16 %v2988
      %v3039 = vunpack.c.h.b16 %v2988
      %v3040 = vunpack.c.l.b16 %v2989
      %v3041 = vunpack.c.h.b16 %v2989
      %v3042 = vunpack.c.l.b16 %v2990
      %v3043 = vunpack.c.h.b16 %v2990
      %v3044 = vunpack.c.l.b16 %v2991
      %v3045 = vunpack.c.h.b16 %v2991
      %v3046 = vunpack.c.l.b16 %v2992
      %v3047 = vunpack.c.h.b16 %v2992
      %v3048 = vunpack.c.l.b16 %v2993
      %v3049 = vunpack.c.h.b16 %v2993
      %v3050 = vunpack.c.l.b16 %v2994
      %v3051 = vunpack.c.h.b16 %v2994
      %v3052 = vpack.c.b16 %v3038, %v3036
      %v3053 = vpack.c.b16 %v3039, %v3037
      %v3054 = vpack.c.b16 %v3042, %v3040
      %v3055 = vpack.c.b16 %v3043, %v3041
      %v3056 = vpack.c.b16 %v3046, %v3044
      %v3057 = vpack.c.b16 %v3047, %v3045
      %v3058 = vpack.c.b16 %v3050, %v3048
      %v3059 = vpack.c.b16 %v3051, %v3049
      %v3100 = vunpack.c.l.b16 %v2996
      %v3101 = vunpack.c.l.b16 %v2997
      %v3102 = vunpack.c.l.b16 %v2998
      %v3103 = vunpack.c.l.b16 %v2999
      %v3104 = vunpack.c.l.b16 %v3000
      %v3105 = vunpack.c.l.b16 %v3001
      %v3106 = vunpack.c.l.b16 %v3002
      %v3107 = vunpack.c.l.b16 %v3003
      %v3108 = vunpack.c.l.b16 %v3004
      %v3109 = vunpack.c.l.b16 %v3005
      %v3110 = vunpack.c.l.b16 %v3006
      %v3111 = vunpack.c.l.b16 %v3007
      %v3112 = vunpack.c.l.b16 %v3008
      %v3113 = vunpack.c.l.b16 %v3009
      %v3114 = vunpack.c.l.b16 %v3010
      %v3115 = vunpack.c.l.b16 %v3011
      %v3116 = vunpack.c.l.b16 %v3012
      %v3117 = vunpack.c.l.b16 %v3013
      %v3118 = vunpack.c.l.b16 %v3014
      %v3119 = vunpack.c.l.b16 %v3015
      %v3120 = vunpack.c.l.b16 %v3016
      %v3121 = vunpack.c.l.b16 %v3017
      %v3122 = vunpack.c.l.b16 %v3018
      %v3123 = vunpack.c.l.b16 %v3019
      %v3124 = vunpack.c.l.b16 %v3020
      %v3125 = vunpack.c.l.b16 %v3021
      %v3126 = vunpack.c.l.b16 %v3022
      %v3127 = vunpack.c.l.b16 %v3023
      %v3128 = vunpack.c.l.b16 %v3024
      %v3129 = vunpack.c.l.b16 %v3025
      %v3130 = vunpack.c.l.b16 %v3026
      %v3131 = vunpack.c.l.b16 %v3027
      %v3132 = vpack.c.b16 %v3101, %v3100
      %v3133 = vpack.c.b16 %v3103, %v3102
      %v3134 = vpack.c.b16 %v3105, %v3104
      %v3135 = vpack.c.b16 %v3107, %v3106
      %v3136 = vpack.c.b16 %v3109, %v3108
      %v3137 = vpack.c.b16 %v3111, %v3110
      %v3138 = vpack.c.b16 %v3113, %v3112
      %v3139 = vpack.c.b16 %v3115, %v3114
      %v3140 = vpack.c.b16 %v3117, %v3116
      %v3141 = vpack.c.b16 %v3119, %v3118
      %v3142 = vpack.c.b16 %v3121, %v3120
      %v3143 = vpack.c.b16 %v3123, %v3122
      %v3144 = vpack.c.b16 %v3125, %v3124
      %v3145 = vpack.c.b16 %v3127, %v3126
      %v3146 = vpack.c.b16 %v3129, %v3128
      %v3147 = vpack.c.b16 %v3131, %v3130
      %3164 = vmatprep.subr.bf16.mxu0 0
      %3165 = vmatpush1.bf16.msra.mxu0 %v3132
      %3166 = vmatprep.subr.bf16.mxu0 0
      %3167 = vmatpush1.bf16.msra.mxu0 %v3133
      %3168 = vmatprep.subr.bf16.mxu0 0
      %3169 = vmatpush1.bf16.msra.mxu0 %v3134
      %3170 = vmatprep.subr.bf16.mxu0 0
      %3171 = vmatpush1.bf16.msra.mxu0 %v3135
      %3172 = vmatprep.subr.bf16.mxu0 0
      %3173 = vmatpush1.bf16.msra.mxu0 %v3136
      %3174 = vmatprep.subr.bf16.mxu0 0
      %3175 = vmatpush1.bf16.msra.mxu0 %v3137
      %3176 = vmatprep.subr.bf16.mxu0 0
      %3177 = vmatpush1.bf16.msra.mxu0 %v3138
      %3178 = vmatprep.subr.bf16.mxu0 0
      %3179 = vmatpush1.bf16.msra.mxu0 %v3139
      %3180 = vmatprep.subr.bf16.mxu0 0
      %3181 = vmatpush1.bf16.msra.mxu0 %v3140
      %3182 = vmatprep.subr.bf16.mxu0 0
      %3183 = vmatpush1.bf16.msra.mxu0 %v3141
      %3184 = vmatprep.subr.bf16.mxu0 0
      %3185 = vmatpush1.bf16.msra.mxu0 %v3142
      %3186 = vmatprep.subr.bf16.mxu0 0
      %3187 = vmatpush1.bf16.msra.mxu0 %v3143
      %3188 = vmatprep.subr.bf16.mxu0 0
      %3189 = vmatpush1.bf16.msra.mxu0 %v3144
      %3190 = vmatprep.subr.bf16.mxu0 0
      %3191 = vmatpush1.bf16.msra.mxu0 %v3145
      %3192 = vmatprep.subr.bf16.mxu0 0
      %3193 = vmatpush1.bf16.msra.mxu0 %v3146
      %3194 = vmatprep.subr.bf16.mxu0 0
      %3195 = vmatpush1.bf16.msra.mxu0 %v3147
      %3196 = vmatprep.mubr.bf16.mxu0 %v3053
      %3197 = vmatmul.mubr.bf16.gmra.mrb[0].mxu0 %v3052
      %v3198 = vpop.f32.mrb[0].mxu0
      %v3199 = vadd.f32 0.0, %v3198
      %v3200 = vpop.f32.mrb[0].mxu0
      %v3201 = vpop.f32.mrb[0].mxu0
      %v3202 = vadd.f32 0.0, %v3201
      %v3203 = vpop.f32.mrb[0].mxu0
      %3204 = vmatprep.mubr.bf16.mxu0 %v3055
      %3205 = vmatmul.mubr.bf16.gmra.mrb[0].mxu0 %v3054
      %v3206 = vpop.f32.mrb[0].mxu0
      %v3207 = vadd.f32 0.0, %v3206
      %v3208 = vpop.f32.mrb[0].mxu0
      %v3209 = vpop.f32.mrb[0].mxu0
      %v3210 = vadd.f32 0.0, %v3209
      %v3211 = vpop.f32.mrb[0].mxu0
      %3212 = vmatprep.mubr.bf16.mxu0 %v3057
      %3213 = vmatmul.mubr.bf16.gmra.mrb[0].mxu0 %v3056
      %v3214 = vpop.f32.mrb[0].mxu0
      %v3215 = vadd.f32 0.0, %v3214
      %v3216 = vpop.f32.mrb[0].mxu0
      %v3217 = vpop.f32.mrb[0].mxu0
      %v3218 = vadd.f32 0.0, %v3217
      %v3219 = vpop.f32.mrb[0].mxu0
      %3220 = vmatprep.mubr.bf16.mxu0 %v3059
      %3221 = vmatmul.mubr.bf16.gmra.mrb[0].mxu0 %v3058
      %v3222 = vpop.f32.mrb[0].mxu0
      %v3223 = vadd.f32 0.0, %v3222
      %v3224 = vpop.f32.mrb[0].mxu0
      %v3225 = vpop.f32.mrb[0].mxu0
      %v3226 = vadd.f32 0.0, %v3225
      %v3227 = vpop.f32.mrb[0].mxu0
      %3228 = vdwg.mxu0
      %v3229 = vadd.f32 %v2978, %v3199
      %v3230 = vadd.f32 %v2979, %v3202
      %v3231 = vadd.f32 %v2980, %v3207
      %v3232 = vadd.f32 %v2981, %v3210
      %v3233 = vadd.f32 %v2982, %v3215
      %v3234 = vadd.f32 %v2983, %v3218
      %v3235 = vadd.f32 %v2984, %v3223
      %v3236 = vadd.f32 %v2985, %v3226
      %v3237 = vld [vmem:[%s2986] sm:$0xff]
      %v3238 = vld [vmem:[%s2986 + $0x8] sm:$0x11]
      %v3239 = vld [vmem:[%s2986 + $0x10] sm:$0xff]
      %v3240 = vld [vmem:[%s2986 + $0x18] sm:$0x11]
      %v3241 = vld [vmem:[%s2986 + $0x20] sm:$0xff]
      %v3242 = vld [vmem:[%s2986 + $0x28] sm:$0x11]
      %v3243 = vld [vmem:[%s2986 + $0x30] sm:$0xff]
      %v3244 = vld [vmem:[%s2986 + $0x38] sm:$0x11]
      %v3245 = vld [vmem:[%s2986 + $0x40] sm:$0xff]
      %v3246 = vld [vmem:[%s2986 + $0x48] sm:$0x11]
      %v3247 = vld [vmem:[%s2986 + $0x50] sm:$0xff]
      %v3248 = vld [vmem:[%s2986 + $0x58] sm:$0x11]
      %v3249 = vld [vmem:[%s2986 + $0x60] sm:$0xff]
      %v3250 = vld [vmem:[%s2986 + $0x68] sm:$0x11]
      %v3251 = vld [vmem:[%s2986 + $0x70] sm:$0xff]
      %v3252 = vld [vmem:[%s2986 + $0x78] sm:$0x11]
      %v3254 = vshrl.u32 %v3237, 16
      %v3256 = vrot.slane %v3254, 4
      %v3257 = vshll.u32 %v3237, 16
      %v3259 = vrot.slane %v3257, 5
      %v3260 = vor.u32 %v3256, %v3259
      %v3261 = vrot.slane %v3260, 4
      %v3263 = vshll.u32 %v3238, 16
      %v3265 = vrot.slane %v3263, 5
      %v3266 = vsel %vm1222, %v3261, %v3265
      %v3268 = vshrl.u32 %v3239, 16
      %v3270 = vrot.slane %v3268, 4
      %v3271 = vshll.u32 %v3239, 16
      %v3273 = vrot.slane %v3271, 5
      %v3274 = vor.u32 %v3270, %v3273
      %v3275 = vrot.slane %v3274, 4
      %v3277 = vshll.u32 %v3240, 16
      %v3279 = vrot.slane %v3277, 5
      %v3280 = vsel %vm1222, %v3275, %v3279
      %v3282 = vshrl.u32 %v3241, 16
      %v3284 = vrot.slane %v3282, 4
      %v3285 = vshll.u32 %v3241, 16
      %v3287 = vrot.slane %v3285, 5
      %v3288 = vor.u32 %v3284, %v3287
      %v3289 = vrot.slane %v3288, 4
      %v3291 = vshll.u32 %v3242, 16
      %v3293 = vrot.slane %v3291, 5
      %v3294 = vsel %vm1222, %v3289, %v3293
      %v3296 = vshrl.u32 %v3243, 16
      %v3298 = vrot.slane %v3296, 4
      %v3299 = vshll.u32 %v3243, 16
      %v3301 = vrot.slane %v3299, 5
      %v3302 = vor.u32 %v3298, %v3301
      %v3303 = vrot.slane %v3302, 4
      %v3305 = vshll.u32 %v3244, 16
      %v3307 = vrot.slane %v3305, 5
      %v3308 = vsel %vm1222, %v3303, %v3307
      %v3310 = vshrl.u32 %v3245, 16
      %v3312 = vrot.slane %v3310, 4
      %v3313 = vshll.u32 %v3245, 16
      %v3315 = vrot.slane %v3313, 5
      %v3316 = vor.u32 %v3312, %v3315
      %v3317 = vrot.slane %v3316, 4
      %v3319 = vshll.u32 %v3246, 16
      %v3321 = vrot.slane %v3319, 5
      %v3322 = vsel %vm1222, %v3317, %v3321
      %v3324 = vshrl.u32 %v3247, 16
      %v3326 = vrot.slane %v3324, 4
      %v3327 = vshll.u32 %v3247, 16
      %v3329 = vrot.slane %v3327, 5
      %v3330 = vor.u32 %v3326, %v3329
      %v3331 = vrot.slane %v3330, 4
      %v3333 = vshll.u32 %v3248, 16
      %v3335 = vrot.slane %v3333, 5
      %v3336 = vsel %vm1222, %v3331, %v3335
      %v3338 = vshrl.u32 %v3249, 16
      %v3340 = vrot.slane %v3338, 4
      %v3341 = vshll.u32 %v3249, 16
      %v3343 = vrot.slane %v3341, 5
      %v3344 = vor.u32 %v3340, %v3343
      %v3345 = vrot.slane %v3344, 4
      %v3347 = vshll.u32 %v3250, 16
      %v3349 = vrot.slane %v3347, 5
      %v3350 = vsel %vm1222, %v3345, %v3349
      %v3352 = vshrl.u32 %v3251, 16
      %v3354 = vrot.slane %v3352, 4
      %v3355 = vshll.u32 %v3251, 16
      %v3357 = vrot.slane %v3355, 5
      %v3358 = vor.u32 %v3354, %v3357
      %v3359 = vrot.slane %v3358, 4
      %v3361 = vshll.u32 %v3252, 16
      %v3363 = vrot.slane %v3361, 5
      %v3364 = vsel %vm1222, %v3359, %v3363
      %s3365 = scalar_lea.vmem %s2, 896
      %v3366 = vld [vmem:[%s3365] sm:$0xf]
      %v3367 = vld [vmem:[%s3365 + $0x4] sm:$0xf]
      %v3368 = vld [vmem:[%s3365 + $0x8] sm:$0xf]
      %v3369 = vld [vmem:[%s3365 + $0xc] sm:$0xf]
      %v3370 = vld [vmem:[%s3365 + $0x10] sm:$0xf]
      %v3371 = vld [vmem:[%s3365 + $0x14] sm:$0xf]
      %v3372 = vld [vmem:[%s3365 + $0x18] sm:$0xf]
      %v3373 = vld [vmem:[%s3365 + $0x1c] sm:$0xf]
      %v3374 = vld [vmem:[%s3365 + $0x20] sm:$0xf]
      %v3375 = vld [vmem:[%s3365 + $0x24] sm:$0xf]
      %v3376 = vld [vmem:[%s3365 + $0x28] sm:$0xf]
      %v3377 = vld [vmem:[%s3365 + $0x2c] sm:$0xf]
      %v3378 = vld [vmem:[%s3365 + $0x30] sm:$0xf]
      %v3379 = vld [vmem:[%s3365 + $0x34] sm:$0xf]
      %v3380 = vld [vmem:[%s3365 + $0x38] sm:$0xf]
      %v3381 = vld [vmem:[%s3365 + $0x3c] sm:$0xf]
      %v3382 = vld [vmem:[%s3365 + $0x40] sm:$0xf]
      %v3383 = vld [vmem:[%s3365 + $0x44] sm:$0xf]
      %v3384 = vld [vmem:[%s3365 + $0x48] sm:$0xf]
      %v3385 = vld [vmem:[%s3365 + $0x4c] sm:$0xf]
      %v3386 = vld [vmem:[%s3365 + $0x50] sm:$0xf]
      %v3387 = vld [vmem:[%s3365 + $0x54] sm:$0xf]
      %v3388 = vld [vmem:[%s3365 + $0x58] sm:$0xf]
      %v3389 = vld [vmem:[%s3365 + $0x5c] sm:$0xf]
      %v3390 = vld [vmem:[%s3365 + $0x60] sm:$0xf]
      %v3391 = vld [vmem:[%s3365 + $0x64] sm:$0xf]
      %v3392 = vld [vmem:[%s3365 + $0x68] sm:$0xf]
      %v3393 = vld [vmem:[%s3365 + $0x6c] sm:$0xf]
      %v3394 = vld [vmem:[%s3365 + $0x70] sm:$0xf]
      %v3395 = vld [vmem:[%s3365 + $0x74] sm:$0xf]
      %v3396 = vld [vmem:[%s3365 + $0x78] sm:$0xf]
      %v3397 = vld [vmem:[%s3365 + $0x7c] sm:$0xf]
      %v3398 = vunpack.c.l.b16 %v3266
      %v3399 = vunpack.c.h.b16 %v3266
      %v3400 = vunpack.c.l.b16 %v3280
      %v3401 = vunpack.c.h.b16 %v3280
      %v3402 = vunpack.c.l.b16 %v3294
      %v3403 = vunpack.c.h.b16 %v3294
      %v3404 = vunpack.c.l.b16 %v3308
      %v3405 = vunpack.c.h.b16 %v3308
      %v3406 = vunpack.c.l.b16 %v3322
      %v3407 = vunpack.c.h.b16 %v3322
      %v3408 = vunpack.c.l.b16 %v3336
      %v3409 = vunpack.c.h.b16 %v3336
      %v3410 = vunpack.c.l.b16 %v3350
      %v3411 = vunpack.c.h.b16 %v3350
      %v3412 = vunpack.c.l.b16 %v3364
      %v3413 = vunpack.c.h.b16 %v3364
      %v3414 = vpack.c.b16 %v3400, %v3398
      %v3415 = vpack.c.b16 %v3401, %v3399
      %v3416 = vpack.c.b16 %v3404, %v3402
      %v3417 = vpack.c.b16 %v3405, %v3403
      %v3418 = vpack.c.b16 %v3408, %v3406
      %v3419 = vpack.c.b16 %v3409, %v3407
      %v3420 = vpack.c.b16 %v3412, %v3410
      %v3421 = vpack.c.b16 %v3413, %v3411
      %v3462 = vunpack.c.l.b16 %v3366
      %v3463 = vunpack.c.l.b16 %v3367
      %v3464 = vunpack.c.l.b16 %v3368
      %v3465 = vunpack.c.l.b16 %v3369
      %v3466 = vunpack.c.l.b16 %v3370
      %v3467 = vunpack.c.l.b16 %v3371
      %v3468 = vunpack.c.l.b16 %v3372
      %v3469 = vunpack.c.l.b16 %v3373
      %v3470 = vunpack.c.l.b16 %v3374
      %v3471 = vunpack.c.l.b16 %v3375
      %v3472 = vunpack.c.l.b16 %v3376
      %v3473 = vunpack.c.l.b16 %v3377
      %v3474 = vunpack.c.l.b16 %v3378
      %v3475 = vunpack.c.l.b16 %v3379
      %v3476 = vunpack.c.l.b16 %v3380
      %v3477 = vunpack.c.l.b16 %v3381
      %v3478 = vunpack.c.l.b16 %v3382
      %v3479 = vunpack.c.l.b16 %v3383
      %v3480 = vunpack.c.l.b16 %v3384
      %v3481 = vunpack.c.l.b16 %v3385
      %v3482 = vunpack.c.l.b16 %v3386
      %v3483 = vunpack.c.l.b16 %v3387
      %v3484 = vunpack.c.l.b16 %v3388
      %v3485 = vunpack.c.l.b16 %v3389
      %v3486 = vunpack.c.l.b16 %v3390
      %v3487 = vunpack.c.l.b16 %v3391
      %v3488 = vunpack.c.l.b16 %v3392
      %v3489 = vunpack.c.l.b16 %v3393
      %v3490 = vunpack.c.l.b16 %v3394
      %v3491 = vunpack.c.l.b16 %v3395
      %v3492 = vunpack.c.l.b16 %v3396
      %v3493 = vunpack.c.l.b16 %v3397
      %v3494 = vpack.c.b16 %v3463, %v3462
      %v3495 = vpack.c.b16 %v3465, %v3464
      %v3496 = vpack.c.b16 %v3467, %v3466
      %v3497 = vpack.c.b16 %v3469, %v3468
      %v3498 = vpack.c.b16 %v3471, %v3470
      %v3499 = vpack.c.b16 %v3473, %v3472
      %v3500 = vpack.c.b16 %v3475, %v3474
      %v3501 = vpack.c.b16 %v3477, %v3476
      %v3502 = vpack.c.b16 %v3479, %v3478
      %v3503 = vpack.c.b16 %v3481, %v3480
      %v3504 = vpack.c.b16 %v3483, %v3482
      %v3505 = vpack.c.b16 %v3485, %v3484
      %v3506 = vpack.c.b16 %v3487, %v3486
      %v3507 = vpack.c.b16 %v3489, %v3488
      %v3508 = vpack.c.b16 %v3491, %v3490
      %v3509 = vpack.c.b16 %v3493, %v3492
      %3526 = vmatprep.subr.bf16.mxu0 0
      %3527 = vmatpush1.bf16.msra.mxu0 %v3494
      %3528 = vmatprep.subr.bf16.mxu0 0
      %3529 = vmatpush1.bf16.msra.mxu0 %v3495
      %3530 = vmatprep.subr.bf16.mxu0 0
      %3531 = vmatpush1.bf16.msra.mxu0 %v3496
      %3532 = vmatprep.subr.bf16.mxu0 0
      %3533 = vmatpush1.bf16.msra.mxu0 %v3497
      %3534 = vmatprep.subr.bf16.mxu0 0
      %3535 = vmatpush1.bf16.msra.mxu0 %v3498
      %3536 = vmatprep.subr.bf16.mxu0 0
      %3537 = vmatpush1.bf16.msra.mxu0 %v3499
      %3538 = vmatprep.subr.bf16.mxu0 0
      %3539 = vmatpush1.bf16.msra.mxu0 %v3500
      %3540 = vmatprep.subr.bf16.mxu0 0
      %3541 = vmatpush1.bf16.msra.mxu0 %v3501
      %3542 = vmatprep.subr.bf16.mxu0 0
      %3543 = vmatpush1.bf16.msra.mxu0 %v3502
      %3544 = vmatprep.subr.bf16.mxu0 0
      %3545 = vmatpush1.bf16.msra.mxu0 %v3503
      %3546 = vmatprep.subr.bf16.mxu0 0
      %3547 = vmatpush1.bf16.msra.mxu0 %v3504
      %3548 = vmatprep.subr.bf16.mxu0 0
      %3549 = vmatpush1.bf16.msra.mxu0 %v3505
      %3550 = vmatprep.subr.bf16.mxu0 0
      %3551 = vmatpush1.bf16.msra.mxu0 %v3506
      %3552 = vmatprep.subr.bf16.mxu0 0
      %3553 = vmatpush1.bf16.msra.mxu0 %v3507
      %3554 = vmatprep.subr.bf16.mxu0 0
      %3555 = vmatpush1.bf16.msra.mxu0 %v3508
      %3556 = vmatprep.subr.bf16.mxu0 0
      %3557 = vmatpush1.bf16.msra.mxu0 %v3509
      %3558 = vmatprep.mubr.bf16.mxu0 %v3415
      %3559 = vmatmul.mubr.bf16.gmra.mrb[0].mxu0 %v3414
      %v3560 = vpop.f32.mrb[0].mxu0
      %v3561 = vadd.f32 0.0, %v3560
      %v3562 = vpop.f32.mrb[0].mxu0
      %v3563 = vpop.f32.mrb[0].mxu0
      %v3564 = vadd.f32 0.0, %v3563
      %v3565 = vpop.f32.mrb[0].mxu0
      %3566 = vmatprep.mubr.bf16.mxu0 %v3417
      %3567 = vmatmul.mubr.bf16.gmra.mrb[0].mxu0 %v3416
      %v3568 = vpop.f32.mrb[0].mxu0
      %v3569 = vadd.f32 0.0, %v3568
      %v3570 = vpop.f32.mrb[0].mxu0
      %v3571 = vpop.f32.mrb[0].mxu0
      %v3572 = vadd.f32 0.0, %v3571
      %v3573 = vpop.f32.mrb[0].mxu0
      %3574 = vmatprep.mubr.bf16.mxu0 %v3419
      %3575 = vmatmul.mubr.bf16.gmra.mrb[0].mxu0 %v3418
      %v3576 = vpop.f32.mrb[0].mxu0
      %v3577 = vadd.f32 0.0, %v3576
      %v3578 = vpop.f32.mrb[0].mxu0
      %v3579 = vpop.f32.mrb[0].mxu0
      %v3580 = vadd.f32 0.0, %v3579
      %v3581 = vpop.f32.mrb[0].mxu0
      %3582 = vmatprep.mubr.bf16.mxu0 %v3421
      %3583 = vmatmul.mubr.bf16.gmra.mrb[0].mxu0 %v3420
      %v3584 = vpop.f32.mrb[0].mxu0
      %v3585 = vadd.f32 0.0, %v3584
      %v3586 = vpop.f32.mrb[0].mxu0
      %v3587 = vpop.f32.mrb[0].mxu0
      %v3588 = vadd.f32 0.0, %v3587
      %v3589 = vpop.f32.mrb[0].mxu0
      %3590 = vdwg.mxu0
      %v3591 = vadd.f32 %v3229, %v3561
      %v3592 = vadd.f32 %v3230, %v3564
      %v3593 = vadd.f32 %v3231, %v3569
      %v3594 = vadd.f32 %v3232, %v3572
      %v3595 = vadd.f32 %v3233, %v3577
      %v3596 = vadd.f32 %v3234, %v3580
      %v3597 = vadd.f32 %v3235, %v3585
      %v3598 = vadd.f32 %v3236, %v3588
      %v3599 = vld [vmem:[%s4] sm:$0x1]
      %v3601 = vlaneseq
      %v3602 = vshrl.u32 %v3601, 7
      %v3603 = vsub.s32 0, %v3602
      %v3604 = vrot.slane %v3599, %v3603
      %v3606 = vadd.f32 %v3591, %v3604
      %v3607 = vadd.f32 %v3592, %v3604
      %v3608 = vadd.f32 %v3593, %v3604
      %v3609 = vadd.f32 %v3594, %v3604
      %v3610 = vadd.f32 %v3595, %v3604
      %v3611 = vadd.f32 %v3596, %v3604
      %v3612 = vadd.f32 %v3597, %v3604
      %v3613 = vadd.f32 %v3598, %v3604
      %v3614 = vmul.f32 %v3606, 0.2
      %v3615 = vmul.f32 %v3607, 0.2
      %v3616 = vmul.f32 %v3608, 0.2
      %v3617 = vmul.f32 %v3609, 0.2
      %v3618 = vmul.f32 %v3610, 0.2
      %v3619 = vmul.f32 %v3611, 0.2
      %v3620 = vmul.f32 %v3612, 0.2
      %v3621 = vmul.f32 %v3613, 0.2
      %v3622 = vmax.f32 %v3606, %v3614
      %v3623 = vmax.f32 %v3607, %v3615
      %v3624 = vmax.f32 %v3608, %v3616
      %v3625 = vmax.f32 %v3609, %v3617
      %v3626 = vmax.f32 %v3610, %v3618
      %v3627 = vmax.f32 %v3611, %v3619
      %v3628 = vmax.f32 %v3612, %v3620
      %v3629 = vmax.f32 %v3613, %v3621
      %v3630 = vpack.c.bf16 %v3623, %v3622
      %v3631 = vpack.c.bf16 %v3625, %v3624
      %v3632 = vpack.c.bf16 %v3627, %v3626
      %v3633 = vpack.c.bf16 %v3629, %v3628
      %v3638 = vunpack.c.l.b16 %v3630
      %v3639 = vunpack.c.h.b16 %v3630
      %v3640 = vunpack.c.l.b16 %v3631
      %v3641 = vunpack.c.h.b16 %v3631
      %v3642 = vunpack.c.l.b16 %v3632
      %v3643 = vunpack.c.h.b16 %v3632
      %v3644 = vunpack.c.l.b16 %v3633
      %v3645 = vunpack.c.h.b16 %v3633
      %v3646 = vpack.c.b16 %v3638, %v3638
      %v3647 = vpack.c.b16 %v3639, %v3639
      %v3648 = vpack.c.b16 %v3640, %v3640
      %v3649 = vpack.c.b16 %v3641, %v3641
      %v3650 = vpack.c.b16 %v3642, %v3642
      %v3651 = vpack.c.b16 %v3643, %v3643
      %v3652 = vpack.c.b16 %v3644, %v3644
      %v3653 = vpack.c.b16 %v3645, %v3645
      %3662 = vst [vmem:[%s224] sm:$0xf] %v3646
      %3663 = vst [vmem:[%s224 + $0x4] sm:$0xf] %v3647
      %3664 = vst [vmem:[%s224 + $0x8] sm:$0xf] %v3648
      %3665 = vst [vmem:[%s224 + $0xc] sm:$0xf] %v3649
      %3666 = vst [vmem:[%s224 + $0x10] sm:$0xf] %v3650
      %3667 = vst [vmem:[%s224 + $0x14] sm:$0xf] %v3651
      %3668 = vst [vmem:[%s224 + $0x18] sm:$0xf] %v3652
      %3669 = vst [vmem:[%s224 + $0x1c] sm:$0xf] %v3653
      %p3670 = scmp.lt.s32.totalorder %s16, 1
      %s3671 = scalar_select %p3670, %s16, 1
      %s3672 = smul.addr %s3671, 8
      %s3673 = smul.addr %s3672, 4
      %s3674 = scalar_lea.vmem %s5, %s3673
      // Predicated region
      $region41: #{disc_block_forward.1} parent=39 // pred_check
        %p3675 = pneg %p144
      $region42: #{disc_block_forward.1} parent=39 // pred_check_branch
        %3677 = sbr.rel (%p3675) target = $region44
      $region43: #{disc_block_forward.1} parent=39 // pred_region
        _
      $region44: #{disc_block_forward.1} parent=39 // pred_fallthru
        _
    $region40: #{disc_block_forward.1} parent=5 // pred_fallthru
      _
    %p3678 = scmp.le.s32.totalorder 2, %s11
    // Predicated region
    $region45: #{disc_block_forward.1} parent=5 // pred_check
      %p3679 = pneg %p3678
    $region46: #{disc_block_forward.1} parent=5 // pred_check_branch
      %3681 = sbr.rel (%p3679) target = $region48
    $region47: #{disc_block_forward.1} parent=5 // pred_region
      %s3682 = ssub.s32 %s11, 2
      // Predicated region
      $region49: #{disc_block_forward.1} parent=47 // pred_check
        %p3683 = pneg %p150
      $region50: #{disc_block_forward.1} parent=47 // pred_check_branch
        %3685 = sbr.rel (%p3683) target = $region52
      $region51: #{disc_block_forward.1} parent=47 // pred_region
        %p3686 = scmp.lt.s32.totalorder %s17, 1
        %s3687 = scalar_select %p3686, %s17, 1
        %s3688 = smul.addr %s3687, 8
        %s3689 = smul.addr %s3688, 4
        %s3690 = scalar_lea.vmem %s5, %s3689
      $region52: #{disc_block_forward.1} parent=47 // pred_fallthru
        _
    $region48: #{disc_block_forward.1} parent=5 // pred_fallthru
      _
  $region6: #{disc_block_forward.1} parent=0 // loop_footer
    %s15 = sadd.s32 1, %s11
  $region7: #{disc_block_forward.1} parent=0 // loop_footer_branch
    %10 = sbr.rel target = $region3
  $region8: #{disc_block_forward.1} parent=0 // loop_exit
    _

</llo_original>
